<compile_context>
chip_gen: v7x
topology: tpu7x:2x2x1
jax: 0.10.0
libtpu: 0.0.40
codegen_flags: <defaults>
</compile_context>

<pallas_src>
import functools
import math

import jax
import jax.numpy as jnp
from jax.experimental import pallas as pl
from jax.experimental.pallas import tpu as pltpu


def classifier_kernel(x_ref, w1_ref, b1_ref, w2_ref, b2_ref, w3_ref, b3_ref, o_ref):
    # x arrives f32 (no separate XLA convert pass); cast to bf16 on the VPU for the MXU.
    x = x_ref[...].astype(jnp.bfloat16)
    # fully1: Linear(2048 -> 512) + ReLU   (bf16 inputs, f32 accumulation)
    h1 = jnp.dot(x, w1_ref[...], preferred_element_type=jnp.float32)
    h1 = jnp.maximum(h1 + b1_ref[...], 0.0).astype(jnp.bfloat16)
    # fully2: Linear(512 -> 128-padded 64) + ReLU  (lane-dense; padded cols are exactly 0)
    h2 = jnp.dot(h1, w2_ref[...], preferred_element_type=jnp.float32)
    h2 = jnp.maximum(h2 + b2_ref[...], 0.0).astype(jnp.bfloat16)
    # out: Linear(128-padded 64 -> 128-padded num_class), no activation
    logits = jnp.dot(h2, w3_ref[...], preferred_element_type=jnp.float32)
    o_ref[...] = (logits + b3_ref[...]).astype(o_ref.dtype)


def prepare_classifier_params(w1, b1, w2, b2, w3, b3):
    """One-time, eager (outside jit) weight prep: bf16 cast + lane padding.

    Doing this once at init avoids the per-call f32->bf16 convert pass over the
    weights that a cast inside the jitted forward would cost.
    """
    d_h2 = w2.shape[1]
    num_class = w3.shape[1]
    h2_pad = pl.cdiv(d_h2, 128) * 128          # 64 -> 128 (lane-dense hidden 2)
    n_pad = pl.cdiv(num_class, 128) * 128      # lane-dense logits slab

    w1b = w1.astype(jnp.bfloat16)
    b1p = b1.astype(jnp.float32)
    w2b = jnp.pad(w2, ((0, 0), (0, h2_pad - d_h2))).astype(jnp.bfloat16)
    b2p = jnp.pad(b2, ((0, 0), (0, h2_pad - d_h2))).astype(jnp.float32)
    w3b = jnp.pad(w3, ((0, h2_pad - w3.shape[0]), (0, n_pad - num_class))).astype(jnp.bfloat16)
    b3p = jnp.pad(b3, ((0, 0), (0, n_pad - num_class))).astype(jnp.float32)
    return (w1b, b1p, w2b, b2p, w3b, b3p), num_class


def _batch_tile(B):
    """Pick (tile, padded_B). >= 2 tiles once B >= 512 so v7x's two TCs both get work."""
    if B <= 256:
        return B, B
    if B <= 1024:
        bt = 256
    elif B <= 4096:
        bt = 512
    else:
        bt = 1024
    return bt, pl.cdiv(B, bt) * bt


@functools.partial(jax.jit, static_argnames=("num_class",))
def classifier_forward(x_nchw, w1, b1, w2, b2, w3, b3, *, num_class):
    # nn.Flatten(): metadata-only reshape, no HBM pass.
    B = x_nchw.shape[0]
    x = x_nchw.reshape(B, -1)                  # (B, 2048) f32, cast to bf16 inside kernel
    d_in = x.shape[1]
    d_h1 = w1.shape[1]
    d_h2p = w2.shape[1]                        # already 128-padded
    n_pad = w3.shape[1]                        # already 128-padded

    bt, Bp = _batch_tile(B)
    if Bp != B:
        x = jnp.pad(x, ((0, Bp - B), (0, 0)))
    grid = (Bp // bt,)

    flops = 2 * Bp * (d_in * d_h1 + d_h1 * d_h2p + d_h2p * n_pad)
    bytes_accessed = (
        Bp * d_in * 4                           # x (f32 read, cast in-kernel)
        + d_in * d_h1 * 2 + d_h1 * 4            # w1 (bf16) + b1 (f32)
        + d_h1 * d_h2p * 2 + d_h2p * 4          # w2 + b2 (padded)
        + d_h2p * n_pad * 2 + n_pad * 4         # w3 + b3 (padded)
        + Bp * n_pad * 2                        # output slab (bf16)
    )

    # Constant index maps keep all weights/biases VMEM-resident across batch tiles.
    fixed = lambda a: pl.BlockSpec(a.shape, lambda i: (0,) * a.ndim)

    out_padded = pl.pallas_call(
        classifier_kernel,
        out_shape=jax.ShapeDtypeStruct((Bp, n_pad), jnp.bfloat16),
        grid=grid,
        in_specs=[
            pl.BlockSpec((bt, d_in), lambda i: (i, 0)),
            fixed(w1), fixed(b1),
            fixed(w2), fixed(b2),
            fixed(w3), fixed(b3),
        ],
        out_specs=pl.BlockSpec((bt, n_pad), lambda i: (i, 0)),
        compiler_params=pltpu.CompilerParams(
            dimension_semantics=("parallel",),
            vmem_limit_bytes=32 << 20,
        ),
        cost_estimate=pl.CostEstimate(
            flops=int(flops), transcendentals=0, bytes_accessed=int(bytes_accessed)
        ),
    )(x, w1, b1, w2, b2, w3, b3)

    # Tiny slice + cast (B x num_class) back to the module's f32 output dtype.
    return out_padded[:B, :num_class].astype(jnp.float32)


def init_linear(key, in_features, out_features):
    """Deterministic PyTorch-style (kaiming-uniform) init. Weight stored (in, out)."""
    kw, kb = jax.random.split(key)
    bound_w = 1.0 / math.sqrt(in_features)
    w = jax.random.uniform(kw, (in_features, out_features), jnp.float32,
                           minval=-bound_w, maxval=bound_w)
    b = jax.random.uniform(kb, (1, out_features), jnp.float32,
                           minval=-bound_w, maxval=bound_w)
    return w, b


if __name__ == "__main__":
    num_class = 10
    batch = 2

    root = jax.random.PRNGKey(0)
    k_x, k1, k2, k3 = jax.random.split(root, 4)

    # ResNet50 pooled features: (B, 2048, 1, 1), flattens to (B, 2048)
    x = jax.random.normal(k_x, (batch, 2048, 1, 1), jnp.float32)

    w1, b1 = init_linear(k1, 2048, 512)
    w2, b2 = init_linear(k2, 512, 64)
    w3, b3 = init_linear(k3, 64, num_class)

    # One-time (eager) weight prep: bf16 + lane padding. Not part of the per-call jit.
    params, nc = prepare_classifier_params(w1, b1, w2, b2, w3, b3)

    out = classifier_forward(x, *params, num_class=nc)
    out = jax.block_until_ready(out)

    # Reference check in plain f32 JAX (same math as the PyTorch module).
    xf = x.reshape(batch, -1)
    ref = jnp.maximum(xf @ w1 + b1, 0.0)
    ref = jnp.maximum(ref @ w2 + b2, 0.0)
    ref = ref @ w3 + b3
    assert out.shape == (batch, num_class)
    # bf16 weights/activations inside the kernel -> relaxed tolerance vs. the f32 reference.
    assert jnp.allclose(out, ref, atol=2e-2, rtol=2e-2)

    print("KERNEL_OK")
</pallas_src>

<mosaic_0001>
module attributes {stable_mosaic.version = 11 : i64} {
  func.func @classifier_kernel(%arg0: i32, %arg1: memref<2x2048xf32, #tpu.memory_space<vmem>>, %arg2: memref<2048x512xbf16, #tpu.memory_space<vmem>>, %arg3: memref<1x512xf32, #tpu.memory_space<vmem>>, %arg4: memref<512x128xbf16, #tpu.memory_space<vmem>>, %arg5: memref<1x128xf32, #tpu.memory_space<vmem>>, %arg6: memref<128x128xbf16, #tpu.memory_space<vmem>>, %arg7: memref<1x128xf32, #tpu.memory_space<vmem>>, %arg8: memref<2x128xbf16, #tpu.memory_space<vmem>>) attributes {dimension_semantics = [#tpu.dimension_semantics<parallel>], iteration_bounds = array<i64: 1>, scalar_prefetch = 0 : i64, scratch_operands = 0 : i64, tpu.core_type = #tpu.core_type<tc>, window_params = [{transform_indices = @transform_0, window_bounds = array<i64: 2, 2048>}, {pipeline_mode = #tpu.pipeline_mode<synchronous>, transform_indices = @transform_1, window_bounds = array<i64: 2048, 512>}, {pipeline_mode = #tpu.pipeline_mode<synchronous>, transform_indices = @transform_2, window_bounds = array<i64: 1, 512>}, {pipeline_mode = #tpu.pipeline_mode<synchronous>, transform_indices = @transform_3, window_bounds = array<i64: 512, 128>}, {pipeline_mode = #tpu.pipeline_mode<synchronous>, transform_indices = @transform_4, window_bounds = array<i64: 1, 128>}, {pipeline_mode = #tpu.pipeline_mode<synchronous>, transform_indices = @transform_5, window_bounds = array<i64: 128, 128>}, {pipeline_mode = #tpu.pipeline_mode<synchronous>, transform_indices = @transform_6, window_bounds = array<i64: 1, 128>}, {transform_indices = @transform_7, window_bounds = array<i64: 2, 128>}]} {
    %c0 = arith.constant 0 : index
    %c0_0 = arith.constant 0 : index
    %0 = vector.load %arg1[%c0, %c0_0] : memref<2x2048xf32, #tpu.memory_space<vmem>>, vector<2x2048xf32>
    %1 = arith.truncf %0 : vector<2x2048xf32> to vector<2x2048xbf16>
    %c0_1 = arith.constant 0 : index
    %c0_2 = arith.constant 0 : index
    %2 = vector.load %arg2[%c0_1, %c0_2] : memref<2048x512xbf16, #tpu.memory_space<vmem>>, vector<2048x512xbf16>
    %cst = arith.constant dense<0.000000e+00> : vector<2x512xf32>
    %3 = tpu.matmul %1, %2, %cst {dimension_numbers = #tpu.dot_dimension_numbers<[1], [0], [0], [1], [0, 0, 1, 1], [], []>} : vector<2x2048xbf16>, vector<2048x512xbf16>, vector<2x512xf32> -> vector<2x512xf32>
    %c0_3 = arith.constant 0 : index
    %c0_4 = arith.constant 0 : index
    %4 = vector.load %arg3[%c0_3, %c0_4] : memref<1x512xf32, #tpu.memory_space<vmem>>, vector<1x512xf32>
    %5 = vector.broadcast %4 : vector<1x512xf32> to vector<2x512xf32>
    %6 = arith.addf %3, %5 : vector<2x512xf32>
    %cst_5 = arith.constant 0.000000e+00 : f32
    %7 = vector.broadcast %cst_5 : f32 to vector<2x512xf32>
    %8 = arith.maximumf %6, %7 : vector<2x512xf32>
    %9 = arith.truncf %8 : vector<2x512xf32> to vector<2x512xbf16>
    %c0_6 = arith.constant 0 : index
    %c0_7 = arith.constant 0 : index
    %10 = vector.load %arg4[%c0_6, %c0_7] : memref<512x128xbf16, #tpu.memory_space<vmem>>, vector<512x128xbf16>
    %cst_8 = arith.constant dense<0.000000e+00> : vector<2x128xf32>
    %11 = tpu.matmul %9, %10, %cst_8 {dimension_numbers = #tpu.dot_dimension_numbers<[1], [0], [0], [1], [0, 0, 1, 1], [], []>} : vector<2x512xbf16>, vector<512x128xbf16>, vector<2x128xf32> -> vector<2x128xf32>
    %c0_9 = arith.constant 0 : index
    %c0_10 = arith.constant 0 : index
    %12 = vector.load %arg5[%c0_9, %c0_10] : memref<1x128xf32, #tpu.memory_space<vmem>>, vector<1x128xf32>
    %13 = vector.broadcast %12 : vector<1x128xf32> to vector<2x128xf32>
    %14 = arith.addf %11, %13 : vector<2x128xf32>
    %cst_11 = arith.constant 0.000000e+00 : f32
    %15 = vector.broadcast %cst_11 : f32 to vector<2x128xf32>
    %16 = arith.maximumf %14, %15 : vector<2x128xf32>
    %17 = arith.truncf %16 : vector<2x128xf32> to vector<2x128xbf16>
    %c0_12 = arith.constant 0 : index
    %c0_13 = arith.constant 0 : index
    %18 = vector.load %arg6[%c0_12, %c0_13] : memref<128x128xbf16, #tpu.memory_space<vmem>>, vector<128x128xbf16>
    %cst_14 = arith.constant dense<0.000000e+00> : vector<2x128xf32>
    %19 = tpu.matmul %17, %18, %cst_14 {dimension_numbers = #tpu.dot_dimension_numbers<[1], [0], [0], [1], [0, 0, 1, 1], [], []>} : vector<2x128xbf16>, vector<128x128xbf16>, vector<2x128xf32> -> vector<2x128xf32>
    %c0_15 = arith.constant 0 : index
    %c0_16 = arith.constant 0 : index
    %20 = vector.load %arg7[%c0_15, %c0_16] : memref<1x128xf32, #tpu.memory_space<vmem>>, vector<1x128xf32>
    %21 = vector.broadcast %20 : vector<1x128xf32> to vector<2x128xf32>
    %22 = arith.addf %19, %21 : vector<2x128xf32>
    %23 = arith.truncf %22 : vector<2x128xf32> to vector<2x128xbf16>
    %c0_17 = arith.constant 0 : index
    %c0_18 = arith.constant 0 : index
    %24 = vector.load %arg8[%c0_17, %c0_18] : memref<2x128xbf16, #tpu.memory_space<vmem>>, vector<2x128xbf16>
    tpu.vector_store %arg8[%c0_17, %c0_18], %23 {strides = array<i32>} : memref<2x128xbf16, #tpu.memory_space<vmem>>, vector<2x128xbf16>,
    return
  }
  func.func @transform_0(%arg0: i32) -> (i32, i32) {
    %c0_i32 = arith.constant 0 : i32
    %c0_i32_0 = arith.constant 0 : i32
    return %arg0, %c0_i32 : i32, i32
  }
  func.func @transform_1(%arg0: i32) -> (i32, i32) {
    %c0_i32 = arith.constant 0 : i32
    %c0_i32_0 = arith.constant 0 : i32
    %c0_i32_1 = arith.constant 0 : i32
    return %c0_i32, %c0_i32_0 : i32, i32
  }
  func.func @transform_2(%arg0: i32) -> (i32, i32) {
    %c0_i32 = arith.constant 0 : i32
    %c0_i32_0 = arith.constant 0 : i32
    %c0_i32_1 = arith.constant 0 : i32
    return %c0_i32, %c0_i32_0 : i32, i32
  }
  func.func @transform_3(%arg0: i32) -> (i32, i32) {
    %c0_i32 = arith.constant 0 : i32
    %c0_i32_0 = arith.constant 0 : i32
    %c0_i32_1 = arith.constant 0 : i32
    return %c0_i32, %c0_i32_0 : i32, i32
  }
  func.func @transform_4(%arg0: i32) -> (i32, i32) {
    %c0_i32 = arith.constant 0 : i32
    %c0_i32_0 = arith.constant 0 : i32
    %c0_i32_1 = arith.constant 0 : i32
    return %c0_i32, %c0_i32_0 : i32, i32
  }
  func.func @transform_5(%arg0: i32) -> (i32, i32) {
    %c0_i32 = arith.constant 0 : i32
    %c0_i32_0 = arith.constant 0 : i32
    %c0_i32_1 = arith.constant 0 : i32
    return %c0_i32, %c0_i32_0 : i32, i32
  }
  func.func @transform_6(%arg0: i32) -> (i32, i32) {
    %c0_i32 = arith.constant 0 : i32
    %c0_i32_0 = arith.constant 0 : i32
    %c0_i32_1 = arith.constant 0 : i32
    return %c0_i32, %c0_i32_0 : i32, i32
  }
  func.func @transform_7(%arg0: i32) -> (i32, i32) {
    %c0_i32 = arith.constant 0 : i32
    %c0_i32_0 = arith.constant 0 : i32
    return %arg0, %c0_i32 : i32, i32
  }
}

</mosaic_0001>

<llo_original>
// kernel: classifier_forward.1
$region0: #{classifier_forward.1}
  #allocation0 [shape = 'u32[]', space=smem, size = 0x4, offset = 0x4, fixed_abs, tag = 'smem constant byte address 0x4 - core index']
  #allocation1 [shape = 'u32[144,128]{1,0:T(1,128)}', space=vmem, size = 0x12000, scoped, tag = 'internal scratch']
  %s0 = inlined_call_operand.vmem [shape: f32[2,2048], index: 0, kind: input, shape index: {}]
  %s1 = inlined_call_operand.hbm [shape: bf16[2048,512], index: 1, kind: input, shape index: {}]
  %s2 = inlined_call_operand.hbm [shape: f32[1,512], index: 2, kind: input, shape index: {}]
  %s3 = inlined_call_operand.hbm [shape: bf16[512,128], index: 3, kind: input, shape index: {}]
  %s4 = inlined_call_operand.hbm [shape: f32[1,128], index: 4, kind: input, shape index: {}]
  %s5 = inlined_call_operand.hbm [shape: bf16[128,128], index: 5, kind: input, shape index: {}]
  %s6 = inlined_call_operand.hbm [shape: f32[1,128], index: 6, kind: input, shape index: {}]
  %s7 = inlined_call_operand.vmem [shape: bf16[2,128], index: 7, kind: output, shape index: {}]
  %s8 = sld [smem:[#allocation0]]
  $region62: #{classifier_forward.1} parent=0
    _
  %s10 = ssub.s32 1, %s8
  %s11 = scalar_select 0, %s10, %s8
  $region1: #{classifier_forward.1} parent=0
    #allocation2 [shape = 'u8[2097152]{0}', space=vmem, size = 0x200000, scoped, tag = 'input window, operand 1, single buffered']
    #allocation3 [shape = 's32[1]{0}', space=sflag, size = 0x4, scoped, tag = 'scoped memory for classifier_forward.1']
    #allocation4 [shape = 'u8[2048]{0}', space=vmem, size = 0x800, scoped, tag = 'input window, operand 2, single buffered']
    #allocation5 [shape = 's32[1]{0}', space=sflag, size = 0x4, scoped, tag = 'scoped memory for classifier_forward.1']
    #allocation6 [shape = 'u8[131072]{0}', space=vmem, size = 0x20000, scoped, tag = 'input window, operand 3, single buffered']
    #allocation7 [shape = 'u8[512]{0}', space=vmem, size = 0x400, scoped, tag = 'input window, operand 4, single buffered']
    #allocation8 [shape = 's32[1]{0}', space=sflag, size = 0x4, scoped, tag = 'scoped memory for classifier_forward.1']
    #allocation9 [shape = 'u8[32768]{0}', space=vmem, size = 0x8000, scoped, tag = 'input window, operand 5, single buffered']
    #allocation10 [shape = 'u8[512]{0}', space=vmem, size = 0x400, scoped, tag = 'input window, operand 6, single buffered']
    #allocation11 [shape = 's32[1]{0}', space=sflag, size = 0x4, scoped, tag = 'scoped memory for classifier_forward.1']
    %12 = vsyncpa [#allocation3], 0
    %13 = vsyncpa [#allocation5], 0
    %14 = vsyncpa [#allocation8], 0
    %15 = vsyncpa [#allocation11], 0
    // Predicated region
    $region2: #{classifier_forward.1} parent=1 // pred_check
      _
    $region3: #{classifier_forward.1} parent=1 // pred_check_branch
      %17 = sbr.rel (0) target = $region5
    $region4: #{classifier_forward.1} parent=1 // pred_region
      _
    $region5: #{classifier_forward.1} parent=1 // pred_fallthru
      _
    // Predicated region
    $region6: #{classifier_forward.1} parent=1 // pred_check
      _
    $region7: #{classifier_forward.1} parent=1 // pred_check_branch
      %19 = sbr.rel (0) target = $region9
    $region8: #{classifier_forward.1} parent=1 // pred_region
      %s21 = ssub.s32 65536, 65536
      %22 = vsyncadd [#allocation3], %s21
      %s23 = sshll.u32 [#allocation2], 4
      %s24 = int_to_ptr.vmem [resolvable:$true] %s23
      %29 = dma.hbm_to_vmem [thread:$0]  %s1, 65536, %s24, [#allocation3], 256, 256, 16
    $region9: #{classifier_forward.1} parent=1 // pred_fallthru
      _
    // Predicated region
    $region10: #{classifier_forward.1} parent=1 // pred_check
      _
    $region11: #{classifier_forward.1} parent=1 // pred_check_branch
      %31 = sbr.rel (0) target = $region13
    $region12: #{classifier_forward.1} parent=1 // pred_region
      %s33 = ssub.s32 64, 64
      %34 = vsyncadd [#allocation5], %s33
      %s36 = sshll.u32 [#allocation4], 4
      %s37 = int_to_ptr.vmem [resolvable:$true] %s36
      %39 = dma.hbm_to_vmem [thread:$0]  %s2, 64, %s37, [#allocation5]
    $region13: #{classifier_forward.1} parent=1 // pred_fallthru
      _
    // Predicated region
    $region14: #{classifier_forward.1} parent=1 // pred_check
      _
    $region15: #{classifier_forward.1} parent=1 // pred_check_branch
      %41 = sbr.rel (0) target = $region17
    $region16: #{classifier_forward.1} parent=1 // pred_region
      %s43 = ssub.s32 4096, 4096
      %44 = vsyncadd [#allocation5], %s43
      %s45 = sshll.u32 [#allocation6], 4
      %s46 = int_to_ptr.vmem [resolvable:$true] %s45
      %51 = dma.hbm_to_vmem [thread:$0]  %s3, 4096, %s46, [#allocation5], 64, 64, 4
    $region17: #{classifier_forward.1} parent=1 // pred_fallthru
      _
    // Predicated region
    $region18: #{classifier_forward.1} parent=1 // pred_check
      _
    $region19: #{classifier_forward.1} parent=1 // pred_check_branch
      %53 = sbr.rel (0) target = $region21
    $region20: #{classifier_forward.1} parent=1 // pred_region
      %s55 = ssub.s32 16, 16
      %56 = vsyncadd [#allocation8], %s55
      %s58 = sshll.u32 [#allocation7], 4
      %s59 = int_to_ptr.vmem [resolvable:$true] %s58
      %61 = dma.hbm_to_vmem [thread:$0]  %s4, 16, %s59, [#allocation8]
    $region21: #{classifier_forward.1} parent=1 // pred_fallthru
      _
    // Predicated region
    $region22: #{classifier_forward.1} parent=1 // pred_check
      _
    $region23: #{classifier_forward.1} parent=1 // pred_check_branch
      %63 = sbr.rel (0) target = $region25
    $region24: #{classifier_forward.1} parent=1 // pred_region
      %s65 = ssub.s32 1024, 1024
      %66 = vsyncadd [#allocation8], %s65
      %s67 = sshll.u32 [#allocation9], 4
      %s68 = int_to_ptr.vmem [resolvable:$true] %s67
      %73 = dma.hbm_to_vmem [thread:$0]  %s5, 1024, %s68, [#allocation8], 64, 64, 4
    $region25: #{classifier_forward.1} parent=1 // pred_fallthru
      _
    // Predicated region
    $region26: #{classifier_forward.1} parent=1 // pred_check
      _
    $region27: #{classifier_forward.1} parent=1 // pred_check_branch
      %75 = sbr.rel (0) target = $region29
    $region28: #{classifier_forward.1} parent=1 // pred_region
      %s77 = ssub.s32 16, 16
      %78 = vsyncadd [#allocation11], %s77
      %s80 = sshll.u32 [#allocation10], 4
      %s81 = int_to_ptr.vmem [resolvable:$true] %s80
      %83 = dma.hbm_to_vmem [thread:$0]  %s6, 16, %s81, [#allocation11]
    $region29: #{classifier_forward.1} parent=1 // pred_fallthru
      _
    // Predicated region
    $region30: #{classifier_forward.1} parent=1 // pred_check
      _
    $region31: #{classifier_forward.1} parent=1 // pred_check_branch
      %85 = sbr.rel (0) target = $region33
    $region32: #{classifier_forward.1} parent=1 // pred_region
      %86 = dma.done [#allocation3], 65536
    $region33: #{classifier_forward.1} parent=1 // pred_fallthru
      _
    // Predicated region
    $region34: #{classifier_forward.1} parent=1 // pred_check
      _
    $region35: #{classifier_forward.1} parent=1 // pred_check_branch
      %88 = sbr.rel (0) target = $region37
    $region36: #{classifier_forward.1} parent=1 // pred_region
      %89 = dma.done [#allocation5], 64
    $region37: #{classifier_forward.1} parent=1 // pred_fallthru
      _
    // Predicated region
    $region38: #{classifier_forward.1} parent=1 // pred_check
      _
    $region39: #{classifier_forward.1} parent=1 // pred_check_branch
      %91 = sbr.rel (0) target = $region41
    $region40: #{classifier_forward.1} parent=1 // pred_region
      %92 = dma.done [#allocation5], 4096
    $region41: #{classifier_forward.1} parent=1 // pred_fallthru
      _
    // Predicated region
    $region42: #{classifier_forward.1} parent=1 // pred_check
      _
    $region43: #{classifier_forward.1} parent=1 // pred_check_branch
      %94 = sbr.rel (0) target = $region45
    $region44: #{classifier_forward.1} parent=1 // pred_region
      %95 = dma.done [#allocation8], 16
    $region45: #{classifier_forward.1} parent=1 // pred_fallthru
      _
    // Predicated region
    $region46: #{classifier_forward.1} parent=1 // pred_check
      _
    $region47: #{classifier_forward.1} parent=1 // pred_check_branch
      %97 = sbr.rel (0) target = $region49
    $region48: #{classifier_forward.1} parent=1 // pred_region
      %98 = dma.done [#allocation8], 1024
    $region49: #{classifier_forward.1} parent=1 // pred_fallthru
      _
    // Predicated region
    $region50: #{classifier_forward.1} parent=1 // pred_check
      _
    $region51: #{classifier_forward.1} parent=1 // pred_check_branch
      %100 = sbr.rel (0) target = $region53
    $region52: #{classifier_forward.1} parent=1 // pred_region
      %101 = dma.done [#allocation11], 16
    $region53: #{classifier_forward.1} parent=1 // pred_fallthru
      _
    %v103 = vld [vmem:[%s0] sm:$0xff]
    %v104 = vld [vmem:[%s0 + $0x8] sm:$0xff]
    %v105 = vld [vmem:[%s0 + $0x10] sm:$0xff]
    %v106 = vld [vmem:[%s0 + $0x18] sm:$0xff]
    %v111 = vcombine.high %v103, %v103
    %v113 = vunpack.c.l.s4 1983009808
    %v114 = vunpack.c.0.s8 %v113
    %v115 = vlaneseq
    %v116 = vshrl.u32 %v115, 7
    %v117 = vsub.s32 %v114, %v116
    %v118 = vrot.slane %v103, %v117
    %v120 = vunpack.c.l.s4 1983009808
    %v121 = vunpack.c.0.s8 %v120
    %v122 = vlaneseq
    %v123 = vshrl.u32 %v122, 7
    %v124 = vsub.s32 %v121, %v123
    %v125 = vrot.slane %v111, %v124
    %v126 = vcombine.high %v118, %v118
    %v127 = vcombine.high %v125, %v125
    %v128 = vcombine.high %v104, %v104
    %v130 = vunpack.c.l.s4 1983009808
    %v131 = vunpack.c.0.s8 %v130
    %v132 = vlaneseq
    %v133 = vshrl.u32 %v132, 7
    %v134 = vsub.s32 %v131, %v133
    %v135 = vrot.slane %v104, %v134
    %v137 = vunpack.c.l.s4 1983009808
    %v138 = vunpack.c.0.s8 %v137
    %v139 = vlaneseq
    %v140 = vshrl.u32 %v139, 7
    %v141 = vsub.s32 %v138, %v140
    %v142 = vrot.slane %v128, %v141
    %v143 = vcombine.high %v135, %v135
    %v144 = vcombine.high %v142, %v142
    %v145 = vcombine.high %v105, %v105
    %v147 = vunpack.c.l.s4 1983009808
    %v148 = vunpack.c.0.s8 %v147
    %v149 = vlaneseq
    %v150 = vshrl.u32 %v149, 7
    %v151 = vsub.s32 %v148, %v150
    %v152 = vrot.slane %v105, %v151
    %v154 = vunpack.c.l.s4 1983009808
    %v155 = vunpack.c.0.s8 %v154
    %v156 = vlaneseq
    %v157 = vshrl.u32 %v156, 7
    %v158 = vsub.s32 %v155, %v157
    %v159 = vrot.slane %v145, %v158
    %v160 = vcombine.high %v152, %v152
    %v161 = vcombine.high %v159, %v159
    %v162 = vcombine.high %v106, %v106
    %v164 = vunpack.c.l.s4 1983009808
    %v165 = vunpack.c.0.s8 %v164
    %v166 = vlaneseq
    %v167 = vshrl.u32 %v166, 7
    %v168 = vsub.s32 %v165, %v167
    %v169 = vrot.slane %v106, %v168
    %v171 = vunpack.c.l.s4 1983009808
    %v172 = vunpack.c.0.s8 %v171
    %v173 = vlaneseq
    %v174 = vshrl.u32 %v173, 7
    %v175 = vsub.s32 %v172, %v174
    %v176 = vrot.slane %v162, %v175
    %v177 = vcombine.high %v169, %v169
    %v178 = vcombine.high %v176, %v176
    %v195 = vpack.c.bf16 %v118, %v118
    %v196 = vpack.c.bf16 %v126, %v126
    %v197 = vpack.c.bf16 %v125, %v125
    %v198 = vpack.c.bf16 %v127, %v127
    %v199 = vpack.c.bf16 %v135, %v135
    %v200 = vpack.c.bf16 %v143, %v143
    %v201 = vpack.c.bf16 %v142, %v142
    %v202 = vpack.c.bf16 %v144, %v144
    %v203 = vpack.c.bf16 %v152, %v152
    %v204 = vpack.c.bf16 %v160, %v160
    %v205 = vpack.c.bf16 %v159, %v159
    %v206 = vpack.c.bf16 %v161, %v161
    %v207 = vpack.c.bf16 %v169, %v169
    %v208 = vpack.c.bf16 %v177, %v177
    %v209 = vpack.c.bf16 %v176, %v176
    %v210 = vpack.c.bf16 %v178, %v178
    %v211 = vld [vmem:[#allocation2] sm:$0xff]
    %v212 = vld [vmem:[#allocation2 + $0x8] sm:$0xff]
    %v213 = vld [vmem:[#allocation2 + $0x10] sm:$0xff]
    %v214 = vld [vmem:[#allocation2 + $0x18] sm:$0xff]
    %v215 = vld [vmem:[#allocation2 + $0x20] sm:$0xff]
    %v216 = vld [vmem:[#allocation2 + $0x28] sm:$0xff]
    %v217 = vld [vmem:[#allocation2 + $0x30] sm:$0xff]
    %v218 = vld [vmem:[#allocation2 + $0x38] sm:$0xff]
    %v219 = vld [vmem:[#allocation2 + $0x40] sm:$0xff]
    %v220 = vld [vmem:[#allocation2 + $0x48] sm:$0xff]
    %v221 = vld [vmem:[#allocation2 + $0x50] sm:$0xff]
    %v222 = vld [vmem:[#allocation2 + $0x58] sm:$0xff]
    %v223 = vld [vmem:[#allocation2 + $0x60] sm:$0xff]
    %v224 = vld [vmem:[#allocation2 + $0x68] sm:$0xff]
    %v225 = vld [vmem:[#allocation2 + $0x70] sm:$0xff]
    %v226 = vld [vmem:[#allocation2 + $0x78] sm:$0xff]
    %v227 = vld [vmem:[#allocation2 + $0x80] sm:$0xff]
    %v228 = vld [vmem:[#allocation2 + $0x88] sm:$0xff]
    %v229 = vld [vmem:[#allocation2 + $0x90] sm:$0xff]
    %v230 = vld [vmem:[#allocation2 + $0x98] sm:$0xff]
    %v231 = vld [vmem:[#allocation2 + $0xa0] sm:$0xff]
    %v232 = vld [vmem:[#allocation2 + $0xa8] sm:$0xff]
    %v233 = vld [vmem:[#allocation2 + $0xb0] sm:$0xff]
    %v234 = vld [vmem:[#allocation2 + $0xb8] sm:$0xff]
    %v235 = vld [vmem:[#allocation2 + $0xc0] sm:$0xff]
    %v236 = vld [vmem:[#allocation2 + $0xc8] sm:$0xff]
    %v237 = vld [vmem:[#allocation2 + $0xd0] sm:$0xff]
    %v238 = vld [vmem:[#allocation2 + $0xd8] sm:$0xff]
    %v239 = vld [vmem:[#allocation2 + $0xe0] sm:$0xff]
    %v240 = vld [vmem:[#allocation2 + $0xe8] sm:$0xff]
    %v241 = vld [vmem:[#allocation2 + $0xf0] sm:$0xff]
    %v242 = vld [vmem:[#allocation2 + $0xf8] sm:$0xff]
    %v243 = vld [vmem:[#allocation2 + $0x100] sm:$0xff]
    %v244 = vld [vmem:[#allocation2 + $0x108] sm:$0xff]
    %v245 = vld [vmem:[#allocation2 + $0x110] sm:$0xff]
    %v246 = vld [vmem:[#allocation2 + $0x118] sm:$0xff]
    %v247 = vld [vmem:[#allocation2 + $0x120] sm:$0xff]
    %v248 = vld [vmem:[#allocation2 + $0x128] sm:$0xff]
    %v249 = vld [vmem:[#allocation2 + $0x130] sm:$0xff]
    %v250 = vld [vmem:[#allocation2 + $0x138] sm:$0xff]
    %v251 = vld [vmem:[#allocation2 + $0x140] sm:$0xff]
    %v252 = vld [vmem:[#allocation2 + $0x148] sm:$0xff]
    %v253 = vld [vmem:[#allocation2 + $0x150] sm:$0xff]
    %v254 = vld [vmem:[#allocation2 + $0x158] sm:$0xff]
    %v255 = vld [vmem:[#allocation2 + $0x160] sm:$0xff]
    %v256 = vld [vmem:[#allocation2 + $0x168] sm:$0xff]
    %v257 = vld [vmem:[#allocation2 + $0x170] sm:$0xff]
    %v258 = vld [vmem:[#allocation2 + $0x178] sm:$0xff]
    %v259 = vld [vmem:[#allocation2 + $0x180] sm:$0xff]
    %v260 = vld [vmem:[#allocation2 + $0x188] sm:$0xff]
    %v261 = vld [vmem:[#allocation2 + $0x190] sm:$0xff]
    %v262 = vld [vmem:[#allocation2 + $0x198] sm:$0xff]
    %v263 = vld [vmem:[#allocation2 + $0x1a0] sm:$0xff]
    %v264 = vld [vmem:[#allocation2 + $0x1a8] sm:$0xff]
    %v265 = vld [vmem:[#allocation2 + $0x1b0] sm:$0xff]
    %v266 = vld [vmem:[#allocation2 + $0x1b8] sm:$0xff]
    %v267 = vld [vmem:[#allocation2 + $0x1c0] sm:$0xff]
    %v268 = vld [vmem:[#allocation2 + $0x1c8] sm:$0xff]
    %v269 = vld [vmem:[#allocation2 + $0x1d0] sm:$0xff]
    %v270 = vld [vmem:[#allocation2 + $0x1d8] sm:$0xff]
    %v271 = vld [vmem:[#allocation2 + $0x1e0] sm:$0xff]
    %v272 = vld [vmem:[#allocation2 + $0x1e8] sm:$0xff]
    %v273 = vld [vmem:[#allocation2 + $0x1f0] sm:$0xff]
    %v274 = vld [vmem:[#allocation2 + $0x1f8] sm:$0xff]
    %v275 = vld [vmem:[#allocation2 + $0x200] sm:$0xff]
    %v276 = vld [vmem:[#allocation2 + $0x208] sm:$0xff]
    %v277 = vld [vmem:[#allocation2 + $0x210] sm:$0xff]
    %v278 = vld [vmem:[#allocation2 + $0x218] sm:$0xff]
    %v279 = vld [vmem:[#allocation2 + $0x220] sm:$0xff]
    %v280 = vld [vmem:[#allocation2 + $0x228] sm:$0xff]
    %v281 = vld [vmem:[#allocation2 + $0x230] sm:$0xff]
    %v282 = vld [vmem:[#allocation2 + $0x238] sm:$0xff]
    %v283 = vld [vmem:[#allocation2 + $0x240] sm:$0xff]
    %v284 = vld [vmem:[#allocation2 + $0x248] sm:$0xff]
    %v285 = vld [vmem:[#allocation2 + $0x250] sm:$0xff]
    %v286 = vld [vmem:[#allocation2 + $0x258] sm:$0xff]
    %v287 = vld [vmem:[#allocation2 + $0x260] sm:$0xff]
    %v288 = vld [vmem:[#allocation2 + $0x268] sm:$0xff]
    %v289 = vld [vmem:[#allocation2 + $0x270] sm:$0xff]
    %v290 = vld [vmem:[#allocation2 + $0x278] sm:$0xff]
    %v291 = vld [vmem:[#allocation2 + $0x280] sm:$0xff]
    %v292 = vld [vmem:[#allocation2 + $0x288] sm:$0xff]
    %v293 = vld [vmem:[#allocation2 + $0x290] sm:$0xff]
    %v294 = vld [vmem:[#allocation2 + $0x298] sm:$0xff]
    %v295 = vld [vmem:[#allocation2 + $0x2a0] sm:$0xff]
    %v296 = vld [vmem:[#allocation2 + $0x2a8] sm:$0xff]
    %v297 = vld [vmem:[#allocation2 + $0x2b0] sm:$0xff]
    %v298 = vld [vmem:[#allocation2 + $0x2b8] sm:$0xff]
    %v299 = vld [vmem:[#allocation2 + $0x2c0] sm:$0xff]
    %v300 = vld [vmem:[#allocation2 + $0x2c8] sm:$0xff]
    %v301 = vld [vmem:[#allocation2 + $0x2d0] sm:$0xff]
    %v302 = vld [vmem:[#allocation2 + $0x2d8] sm:$0xff]
    %v303 = vld [vmem:[#allocation2 + $0x2e0] sm:$0xff]
    %v304 = vld [vmem:[#allocation2 + $0x2e8] sm:$0xff]
    %v305 = vld [vmem:[#allocation2 + $0x2f0] sm:$0xff]
    %v306 = vld [vmem:[#allocation2 + $0x2f8] sm:$0xff]
    %v307 = vld [vmem:[#allocation2 + $0x300] sm:$0xff]
    %v308 = vld [vmem:[#allocation2 + $0x308] sm:$0xff]
    %v309 = vld [vmem:[#allocation2 + $0x310] sm:$0xff]
    %v310 = vld [vmem:[#allocation2 + $0x318] sm:$0xff]
    %v311 = vld [vmem:[#allocation2 + $0x320] sm:$0xff]
    %v312 = vld [vmem:[#allocation2 + $0x328] sm:$0xff]
    %v313 = vld [vmem:[#allocation2 + $0x330] sm:$0xff]
    %v314 = vld [vmem:[#allocation2 + $0x338] sm:$0xff]
    %v315 = vld [vmem:[#allocation2 + $0x340] sm:$0xff]
    %v316 = vld [vmem:[#allocation2 + $0x348] sm:$0xff]
    %v317 = vld [vmem:[#allocation2 + $0x350] sm:$0xff]
    %v318 = vld [vmem:[#allocation2 + $0x358] sm:$0xff]
    %v319 = vld [vmem:[#allocation2 + $0x360] sm:$0xff]
    %v320 = vld [vmem:[#allocation2 + $0x368] sm:$0xff]
    %v321 = vld [vmem:[#allocation2 + $0x370] sm:$0xff]
    %v322 = vld [vmem:[#allocation2 + $0x378] sm:$0xff]
    %v323 = vld [vmem:[#allocation2 + $0x380] sm:$0xff]
    %v324 = vld [vmem:[#allocation2 + $0x388] sm:$0xff]
    %v325 = vld [vmem:[#allocation2 + $0x390] sm:$0xff]
    %v326 = vld [vmem:[#allocation2 + $0x398] sm:$0xff]
    %v327 = vld [vmem:[#allocation2 + $0x3a0] sm:$0xff]
    %v328 = vld [vmem:[#allocation2 + $0x3a8] sm:$0xff]
    %v329 = vld [vmem:[#allocation2 + $0x3b0] sm:$0xff]
    %v330 = vld [vmem:[#allocation2 + $0x3b8] sm:$0xff]
    %v331 = vld [vmem:[#allocation2 + $0x3c0] sm:$0xff]
    %v332 = vld [vmem:[#allocation2 + $0x3c8] sm:$0xff]
    %v333 = vld [vmem:[#allocation2 + $0x3d0] sm:$0xff]
    %v334 = vld [vmem:[#allocation2 + $0x3d8] sm:$0xff]
    %v335 = vld [vmem:[#allocation2 + $0x3e0] sm:$0xff]
    %v336 = vld [vmem:[#allocation2 + $0x3e8] sm:$0xff]
    %v337 = vld [vmem:[#allocation2 + $0x3f0] sm:$0xff]
    %v338 = vld [vmem:[#allocation2 + $0x3f8] sm:$0xff]
    %v339 = vld [vmem:[#allocation2 + $0x400] sm:$0xff]
    %v340 = vld [vmem:[#allocation2 + $0x408] sm:$0xff]
    %v341 = vld [vmem:[#allocation2 + $0x410] sm:$0xff]
    %v342 = vld [vmem:[#allocation2 + $0x418] sm:$0xff]
    %v343 = vld [vmem:[#allocation2 + $0x420] sm:$0xff]
    %v344 = vld [vmem:[#allocation2 + $0x428] sm:$0xff]
    %v345 = vld [vmem:[#allocation2 + $0x430] sm:$0xff]
    %v346 = vld [vmem:[#allocation2 + $0x438] sm:$0xff]
    %v347 = vld [vmem:[#allocation2 + $0x440] sm:$0xff]
    %v348 = vld [vmem:[#allocation2 + $0x448] sm:$0xff]
    %v349 = vld [vmem:[#allocation2 + $0x450] sm:$0xff]
    %v350 = vld [vmem:[#allocation2 + $0x458] sm:$0xff]
    %v351 = vld [vmem:[#allocation2 + $0x460] sm:$0xff]
    %v352 = vld [vmem:[#allocation2 + $0x468] sm:$0xff]
    %v353 = vld [vmem:[#allocation2 + $0x470] sm:$0xff]
    %v354 = vld [vmem:[#allocation2 + $0x478] sm:$0xff]
    %v355 = vld [vmem:[#allocation2 + $0x480] sm:$0xff]
    %v356 = vld [vmem:[#allocation2 + $0x488] sm:$0xff]
    %v357 = vld [vmem:[#allocation2 + $0x490] sm:$0xff]
    %v358 = vld [vmem:[#allocation2 + $0x498] sm:$0xff]
    %v359 = vld [vmem:[#allocation2 + $0x4a0] sm:$0xff]
    %v360 = vld [vmem:[#allocation2 + $0x4a8] sm:$0xff]
    %v361 = vld [vmem:[#allocation2 + $0x4b0] sm:$0xff]
    %v362 = vld [vmem:[#allocation2 + $0x4b8] sm:$0xff]
    %v363 = vld [vmem:[#allocation2 + $0x4c0] sm:$0xff]
    %v364 = vld [vmem:[#allocation2 + $0x4c8] sm:$0xff]
    %v365 = vld [vmem:[#allocation2 + $0x4d0] sm:$0xff]
    %v366 = vld [vmem:[#allocation2 + $0x4d8] sm:$0xff]
    %v367 = vld [vmem:[#allocation2 + $0x4e0] sm:$0xff]
    %v368 = vld [vmem:[#allocation2 + $0x4e8] sm:$0xff]
    %v369 = vld [vmem:[#allocation2 + $0x4f0] sm:$0xff]
    %v370 = vld [vmem:[#allocation2 + $0x4f8] sm:$0xff]
    %v371 = vld [vmem:[#allocation2 + $0x500] sm:$0xff]
    %v372 = vld [vmem:[#allocation2 + $0x508] sm:$0xff]
    %v373 = vld [vmem:[#allocation2 + $0x510] sm:$0xff]
    %v374 = vld [vmem:[#allocation2 + $0x518] sm:$0xff]
    %v375 = vld [vmem:[#allocation2 + $0x520] sm:$0xff]
    %v376 = vld [vmem:[#allocation2 + $0x528] sm:$0xff]
    %v377 = vld [vmem:[#allocation2 + $0x530] sm:$0xff]
    %v378 = vld [vmem:[#allocation2 + $0x538] sm:$0xff]
    %v379 = vld [vmem:[#allocation2 + $0x540] sm:$0xff]
    %v380 = vld [vmem:[#allocation2 + $0x548] sm:$0xff]
    %v381 = vld [vmem:[#allocation2 + $0x550] sm:$0xff]
    %v382 = vld [vmem:[#allocation2 + $0x558] sm:$0xff]
    %v383 = vld [vmem:[#allocation2 + $0x560] sm:$0xff]
    %v384 = vld [vmem:[#allocation2 + $0x568] sm:$0xff]
    %v385 = vld [vmem:[#allocation2 + $0x570] sm:$0xff]
    %v386 = vld [vmem:[#allocation2 + $0x578] sm:$0xff]
    %v387 = vld [vmem:[#allocation2 + $0x580] sm:$0xff]
    %v388 = vld [vmem:[#allocation2 + $0x588] sm:$0xff]
    %v389 = vld [vmem:[#allocation2 + $0x590] sm:$0xff]
    %v390 = vld [vmem:[#allocation2 + $0x598] sm:$0xff]
    %v391 = vld [vmem:[#allocation2 + $0x5a0] sm:$0xff]
    %v392 = vld [vmem:[#allocation2 + $0x5a8] sm:$0xff]
    %v393 = vld [vmem:[#allocation2 + $0x5b0] sm:$0xff]
    %v394 = vld [vmem:[#allocation2 + $0x5b8] sm:$0xff]
    %v395 = vld [vmem:[#allocation2 + $0x5c0] sm:$0xff]
    %v396 = vld [vmem:[#allocation2 + $0x5c8] sm:$0xff]
    %v397 = vld [vmem:[#allocation2 + $0x5d0] sm:$0xff]
    %v398 = vld [vmem:[#allocation2 + $0x5d8] sm:$0xff]
    %v399 = vld [vmem:[#allocation2 + $0x5e0] sm:$0xff]
    %v400 = vld [vmem:[#allocation2 + $0x5e8] sm:$0xff]
    %v401 = vld [vmem:[#allocation2 + $0x5f0] sm:$0xff]
    %v402 = vld [vmem:[#allocation2 + $0x5f8] sm:$0xff]
    %v403 = vld [vmem:[#allocation2 + $0x600] sm:$0xff]
    %v404 = vld [vmem:[#allocation2 + $0x608] sm:$0xff]
    %v405 = vld [vmem:[#allocation2 + $0x610] sm:$0xff]
    %v406 = vld [vmem:[#allocation2 + $0x618] sm:$0xff]
    %v407 = vld [vmem:[#allocation2 + $0x620] sm:$0xff]
    %v408 = vld [vmem:[#allocation2 + $0x628] sm:$0xff]
    %v409 = vld [vmem:[#allocation2 + $0x630] sm:$0xff]
    %v410 = vld [vmem:[#allocation2 + $0x638] sm:$0xff]
    %v411 = vld [vmem:[#allocation2 + $0x640] sm:$0xff]
    %v412 = vld [vmem:[#allocation2 + $0x648] sm:$0xff]
    %v413 = vld [vmem:[#allocation2 + $0x650] sm:$0xff]
    %v414 = vld [vmem:[#allocation2 + $0x658] sm:$0xff]
    %v415 = vld [vmem:[#allocation2 + $0x660] sm:$0xff]
    %v416 = vld [vmem:[#allocation2 + $0x668] sm:$0xff]
    %v417 = vld [vmem:[#allocation2 + $0x670] sm:$0xff]
    %v418 = vld [vmem:[#allocation2 + $0x678] sm:$0xff]
    %v419 = vld [vmem:[#allocation2 + $0x680] sm:$0xff]
    %v420 = vld [vmem:[#allocation2 + $0x688] sm:$0xff]
    %v421 = vld [vmem:[#allocation2 + $0x690] sm:$0xff]
    %v422 = vld [vmem:[#allocation2 + $0x698] sm:$0xff]
    %v423 = vld [vmem:[#allocation2 + $0x6a0] sm:$0xff]
    %v424 = vld [vmem:[#allocation2 + $0x6a8] sm:$0xff]
    %v425 = vld [vmem:[#allocation2 + $0x6b0] sm:$0xff]
    %v426 = vld [vmem:[#allocation2 + $0x6b8] sm:$0xff]
    %v427 = vld [vmem:[#allocation2 + $0x6c0] sm:$0xff]
    %v428 = vld [vmem:[#allocation2 + $0x6c8] sm:$0xff]
    %v429 = vld [vmem:[#allocation2 + $0x6d0] sm:$0xff]
    %v430 = vld [vmem:[#allocation2 + $0x6d8] sm:$0xff]
    %v431 = vld [vmem:[#allocation2 + $0x6e0] sm:$0xff]
    %v432 = vld [vmem:[#allocation2 + $0x6e8] sm:$0xff]
    %v433 = vld [vmem:[#allocation2 + $0x6f0] sm:$0xff]
    %v434 = vld [vmem:[#allocation2 + $0x6f8] sm:$0xff]
    %v435 = vld [vmem:[#allocation2 + $0x700] sm:$0xff]
    %v436 = vld [vmem:[#allocation2 + $0x708] sm:$0xff]
    %v437 = vld [vmem:[#allocation2 + $0x710] sm:$0xff]
    %v438 = vld [vmem:[#allocation2 + $0x718] sm:$0xff]
    %v439 = vld [vmem:[#allocation2 + $0x720] sm:$0xff]
    %v440 = vld [vmem:[#allocation2 + $0x728] sm:$0xff]
    %v441 = vld [vmem:[#allocation2 + $0x730] sm:$0xff]
    %v442 = vld [vmem:[#allocation2 + $0x738] sm:$0xff]
    %v443 = vld [vmem:[#allocation2 + $0x740] sm:$0xff]
    %v444 = vld [vmem:[#allocation2 + $0x748] sm:$0xff]
    %v445 = vld [vmem:[#allocation2 + $0x750] sm:$0xff]
    %v446 = vld [vmem:[#allocation2 + $0x758] sm:$0xff]
    %v447 = vld [vmem:[#allocation2 + $0x760] sm:$0xff]
    %v448 = vld [vmem:[#allocation2 + $0x768] sm:$0xff]
    %v449 = vld [vmem:[#allocation2 + $0x770] sm:$0xff]
    %v450 = vld [vmem:[#allocation2 + $0x778] sm:$0xff]
    %v451 = vld [vmem:[#allocation2 + $0x780] sm:$0xff]
    %v452 = vld [vmem:[#allocation2 + $0x788] sm:$0xff]
    %v453 = vld [vmem:[#allocation2 + $0x790] sm:$0xff]
    %v454 = vld [vmem:[#allocation2 + $0x798] sm:$0xff]
    %v455 = vld [vmem:[#allocation2 + $0x7a0] sm:$0xff]
    %v456 = vld [vmem:[#allocation2 + $0x7a8] sm:$0xff]
    %v457 = vld [vmem:[#allocation2 + $0x7b0] sm:$0xff]
    %v458 = vld [vmem:[#allocation2 + $0x7b8] sm:$0xff]
    %v459 = vld [vmem:[#allocation2 + $0x7c0] sm:$0xff]
    %v460 = vld [vmem:[#allocation2 + $0x7c8] sm:$0xff]
    %v461 = vld [vmem:[#allocation2 + $0x7d0] sm:$0xff]
    %v462 = vld [vmem:[#allocation2 + $0x7d8] sm:$0xff]
    %v463 = vld [vmem:[#allocation2 + $0x7e0] sm:$0xff]
    %v464 = vld [vmem:[#allocation2 + $0x7e8] sm:$0xff]
    %v465 = vld [vmem:[#allocation2 + $0x7f0] sm:$0xff]
    %v466 = vld [vmem:[#allocation2 + $0x7f8] sm:$0xff]
    %v467 = vld [vmem:[#allocation2 + $0x800] sm:$0xff]
    %v468 = vld [vmem:[#allocation2 + $0x808] sm:$0xff]
    %v469 = vld [vmem:[#allocation2 + $0x810] sm:$0xff]
    %v470 = vld [vmem:[#allocation2 + $0x818] sm:$0xff]
    %v471 = vld [vmem:[#allocation2 + $0x820] sm:$0xff]
    %v472 = vld [vmem:[#allocation2 + $0x828] sm:$0xff]
    %v473 = vld [vmem:[#allocation2 + $0x830] sm:$0xff]
    %v474 = vld [vmem:[#allocation2 + $0x838] sm:$0xff]
    %v475 = vld [vmem:[#allocation2 + $0x840] sm:$0xff]
    %v476 = vld [vmem:[#allocation2 + $0x848] sm:$0xff]
    %v477 = vld [vmem:[#allocation2 + $0x850] sm:$0xff]
    %v478 = vld [vmem:[#allocation2 + $0x858] sm:$0xff]
    %v479 = vld [vmem:[#allocation2 + $0x860] sm:$0xff]
    %v480 = vld [vmem:[#allocation2 + $0x868] sm:$0xff]
    %v481 = vld [vmem:[#allocation2 + $0x870] sm:$0xff]
    %v482 = vld [vmem:[#allocation2 + $0x878] sm:$0xff]
    %v483 = vld [vmem:[#allocation2 + $0x880] sm:$0xff]
    %v484 = vld [vmem:[#allocation2 + $0x888] sm:$0xff]
    %v485 = vld [vmem:[#allocation2 + $0x890] sm:$0xff]
    %v486 = vld [vmem:[#allocation2 + $0x898] sm:$0xff]
    %v487 = vld [vmem:[#allocation2 + $0x8a0] sm:$0xff]
    %v488 = vld [vmem:[#allocation2 + $0x8a8] sm:$0xff]
    %v489 = vld [vmem:[#allocation2 + $0x8b0] sm:$0xff]
    %v490 = vld [vmem:[#allocation2 + $0x8b8] sm:$0xff]
    %v491 = vld [vmem:[#allocation2 + $0x8c0] sm:$0xff]
    %v492 = vld [vmem:[#allocation2 + $0x8c8] sm:$0xff]
    %v493 = vld [vmem:[#allocation2 + $0x8d0] sm:$0xff]
    %v494 = vld [vmem:[#allocation2 + $0x8d8] sm:$0xff]
    %v495 = vld [vmem:[#allocation2 + $0x8e0] sm:$0xff]
    %v496 = vld [vmem:[#allocation2 + $0x8e8] sm:$0xff]
    %v497 = vld [vmem:[#allocation2 + $0x8f0] sm:$0xff]
    %v498 = vld [vmem:[#allocation2 + $0x8f8] sm:$0xff]
    %v499 = vld [vmem:[#allocation2 + $0x900] sm:$0xff]
    %v500 = vld [vmem:[#allocation2 + $0x908] sm:$0xff]
    %v501 = vld [vmem:[#allocation2 + $0x910] sm:$0xff]
    %v502 = vld [vmem:[#allocation2 + $0x918] sm:$0xff]
    %v503 = vld [vmem:[#allocation2 + $0x920] sm:$0xff]
    %v504 = vld [vmem:[#allocation2 + $0x928] sm:$0xff]
    %v505 = vld [vmem:[#allocation2 + $0x930] sm:$0xff]
    %v506 = vld [vmem:[#allocation2 + $0x938] sm:$0xff]
    %v507 = vld [vmem:[#allocation2 + $0x940] sm:$0xff]
    %v508 = vld [vmem:[#allocation2 + $0x948] sm:$0xff]
    %v509 = vld [vmem:[#allocation2 + $0x950] sm:$0xff]
    %v510 = vld [vmem:[#allocation2 + $0x958] sm:$0xff]
    %v511 = vld [vmem:[#allocation2 + $0x960] sm:$0xff]
    %v512 = vld [vmem:[#allocation2 + $0x968] sm:$0xff]
    %v513 = vld [vmem:[#allocation2 + $0x970] sm:$0xff]
    %v514 = vld [vmem:[#allocation2 + $0x978] sm:$0xff]
    %v515 = vld [vmem:[#allocation2 + $0x980] sm:$0xff]
    %v516 = vld [vmem:[#allocation2 + $0x988] sm:$0xff]
    %v517 = vld [vmem:[#allocation2 + $0x990] sm:$0xff]
    %v518 = vld [vmem:[#allocation2 + $0x998] sm:$0xff]
    %v519 = vld [vmem:[#allocation2 + $0x9a0] sm:$0xff]
    %v520 = vld [vmem:[#allocation2 + $0x9a8] sm:$0xff]
    %v521 = vld [vmem:[#allocation2 + $0x9b0] sm:$0xff]
    %v522 = vld [vmem:[#allocation2 + $0x9b8] sm:$0xff]
    %v523 = vld [vmem:[#allocation2 + $0x9c0] sm:$0xff]
    %v524 = vld [vmem:[#allocation2 + $0x9c8] sm:$0xff]
    %v525 = vld [vmem:[#allocation2 + $0x9d0] sm:$0xff]
    %v526 = vld [vmem:[#allocation2 + $0x9d8] sm:$0xff]
    %v527 = vld [vmem:[#allocation2 + $0x9e0] sm:$0xff]
    %v528 = vld [vmem:[#allocation2 + $0x9e8] sm:$0xff]
    %v529 = vld [vmem:[#allocation2 + $0x9f0] sm:$0xff]
    %v530 = vld [vmem:[#allocation2 + $0x9f8] sm:$0xff]
    %v531 = vld [vmem:[#allocation2 + $0xa00] sm:$0xff]
    %v532 = vld [vmem:[#allocation2 + $0xa08] sm:$0xff]
    %v533 = vld [vmem:[#allocation2 + $0xa10] sm:$0xff]
    %v534 = vld [vmem:[#allocation2 + $0xa18] sm:$0xff]
    %v535 = vld [vmem:[#allocation2 + $0xa20] sm:$0xff]
    %v536 = vld [vmem:[#allocation2 + $0xa28] sm:$0xff]
    %v537 = vld [vmem:[#allocation2 + $0xa30] sm:$0xff]
    %v538 = vld [vmem:[#allocation2 + $0xa38] sm:$0xff]
    %v539 = vld [vmem:[#allocation2 + $0xa40] sm:$0xff]
    %v540 = vld [vmem:[#allocation2 + $0xa48] sm:$0xff]
    %v541 = vld [vmem:[#allocation2 + $0xa50] sm:$0xff]
    %v542 = vld [vmem:[#allocation2 + $0xa58] sm:$0xff]
    %v543 = vld [vmem:[#allocation2 + $0xa60] sm:$0xff]
    %v544 = vld [vmem:[#allocation2 + $0xa68] sm:$0xff]
    %v545 = vld [vmem:[#allocation2 + $0xa70] sm:$0xff]
    %v546 = vld [vmem:[#allocation2 + $0xa78] sm:$0xff]
    %v547 = vld [vmem:[#allocation2 + $0xa80] sm:$0xff]
    %v548 = vld [vmem:[#allocation2 + $0xa88] sm:$0xff]
    %v549 = vld [vmem:[#allocation2 + $0xa90] sm:$0xff]
    %v550 = vld [vmem:[#allocation2 + $0xa98] sm:$0xff]
    %v551 = vld [vmem:[#allocation2 + $0xaa0] sm:$0xff]
    %v552 = vld [vmem:[#allocation2 + $0xaa8] sm:$0xff]
    %v553 = vld [vmem:[#allocation2 + $0xab0] sm:$0xff]
    %v554 = vld [vmem:[#allocation2 + $0xab8] sm:$0xff]
    %v555 = vld [vmem:[#allocation2 + $0xac0] sm:$0xff]
    %v556 = vld [vmem:[#allocation2 + $0xac8] sm:$0xff]
    %v557 = vld [vmem:[#allocation2 + $0xad0] sm:$0xff]
    %v558 = vld [vmem:[#allocation2 + $0xad8] sm:$0xff]
    %v559 = vld [vmem:[#allocation2 + $0xae0] sm:$0xff]
    %v560 = vld [vmem:[#allocation2 + $0xae8] sm:$0xff]
    %v561 = vld [vmem:[#allocation2 + $0xaf0] sm:$0xff]
    %v562 = vld [vmem:[#allocation2 + $0xaf8] sm:$0xff]
    %v563 = vld [vmem:[#allocation2 + $0xb00] sm:$0xff]
    %v564 = vld [vmem:[#allocation2 + $0xb08] sm:$0xff]
    %v565 = vld [vmem:[#allocation2 + $0xb10] sm:$0xff]
    %v566 = vld [vmem:[#allocation2 + $0xb18] sm:$0xff]
    %v567 = vld [vmem:[#allocation2 + $0xb20] sm:$0xff]
    %v568 = vld [vmem:[#allocation2 + $0xb28] sm:$0xff]
    %v569 = vld [vmem:[#allocation2 + $0xb30] sm:$0xff]
    %v570 = vld [vmem:[#allocation2 + $0xb38] sm:$0xff]
    %v571 = vld [vmem:[#allocation2 + $0xb40] sm:$0xff]
    %v572 = vld [vmem:[#allocation2 + $0xb48] sm:$0xff]
    %v573 = vld [vmem:[#allocation2 + $0xb50] sm:$0xff]
    %v574 = vld [vmem:[#allocation2 + $0xb58] sm:$0xff]
    %v575 = vld [vmem:[#allocation2 + $0xb60] sm:$0xff]
    %v576 = vld [vmem:[#allocation2 + $0xb68] sm:$0xff]
    %v577 = vld [vmem:[#allocation2 + $0xb70] sm:$0xff]
    %v578 = vld [vmem:[#allocation2 + $0xb78] sm:$0xff]
    %v579 = vld [vmem:[#allocation2 + $0xb80] sm:$0xff]
    %v580 = vld [vmem:[#allocation2 + $0xb88] sm:$0xff]
    %v581 = vld [vmem:[#allocation2 + $0xb90] sm:$0xff]
    %v582 = vld [vmem:[#allocation2 + $0xb98] sm:$0xff]
    %v583 = vld [vmem:[#allocation2 + $0xba0] sm:$0xff]
    %v584 = vld [vmem:[#allocation2 + $0xba8] sm:$0xff]
    %v585 = vld [vmem:[#allocation2 + $0xbb0] sm:$0xff]
    %v586 = vld [vmem:[#allocation2 + $0xbb8] sm:$0xff]
    %v587 = vld [vmem:[#allocation2 + $0xbc0] sm:$0xff]
    %v588 = vld [vmem:[#allocation2 + $0xbc8] sm:$0xff]
    %v589 = vld [vmem:[#allocation2 + $0xbd0] sm:$0xff]
    %v590 = vld [vmem:[#allocation2 + $0xbd8] sm:$0xff]
    %v591 = vld [vmem:[#allocation2 + $0xbe0] sm:$0xff]
    %v592 = vld [vmem:[#allocation2 + $0xbe8] sm:$0xff]
    %v593 = vld [vmem:[#allocation2 + $0xbf0] sm:$0xff]
    %v594 = vld [vmem:[#allocation2 + $0xbf8] sm:$0xff]
    %v595 = vld [vmem:[#allocation2 + $0xc00] sm:$0xff]
    %v596 = vld [vmem:[#allocation2 + $0xc08] sm:$0xff]
    %v597 = vld [vmem:[#allocation2 + $0xc10] sm:$0xff]
    %v598 = vld [vmem:[#allocation2 + $0xc18] sm:$0xff]
    %v599 = vld [vmem:[#allocation2 + $0xc20] sm:$0xff]
    %v600 = vld [vmem:[#allocation2 + $0xc28] sm:$0xff]
    %v601 = vld [vmem:[#allocation2 + $0xc30] sm:$0xff]
    %v602 = vld [vmem:[#allocation2 + $0xc38] sm:$0xff]
    %v603 = vld [vmem:[#allocation2 + $0xc40] sm:$0xff]
    %v604 = vld [vmem:[#allocation2 + $0xc48] sm:$0xff]
    %v605 = vld [vmem:[#allocation2 + $0xc50] sm:$0xff]
    %v606 = vld [vmem:[#allocation2 + $0xc58] sm:$0xff]
    %v607 = vld [vmem:[#allocation2 + $0xc60] sm:$0xff]
    %v608 = vld [vmem:[#allocation2 + $0xc68] sm:$0xff]
    %v609 = vld [vmem:[#allocation2 + $0xc70] sm:$0xff]
    %v610 = vld [vmem:[#allocation2 + $0xc78] sm:$0xff]
    %v611 = vld [vmem:[#allocation2 + $0xc80] sm:$0xff]
    %v612 = vld [vmem:[#allocation2 + $0xc88] sm:$0xff]
    %v613 = vld [vmem:[#allocation2 + $0xc90] sm:$0xff]
    %v614 = vld [vmem:[#allocation2 + $0xc98] sm:$0xff]
    %v615 = vld [vmem:[#allocation2 + $0xca0] sm:$0xff]
    %v616 = vld [vmem:[#allocation2 + $0xca8] sm:$0xff]
    %v617 = vld [vmem:[#allocation2 + $0xcb0] sm:$0xff]
    %v618 = vld [vmem:[#allocation2 + $0xcb8] sm:$0xff]
    %v619 = vld [vmem:[#allocation2 + $0xcc0] sm:$0xff]
    %v620 = vld [vmem:[#allocation2 + $0xcc8] sm:$0xff]
    %v621 = vld [vmem:[#allocation2 + $0xcd0] sm:$0xff]
    %v622 = vld [vmem:[#allocation2 + $0xcd8] sm:$0xff]
    %v623 = vld [vmem:[#allocation2 + $0xce0] sm:$0xff]
    %v624 = vld [vmem:[#allocation2 + $0xce8] sm:$0xff]
    %v625 = vld [vmem:[#allocation2 + $0xcf0] sm:$0xff]
    %v626 = vld [vmem:[#allocation2 + $0xcf8] sm:$0xff]
    %v627 = vld [vmem:[#allocation2 + $0xd00] sm:$0xff]
    %v628 = vld [vmem:[#allocation2 + $0xd08] sm:$0xff]
    %v629 = vld [vmem:[#allocation2 + $0xd10] sm:$0xff]
    %v630 = vld [vmem:[#allocation2 + $0xd18] sm:$0xff]
    %v631 = vld [vmem:[#allocation2 + $0xd20] sm:$0xff]
    %v632 = vld [vmem:[#allocation2 + $0xd28] sm:$0xff]
    %v633 = vld [vmem:[#allocation2 + $0xd30] sm:$0xff]
    %v634 = vld [vmem:[#allocation2 + $0xd38] sm:$0xff]
    %v635 = vld [vmem:[#allocation2 + $0xd40] sm:$0xff]
    %v636 = vld [vmem:[#allocation2 + $0xd48] sm:$0xff]
    %v637 = vld [vmem:[#allocation2 + $0xd50] sm:$0xff]
    %v638 = vld [vmem:[#allocation2 + $0xd58] sm:$0xff]
    %v639 = vld [vmem:[#allocation2 + $0xd60] sm:$0xff]
    %v640 = vld [vmem:[#allocation2 + $0xd68] sm:$0xff]
    %v641 = vld [vmem:[#allocation2 + $0xd70] sm:$0xff]
    %v642 = vld [vmem:[#allocation2 + $0xd78] sm:$0xff]
    %v643 = vld [vmem:[#allocation2 + $0xd80] sm:$0xff]
    %v644 = vld [vmem:[#allocation2 + $0xd88] sm:$0xff]
    %v645 = vld [vmem:[#allocation2 + $0xd90] sm:$0xff]
    %v646 = vld [vmem:[#allocation2 + $0xd98] sm:$0xff]
    %v647 = vld [vmem:[#allocation2 + $0xda0] sm:$0xff]
    %v648 = vld [vmem:[#allocation2 + $0xda8] sm:$0xff]
    %v649 = vld [vmem:[#allocation2 + $0xdb0] sm:$0xff]
    %v650 = vld [vmem:[#allocation2 + $0xdb8] sm:$0xff]
    %v651 = vld [vmem:[#allocation2 + $0xdc0] sm:$0xff]
    %v652 = vld [vmem:[#allocation2 + $0xdc8] sm:$0xff]
    %v653 = vld [vmem:[#allocation2 + $0xdd0] sm:$0xff]
    %v654 = vld [vmem:[#allocation2 + $0xdd8] sm:$0xff]
    %v655 = vld [vmem:[#allocation2 + $0xde0] sm:$0xff]
    %v656 = vld [vmem:[#allocation2 + $0xde8] sm:$0xff]
    %v657 = vld [vmem:[#allocation2 + $0xdf0] sm:$0xff]
    %v658 = vld [vmem:[#allocation2 + $0xdf8] sm:$0xff]
    %v659 = vld [vmem:[#allocation2 + $0xe00] sm:$0xff]
    %v660 = vld [vmem:[#allocation2 + $0xe08] sm:$0xff]
    %v661 = vld [vmem:[#allocation2 + $0xe10] sm:$0xff]
    %v662 = vld [vmem:[#allocation2 + $0xe18] sm:$0xff]
    %v663 = vld [vmem:[#allocation2 + $0xe20] sm:$0xff]
    %v664 = vld [vmem:[#allocation2 + $0xe28] sm:$0xff]
    %v665 = vld [vmem:[#allocation2 + $0xe30] sm:$0xff]
    %v666 = vld [vmem:[#allocation2 + $0xe38] sm:$0xff]
    %v667 = vld [vmem:[#allocation2 + $0xe40] sm:$0xff]
    %v668 = vld [vmem:[#allocation2 + $0xe48] sm:$0xff]
    %v669 = vld [vmem:[#allocation2 + $0xe50] sm:$0xff]
    %v670 = vld [vmem:[#allocation2 + $0xe58] sm:$0xff]
    %v671 = vld [vmem:[#allocation2 + $0xe60] sm:$0xff]
    %v672 = vld [vmem:[#allocation2 + $0xe68] sm:$0xff]
    %v673 = vld [vmem:[#allocation2 + $0xe70] sm:$0xff]
    %v674 = vld [vmem:[#allocation2 + $0xe78] sm:$0xff]
    %v675 = vld [vmem:[#allocation2 + $0xe80] sm:$0xff]
    %v676 = vld [vmem:[#allocation2 + $0xe88] sm:$0xff]
    %v677 = vld [vmem:[#allocation2 + $0xe90] sm:$0xff]
    %v678 = vld [vmem:[#allocation2 + $0xe98] sm:$0xff]
    %v679 = vld [vmem:[#allocation2 + $0xea0] sm:$0xff]
    %v680 = vld [vmem:[#allocation2 + $0xea8] sm:$0xff]
    %v681 = vld [vmem:[#allocation2 + $0xeb0] sm:$0xff]
    %v682 = vld [vmem:[#allocation2 + $0xeb8] sm:$0xff]
    %v683 = vld [vmem:[#allocation2 + $0xec0] sm:$0xff]
    %v684 = vld [vmem:[#allocation2 + $0xec8] sm:$0xff]
    %v685 = vld [vmem:[#allocation2 + $0xed0] sm:$0xff]
    %v686 = vld [vmem:[#allocation2 + $0xed8] sm:$0xff]
    %v687 = vld [vmem:[#allocation2 + $0xee0] sm:$0xff]
    %v688 = vld [vmem:[#allocation2 + $0xee8] sm:$0xff]
    %v689 = vld [vmem:[#allocation2 + $0xef0] sm:$0xff]
    %v690 = vld [vmem:[#allocation2 + $0xef8] sm:$0xff]
    %v691 = vld [vmem:[#allocation2 + $0xf00] sm:$0xff]
    %v692 = vld [vmem:[#allocation2 + $0xf08] sm:$0xff]
    %v693 = vld [vmem:[#allocation2 + $0xf10] sm:$0xff]
    %v694 = vld [vmem:[#allocation2 + $0xf18] sm:$0xff]
    %v695 = vld [vmem:[#allocation2 + $0xf20] sm:$0xff]
    %v696 = vld [vmem:[#allocation2 + $0xf28] sm:$0xff]
    %v697 = vld [vmem:[#allocation2 + $0xf30] sm:$0xff]
    %v698 = vld [vmem:[#allocation2 + $0xf38] sm:$0xff]
    %v699 = vld [vmem:[#allocation2 + $0xf40] sm:$0xff]
    %v700 = vld [vmem:[#allocation2 + $0xf48] sm:$0xff]
    %v701 = vld [vmem:[#allocation2 + $0xf50] sm:$0xff]
    %v702 = vld [vmem:[#allocation2 + $0xf58] sm:$0xff]
    %v703 = vld [vmem:[#allocation2 + $0xf60] sm:$0xff]
    %v704 = vld [vmem:[#allocation2 + $0xf68] sm:$0xff]
    %v705 = vld [vmem:[#allocation2 + $0xf70] sm:$0xff]
    %v706 = vld [vmem:[#allocation2 + $0xf78] sm:$0xff]
    %v707 = vld [vmem:[#allocation2 + $0xf80] sm:$0xff]
    %v708 = vld [vmem:[#allocation2 + $0xf88] sm:$0xff]
    %v709 = vld [vmem:[#allocation2 + $0xf90] sm:$0xff]
    %v710 = vld [vmem:[#allocation2 + $0xf98] sm:$0xff]
    %v711 = vld [vmem:[#allocation2 + $0xfa0] sm:$0xff]
    %v712 = vld [vmem:[#allocation2 + $0xfa8] sm:$0xff]
    %v713 = vld [vmem:[#allocation2 + $0xfb0] sm:$0xff]
    %v714 = vld [vmem:[#allocation2 + $0xfb8] sm:$0xff]
    %v715 = vld [vmem:[#allocation2 + $0xfc0] sm:$0xff]
    %v716 = vld [vmem:[#allocation2 + $0xfc8] sm:$0xff]
    %v717 = vld [vmem:[#allocation2 + $0xfd0] sm:$0xff]
    %v718 = vld [vmem:[#allocation2 + $0xfd8] sm:$0xff]
    %v719 = vld [vmem:[#allocation2 + $0xfe0] sm:$0xff]
    %v720 = vld [vmem:[#allocation2 + $0xfe8] sm:$0xff]
    %v721 = vld [vmem:[#allocation2 + $0xff0] sm:$0xff]
    %v722 = vld [vmem:[#allocation2 + $0xff8] sm:$0xff]
    %v723 = vld [vmem:[#allocation4] sm:$0xf]
    %v725 = vlaneseq
    %v726 = vshrl.u32 %v725, 7
    %v727 = vsub.s32 0, %v726
    %v728 = vrot.slane %v723, %v727
    %v729 = vlaneseq
    %v730 = vshrl.u32 %v729, 7
    %v731 = vsub.s32 1, %v730
    %v732 = vrot.slane %v723, %v731
    %v733 = vlaneseq
    %v734 = vshrl.u32 %v733, 7
    %v735 = vsub.s32 2, %v734
    %v736 = vrot.slane %v723, %v735
    %v737 = vlaneseq
    %v738 = vshrl.u32 %v737, 7
    %v739 = vsub.s32 3, %v738
    %v740 = vrot.slane %v723, %v739
    %v1257 = vunpack.c.l.b16 %v211
    %v1258 = vunpack.c.h.b16 %v211
    %v1259 = vunpack.c.l.b16 %v212
    %v1260 = vunpack.c.h.b16 %v212
    %v1261 = vunpack.c.l.b16 %v213
    %v1262 = vunpack.c.h.b16 %v213
    %v1263 = vunpack.c.l.b16 %v214
    %v1264 = vunpack.c.h.b16 %v214
    %v1265 = vunpack.c.l.b16 %v215
    %v1266 = vunpack.c.h.b16 %v215
    %v1267 = vunpack.c.l.b16 %v216
    %v1268 = vunpack.c.h.b16 %v216
    %v1269 = vunpack.c.l.b16 %v217
    %v1270 = vunpack.c.h.b16 %v217
    %v1271 = vunpack.c.l.b16 %v218
    %v1272 = vunpack.c.h.b16 %v218
    %v1273 = vunpack.c.l.b16 %v219
    %v1274 = vunpack.c.h.b16 %v219
    %v1275 = vunpack.c.l.b16 %v220
    %v1276 = vunpack.c.h.b16 %v220
    %v1277 = vunpack.c.l.b16 %v221
    %v1278 = vunpack.c.h.b16 %v221
    %v1279 = vunpack.c.l.b16 %v222
    %v1280 = vunpack.c.h.b16 %v222
    %v1281 = vunpack.c.l.b16 %v223
    %v1282 = vunpack.c.h.b16 %v223
    %v1283 = vunpack.c.l.b16 %v224
    %v1284 = vunpack.c.h.b16 %v224
    %v1285 = vunpack.c.l.b16 %v225
    %v1286 = vunpack.c.h.b16 %v225
    %v1287 = vunpack.c.l.b16 %v226
    %v1288 = vunpack.c.h.b16 %v226
    %v1289 = vunpack.c.l.b16 %v227
    %v1290 = vunpack.c.h.b16 %v227
    %v1291 = vunpack.c.l.b16 %v228
    %v1292 = vunpack.c.h.b16 %v228
    %v1293 = vunpack.c.l.b16 %v229
    %v1294 = vunpack.c.h.b16 %v229
    %v1295 = vunpack.c.l.b16 %v230
    %v1296 = vunpack.c.h.b16 %v230
    %v1297 = vunpack.c.l.b16 %v231
    %v1298 = vunpack.c.h.b16 %v231
    %v1299 = vunpack.c.l.b16 %v232
    %v1300 = vunpack.c.h.b16 %v232
    %v1301 = vunpack.c.l.b16 %v233
    %v1302 = vunpack.c.h.b16 %v233
    %v1303 = vunpack.c.l.b16 %v234
    %v1304 = vunpack.c.h.b16 %v234
    %v1305 = vunpack.c.l.b16 %v235
    %v1306 = vunpack.c.h.b16 %v235
    %v1307 = vunpack.c.l.b16 %v236
    %v1308 = vunpack.c.h.b16 %v236
    %v1309 = vunpack.c.l.b16 %v237
    %v1310 = vunpack.c.h.b16 %v237
    %v1311 = vunpack.c.l.b16 %v238
    %v1312 = vunpack.c.h.b16 %v238
    %v1313 = vunpack.c.l.b16 %v239
    %v1314 = vunpack.c.h.b16 %v239
    %v1315 = vunpack.c.l.b16 %v240
    %v1316 = vunpack.c.h.b16 %v240
    %v1317 = vunpack.c.l.b16 %v241
    %v1318 = vunpack.c.h.b16 %v241
    %v1319 = vunpack.c.l.b16 %v242
    %v1320 = vunpack.c.h.b16 %v242
    %v1321 = vunpack.c.l.b16 %v243
    %v1322 = vunpack.c.h.b16 %v243
    %v1323 = vunpack.c.l.b16 %v244
    %v1324 = vunpack.c.h.b16 %v244
    %v1325 = vunpack.c.l.b16 %v245
    %v1326 = vunpack.c.h.b16 %v245
    %v1327 = vunpack.c.l.b16 %v246
    %v1328 = vunpack.c.h.b16 %v246
    %v1329 = vunpack.c.l.b16 %v247
    %v1330 = vunpack.c.h.b16 %v247
    %v1331 = vunpack.c.l.b16 %v248
    %v1332 = vunpack.c.h.b16 %v248
    %v1333 = vunpack.c.l.b16 %v249
    %v1334 = vunpack.c.h.b16 %v249
    %v1335 = vunpack.c.l.b16 %v250
    %v1336 = vunpack.c.h.b16 %v250
    %v1337 = vunpack.c.l.b16 %v251
    %v1338 = vunpack.c.h.b16 %v251
    %v1339 = vunpack.c.l.b16 %v252
    %v1340 = vunpack.c.h.b16 %v252
    %v1341 = vunpack.c.l.b16 %v253
    %v1342 = vunpack.c.h.b16 %v253
    %v1343 = vunpack.c.l.b16 %v254
    %v1344 = vunpack.c.h.b16 %v254
    %v1345 = vunpack.c.l.b16 %v255
    %v1346 = vunpack.c.h.b16 %v255
    %v1347 = vunpack.c.l.b16 %v256
    %v1348 = vunpack.c.h.b16 %v256
    %v1349 = vunpack.c.l.b16 %v257
    %v1350 = vunpack.c.h.b16 %v257
    %v1351 = vunpack.c.l.b16 %v258
    %v1352 = vunpack.c.h.b16 %v258
    %v1353 = vunpack.c.l.b16 %v259
    %v1354 = vunpack.c.h.b16 %v259
    %v1355 = vunpack.c.l.b16 %v260
    %v1356 = vunpack.c.h.b16 %v260
    %v1357 = vunpack.c.l.b16 %v261
    %v1358 = vunpack.c.h.b16 %v261
    %v1359 = vunpack.c.l.b16 %v262
    %v1360 = vunpack.c.h.b16 %v262
    %v1361 = vunpack.c.l.b16 %v263
    %v1362 = vunpack.c.h.b16 %v263
    %v1363 = vunpack.c.l.b16 %v264
    %v1364 = vunpack.c.h.b16 %v264
    %v1365 = vunpack.c.l.b16 %v265
    %v1366 = vunpack.c.h.b16 %v265
    %v1367 = vunpack.c.l.b16 %v266
    %v1368 = vunpack.c.h.b16 %v266
    %v1369 = vunpack.c.l.b16 %v267
    %v1370 = vunpack.c.h.b16 %v267
    %v1371 = vunpack.c.l.b16 %v268
    %v1372 = vunpack.c.h.b16 %v268
    %v1373 = vunpack.c.l.b16 %v269
    %v1374 = vunpack.c.h.b16 %v269
    %v1375 = vunpack.c.l.b16 %v270
    %v1376 = vunpack.c.h.b16 %v270
    %v1377 = vunpack.c.l.b16 %v271
    %v1378 = vunpack.c.h.b16 %v271
    %v1379 = vunpack.c.l.b16 %v272
    %v1380 = vunpack.c.h.b16 %v272
    %v1381 = vunpack.c.l.b16 %v273
    %v1382 = vunpack.c.h.b16 %v273
    %v1383 = vunpack.c.l.b16 %v274
    %v1384 = vunpack.c.h.b16 %v274
    %v1385 = vunpack.c.l.b16 %v275
    %v1386 = vunpack.c.h.b16 %v275
    %v1387 = vunpack.c.l.b16 %v276
    %v1388 = vunpack.c.h.b16 %v276
    %v1389 = vunpack.c.l.b16 %v277
    %v1390 = vunpack.c.h.b16 %v277
    %v1391 = vunpack.c.l.b16 %v278
    %v1392 = vunpack.c.h.b16 %v278
    %v1393 = vunpack.c.l.b16 %v279
    %v1394 = vunpack.c.h.b16 %v279
    %v1395 = vunpack.c.l.b16 %v280
    %v1396 = vunpack.c.h.b16 %v280
    %v1397 = vunpack.c.l.b16 %v281
    %v1398 = vunpack.c.h.b16 %v281
    %v1399 = vunpack.c.l.b16 %v282
    %v1400 = vunpack.c.h.b16 %v282
    %v1401 = vunpack.c.l.b16 %v283
    %v1402 = vunpack.c.h.b16 %v283
    %v1403 = vunpack.c.l.b16 %v284
    %v1404 = vunpack.c.h.b16 %v284
    %v1405 = vunpack.c.l.b16 %v285
    %v1406 = vunpack.c.h.b16 %v285
    %v1407 = vunpack.c.l.b16 %v286
    %v1408 = vunpack.c.h.b16 %v286
    %v1409 = vunpack.c.l.b16 %v287
    %v1410 = vunpack.c.h.b16 %v287
    %v1411 = vunpack.c.l.b16 %v288
    %v1412 = vunpack.c.h.b16 %v288
    %v1413 = vunpack.c.l.b16 %v289
    %v1414 = vunpack.c.h.b16 %v289
    %v1415 = vunpack.c.l.b16 %v290
    %v1416 = vunpack.c.h.b16 %v290
    %v1417 = vunpack.c.l.b16 %v291
    %v1418 = vunpack.c.h.b16 %v291
    %v1419 = vunpack.c.l.b16 %v292
    %v1420 = vunpack.c.h.b16 %v292
    %v1421 = vunpack.c.l.b16 %v293
    %v1422 = vunpack.c.h.b16 %v293
    %v1423 = vunpack.c.l.b16 %v294
    %v1424 = vunpack.c.h.b16 %v294
    %v1425 = vunpack.c.l.b16 %v295
    %v1426 = vunpack.c.h.b16 %v295
    %v1427 = vunpack.c.l.b16 %v296
    %v1428 = vunpack.c.h.b16 %v296
    %v1429 = vunpack.c.l.b16 %v297
    %v1430 = vunpack.c.h.b16 %v297
    %v1431 = vunpack.c.l.b16 %v298
    %v1432 = vunpack.c.h.b16 %v298
    %v1433 = vunpack.c.l.b16 %v299
    %v1434 = vunpack.c.h.b16 %v299
    %v1435 = vunpack.c.l.b16 %v300
    %v1436 = vunpack.c.h.b16 %v300
    %v1437 = vunpack.c.l.b16 %v301
    %v1438 = vunpack.c.h.b16 %v301
    %v1439 = vunpack.c.l.b16 %v302
    %v1440 = vunpack.c.h.b16 %v302
    %v1441 = vunpack.c.l.b16 %v303
    %v1442 = vunpack.c.h.b16 %v303
    %v1443 = vunpack.c.l.b16 %v304
    %v1444 = vunpack.c.h.b16 %v304
    %v1445 = vunpack.c.l.b16 %v305
    %v1446 = vunpack.c.h.b16 %v305
    %v1447 = vunpack.c.l.b16 %v306
    %v1448 = vunpack.c.h.b16 %v306
    %v1449 = vunpack.c.l.b16 %v307
    %v1450 = vunpack.c.h.b16 %v307
    %v1451 = vunpack.c.l.b16 %v308
    %v1452 = vunpack.c.h.b16 %v308
    %v1453 = vunpack.c.l.b16 %v309
    %v1454 = vunpack.c.h.b16 %v309
    %v1455 = vunpack.c.l.b16 %v310
    %v1456 = vunpack.c.h.b16 %v310
    %v1457 = vunpack.c.l.b16 %v311
    %v1458 = vunpack.c.h.b16 %v311
    %v1459 = vunpack.c.l.b16 %v312
    %v1460 = vunpack.c.h.b16 %v312
    %v1461 = vunpack.c.l.b16 %v313
    %v1462 = vunpack.c.h.b16 %v313
    %v1463 = vunpack.c.l.b16 %v314
    %v1464 = vunpack.c.h.b16 %v314
    %v1465 = vunpack.c.l.b16 %v315
    %v1466 = vunpack.c.h.b16 %v315
    %v1467 = vunpack.c.l.b16 %v316
    %v1468 = vunpack.c.h.b16 %v316
    %v1469 = vunpack.c.l.b16 %v317
    %v1470 = vunpack.c.h.b16 %v317
    %v1471 = vunpack.c.l.b16 %v318
    %v1472 = vunpack.c.h.b16 %v318
    %v1473 = vunpack.c.l.b16 %v319
    %v1474 = vunpack.c.h.b16 %v319
    %v1475 = vunpack.c.l.b16 %v320
    %v1476 = vunpack.c.h.b16 %v320
    %v1477 = vunpack.c.l.b16 %v321
    %v1478 = vunpack.c.h.b16 %v321
    %v1479 = vunpack.c.l.b16 %v322
    %v1480 = vunpack.c.h.b16 %v322
    %v1481 = vunpack.c.l.b16 %v323
    %v1482 = vunpack.c.h.b16 %v323
    %v1483 = vunpack.c.l.b16 %v324
    %v1484 = vunpack.c.h.b16 %v324
    %v1485 = vunpack.c.l.b16 %v325
    %v1486 = vunpack.c.h.b16 %v325
    %v1487 = vunpack.c.l.b16 %v326
    %v1488 = vunpack.c.h.b16 %v326
    %v1489 = vunpack.c.l.b16 %v327
    %v1490 = vunpack.c.h.b16 %v327
    %v1491 = vunpack.c.l.b16 %v328
    %v1492 = vunpack.c.h.b16 %v328
    %v1493 = vunpack.c.l.b16 %v329
    %v1494 = vunpack.c.h.b16 %v329
    %v1495 = vunpack.c.l.b16 %v330
    %v1496 = vunpack.c.h.b16 %v330
    %v1497 = vunpack.c.l.b16 %v331
    %v1498 = vunpack.c.h.b16 %v331
    %v1499 = vunpack.c.l.b16 %v332
    %v1500 = vunpack.c.h.b16 %v332
    %v1501 = vunpack.c.l.b16 %v333
    %v1502 = vunpack.c.h.b16 %v333
    %v1503 = vunpack.c.l.b16 %v334
    %v1504 = vunpack.c.h.b16 %v334
    %v1505 = vunpack.c.l.b16 %v335
    %v1506 = vunpack.c.h.b16 %v335
    %v1507 = vunpack.c.l.b16 %v336
    %v1508 = vunpack.c.h.b16 %v336
    %v1509 = vunpack.c.l.b16 %v337
    %v1510 = vunpack.c.h.b16 %v337
    %v1511 = vunpack.c.l.b16 %v338
    %v1512 = vunpack.c.h.b16 %v338
    %v1513 = vunpack.c.l.b16 %v339
    %v1514 = vunpack.c.h.b16 %v339
    %v1515 = vunpack.c.l.b16 %v340
    %v1516 = vunpack.c.h.b16 %v340
    %v1517 = vunpack.c.l.b16 %v341
    %v1518 = vunpack.c.h.b16 %v341
    %v1519 = vunpack.c.l.b16 %v342
    %v1520 = vunpack.c.h.b16 %v342
    %v1521 = vunpack.c.l.b16 %v343
    %v1522 = vunpack.c.h.b16 %v343
    %v1523 = vunpack.c.l.b16 %v344
    %v1524 = vunpack.c.h.b16 %v344
    %v1525 = vunpack.c.l.b16 %v345
    %v1526 = vunpack.c.h.b16 %v345
    %v1527 = vunpack.c.l.b16 %v346
    %v1528 = vunpack.c.h.b16 %v346
    %v1529 = vunpack.c.l.b16 %v347
    %v1530 = vunpack.c.h.b16 %v347
    %v1531 = vunpack.c.l.b16 %v348
    %v1532 = vunpack.c.h.b16 %v348
    %v1533 = vunpack.c.l.b16 %v349
    %v1534 = vunpack.c.h.b16 %v349
    %v1535 = vunpack.c.l.b16 %v350
    %v1536 = vunpack.c.h.b16 %v350
    %v1537 = vunpack.c.l.b16 %v351
    %v1538 = vunpack.c.h.b16 %v351
    %v1539 = vunpack.c.l.b16 %v352
    %v1540 = vunpack.c.h.b16 %v352
    %v1541 = vunpack.c.l.b16 %v353
    %v1542 = vunpack.c.h.b16 %v353
    %v1543 = vunpack.c.l.b16 %v354
    %v1544 = vunpack.c.h.b16 %v354
    %v1545 = vunpack.c.l.b16 %v355
    %v1546 = vunpack.c.h.b16 %v355
    %v1547 = vunpack.c.l.b16 %v356
    %v1548 = vunpack.c.h.b16 %v356
    %v1549 = vunpack.c.l.b16 %v357
    %v1550 = vunpack.c.h.b16 %v357
    %v1551 = vunpack.c.l.b16 %v358
    %v1552 = vunpack.c.h.b16 %v358
    %v1553 = vunpack.c.l.b16 %v359
    %v1554 = vunpack.c.h.b16 %v359
    %v1555 = vunpack.c.l.b16 %v360
    %v1556 = vunpack.c.h.b16 %v360
    %v1557 = vunpack.c.l.b16 %v361
    %v1558 = vunpack.c.h.b16 %v361
    %v1559 = vunpack.c.l.b16 %v362
    %v1560 = vunpack.c.h.b16 %v362
    %v1561 = vunpack.c.l.b16 %v363
    %v1562 = vunpack.c.h.b16 %v363
    %v1563 = vunpack.c.l.b16 %v364
    %v1564 = vunpack.c.h.b16 %v364
    %v1565 = vunpack.c.l.b16 %v365
    %v1566 = vunpack.c.h.b16 %v365
    %v1567 = vunpack.c.l.b16 %v366
    %v1568 = vunpack.c.h.b16 %v366
    %v1569 = vunpack.c.l.b16 %v367
    %v1570 = vunpack.c.h.b16 %v367
    %v1571 = vunpack.c.l.b16 %v368
    %v1572 = vunpack.c.h.b16 %v368
    %v1573 = vunpack.c.l.b16 %v369
    %v1574 = vunpack.c.h.b16 %v369
    %v1575 = vunpack.c.l.b16 %v370
    %v1576 = vunpack.c.h.b16 %v370
    %v1577 = vunpack.c.l.b16 %v371
    %v1578 = vunpack.c.h.b16 %v371
    %v1579 = vunpack.c.l.b16 %v372
    %v1580 = vunpack.c.h.b16 %v372
    %v1581 = vunpack.c.l.b16 %v373
    %v1582 = vunpack.c.h.b16 %v373
    %v1583 = vunpack.c.l.b16 %v374
    %v1584 = vunpack.c.h.b16 %v374
    %v1585 = vunpack.c.l.b16 %v375
    %v1586 = vunpack.c.h.b16 %v375
    %v1587 = vunpack.c.l.b16 %v376
    %v1588 = vunpack.c.h.b16 %v376
    %v1589 = vunpack.c.l.b16 %v377
    %v1590 = vunpack.c.h.b16 %v377
    %v1591 = vunpack.c.l.b16 %v378
    %v1592 = vunpack.c.h.b16 %v378
    %v1593 = vunpack.c.l.b16 %v379
    %v1594 = vunpack.c.h.b16 %v379
    %v1595 = vunpack.c.l.b16 %v380
    %v1596 = vunpack.c.h.b16 %v380
    %v1597 = vunpack.c.l.b16 %v381
    %v1598 = vunpack.c.h.b16 %v381
    %v1599 = vunpack.c.l.b16 %v382
    %v1600 = vunpack.c.h.b16 %v382
    %v1601 = vunpack.c.l.b16 %v383
    %v1602 = vunpack.c.h.b16 %v383
    %v1603 = vunpack.c.l.b16 %v384
    %v1604 = vunpack.c.h.b16 %v384
    %v1605 = vunpack.c.l.b16 %v385
    %v1606 = vunpack.c.h.b16 %v385
    %v1607 = vunpack.c.l.b16 %v386
    %v1608 = vunpack.c.h.b16 %v386
    %v1609 = vunpack.c.l.b16 %v387
    %v1610 = vunpack.c.h.b16 %v387
    %v1611 = vunpack.c.l.b16 %v388
    %v1612 = vunpack.c.h.b16 %v388
    %v1613 = vunpack.c.l.b16 %v389
    %v1614 = vunpack.c.h.b16 %v389
    %v1615 = vunpack.c.l.b16 %v390
    %v1616 = vunpack.c.h.b16 %v390
    %v1617 = vunpack.c.l.b16 %v391
    %v1618 = vunpack.c.h.b16 %v391
    %v1619 = vunpack.c.l.b16 %v392
    %v1620 = vunpack.c.h.b16 %v392
    %v1621 = vunpack.c.l.b16 %v393
    %v1622 = vunpack.c.h.b16 %v393
    %v1623 = vunpack.c.l.b16 %v394
    %v1624 = vunpack.c.h.b16 %v394
    %v1625 = vunpack.c.l.b16 %v395
    %v1626 = vunpack.c.h.b16 %v395
    %v1627 = vunpack.c.l.b16 %v396
    %v1628 = vunpack.c.h.b16 %v396
    %v1629 = vunpack.c.l.b16 %v397
    %v1630 = vunpack.c.h.b16 %v397
    %v1631 = vunpack.c.l.b16 %v398
    %v1632 = vunpack.c.h.b16 %v398
    %v1633 = vunpack.c.l.b16 %v399
    %v1634 = vunpack.c.h.b16 %v399
    %v1635 = vunpack.c.l.b16 %v400
    %v1636 = vunpack.c.h.b16 %v400
    %v1637 = vunpack.c.l.b16 %v401
    %v1638 = vunpack.c.h.b16 %v401
    %v1639 = vunpack.c.l.b16 %v402
    %v1640 = vunpack.c.h.b16 %v402
    %v1641 = vunpack.c.l.b16 %v403
    %v1642 = vunpack.c.h.b16 %v403
    %v1643 = vunpack.c.l.b16 %v404
    %v1644 = vunpack.c.h.b16 %v404
    %v1645 = vunpack.c.l.b16 %v405
    %v1646 = vunpack.c.h.b16 %v405
    %v1647 = vunpack.c.l.b16 %v406
    %v1648 = vunpack.c.h.b16 %v406
    %v1649 = vunpack.c.l.b16 %v407
    %v1650 = vunpack.c.h.b16 %v407
    %v1651 = vunpack.c.l.b16 %v408
    %v1652 = vunpack.c.h.b16 %v408
    %v1653 = vunpack.c.l.b16 %v409
    %v1654 = vunpack.c.h.b16 %v409
    %v1655 = vunpack.c.l.b16 %v410
    %v1656 = vunpack.c.h.b16 %v410
    %v1657 = vunpack.c.l.b16 %v411
    %v1658 = vunpack.c.h.b16 %v411
    %v1659 = vunpack.c.l.b16 %v412
    %v1660 = vunpack.c.h.b16 %v412
    %v1661 = vunpack.c.l.b16 %v413
    %v1662 = vunpack.c.h.b16 %v413
    %v1663 = vunpack.c.l.b16 %v414
    %v1664 = vunpack.c.h.b16 %v414
    %v1665 = vunpack.c.l.b16 %v415
    %v1666 = vunpack.c.h.b16 %v415
    %v1667 = vunpack.c.l.b16 %v416
    %v1668 = vunpack.c.h.b16 %v416
    %v1669 = vunpack.c.l.b16 %v417
    %v1670 = vunpack.c.h.b16 %v417
    %v1671 = vunpack.c.l.b16 %v418
    %v1672 = vunpack.c.h.b16 %v418
    %v1673 = vunpack.c.l.b16 %v419
    %v1674 = vunpack.c.h.b16 %v419
    %v1675 = vunpack.c.l.b16 %v420
    %v1676 = vunpack.c.h.b16 %v420
    %v1677 = vunpack.c.l.b16 %v421
    %v1678 = vunpack.c.h.b16 %v421
    %v1679 = vunpack.c.l.b16 %v422
    %v1680 = vunpack.c.h.b16 %v422
    %v1681 = vunpack.c.l.b16 %v423
    %v1682 = vunpack.c.h.b16 %v423
    %v1683 = vunpack.c.l.b16 %v424
    %v1684 = vunpack.c.h.b16 %v424
    %v1685 = vunpack.c.l.b16 %v425
    %v1686 = vunpack.c.h.b16 %v425
    %v1687 = vunpack.c.l.b16 %v426
    %v1688 = vunpack.c.h.b16 %v426
    %v1689 = vunpack.c.l.b16 %v427
    %v1690 = vunpack.c.h.b16 %v427
    %v1691 = vunpack.c.l.b16 %v428
    %v1692 = vunpack.c.h.b16 %v428
    %v1693 = vunpack.c.l.b16 %v429
    %v1694 = vunpack.c.h.b16 %v429
    %v1695 = vunpack.c.l.b16 %v430
    %v1696 = vunpack.c.h.b16 %v430
    %v1697 = vunpack.c.l.b16 %v431
    %v1698 = vunpack.c.h.b16 %v431
    %v1699 = vunpack.c.l.b16 %v432
    %v1700 = vunpack.c.h.b16 %v432
    %v1701 = vunpack.c.l.b16 %v433
    %v1702 = vunpack.c.h.b16 %v433
    %v1703 = vunpack.c.l.b16 %v434
    %v1704 = vunpack.c.h.b16 %v434
    %v1705 = vunpack.c.l.b16 %v435
    %v1706 = vunpack.c.h.b16 %v435
    %v1707 = vunpack.c.l.b16 %v436
    %v1708 = vunpack.c.h.b16 %v436
    %v1709 = vunpack.c.l.b16 %v437
    %v1710 = vunpack.c.h.b16 %v437
    %v1711 = vunpack.c.l.b16 %v438
    %v1712 = vunpack.c.h.b16 %v438
    %v1713 = vunpack.c.l.b16 %v439
    %v1714 = vunpack.c.h.b16 %v439
    %v1715 = vunpack.c.l.b16 %v440
    %v1716 = vunpack.c.h.b16 %v440
    %v1717 = vunpack.c.l.b16 %v441
    %v1718 = vunpack.c.h.b16 %v441
    %v1719 = vunpack.c.l.b16 %v442
    %v1720 = vunpack.c.h.b16 %v442
    %v1721 = vunpack.c.l.b16 %v443
    %v1722 = vunpack.c.h.b16 %v443
    %v1723 = vunpack.c.l.b16 %v444
    %v1724 = vunpack.c.h.b16 %v444
    %v1725 = vunpack.c.l.b16 %v445
    %v1726 = vunpack.c.h.b16 %v445
    %v1727 = vunpack.c.l.b16 %v446
    %v1728 = vunpack.c.h.b16 %v446
    %v1729 = vunpack.c.l.b16 %v447
    %v1730 = vunpack.c.h.b16 %v447
    %v1731 = vunpack.c.l.b16 %v448
    %v1732 = vunpack.c.h.b16 %v448
    %v1733 = vunpack.c.l.b16 %v449
    %v1734 = vunpack.c.h.b16 %v449
    %v1735 = vunpack.c.l.b16 %v450
    %v1736 = vunpack.c.h.b16 %v450
    %v1737 = vunpack.c.l.b16 %v451
    %v1738 = vunpack.c.h.b16 %v451
    %v1739 = vunpack.c.l.b16 %v452
    %v1740 = vunpack.c.h.b16 %v452
    %v1741 = vunpack.c.l.b16 %v453
    %v1742 = vunpack.c.h.b16 %v453
    %v1743 = vunpack.c.l.b16 %v454
    %v1744 = vunpack.c.h.b16 %v454
    %v1745 = vunpack.c.l.b16 %v455
    %v1746 = vunpack.c.h.b16 %v455
    %v1747 = vunpack.c.l.b16 %v456
    %v1748 = vunpack.c.h.b16 %v456
    %v1749 = vunpack.c.l.b16 %v457
    %v1750 = vunpack.c.h.b16 %v457
    %v1751 = vunpack.c.l.b16 %v458
    %v1752 = vunpack.c.h.b16 %v458
    %v1753 = vunpack.c.l.b16 %v459
    %v1754 = vunpack.c.h.b16 %v459
    %v1755 = vunpack.c.l.b16 %v460
    %v1756 = vunpack.c.h.b16 %v460
    %v1757 = vunpack.c.l.b16 %v461
    %v1758 = vunpack.c.h.b16 %v461
    %v1759 = vunpack.c.l.b16 %v462
    %v1760 = vunpack.c.h.b16 %v462
    %v1761 = vunpack.c.l.b16 %v463
    %v1762 = vunpack.c.h.b16 %v463
    %v1763 = vunpack.c.l.b16 %v464
    %v1764 = vunpack.c.h.b16 %v464
    %v1765 = vunpack.c.l.b16 %v465
    %v1766 = vunpack.c.h.b16 %v465
    %v1767 = vunpack.c.l.b16 %v466
    %v1768 = vunpack.c.h.b16 %v466
    %v1769 = vunpack.c.l.b16 %v467
    %v1770 = vunpack.c.h.b16 %v467
    %v1771 = vunpack.c.l.b16 %v468
    %v1772 = vunpack.c.h.b16 %v468
    %v1773 = vunpack.c.l.b16 %v469
    %v1774 = vunpack.c.h.b16 %v469
    %v1775 = vunpack.c.l.b16 %v470
    %v1776 = vunpack.c.h.b16 %v470
    %v1777 = vunpack.c.l.b16 %v471
    %v1778 = vunpack.c.h.b16 %v471
    %v1779 = vunpack.c.l.b16 %v472
    %v1780 = vunpack.c.h.b16 %v472
    %v1781 = vunpack.c.l.b16 %v473
    %v1782 = vunpack.c.h.b16 %v473
    %v1783 = vunpack.c.l.b16 %v474
    %v1784 = vunpack.c.h.b16 %v474
    %v1785 = vunpack.c.l.b16 %v475
    %v1786 = vunpack.c.h.b16 %v475
    %v1787 = vunpack.c.l.b16 %v476
    %v1788 = vunpack.c.h.b16 %v476
    %v1789 = vunpack.c.l.b16 %v477
    %v1790 = vunpack.c.h.b16 %v477
    %v1791 = vunpack.c.l.b16 %v478
    %v1792 = vunpack.c.h.b16 %v478
    %v1793 = vunpack.c.l.b16 %v479
    %v1794 = vunpack.c.h.b16 %v479
    %v1795 = vunpack.c.l.b16 %v480
    %v1796 = vunpack.c.h.b16 %v480
    %v1797 = vunpack.c.l.b16 %v481
    %v1798 = vunpack.c.h.b16 %v481
    %v1799 = vunpack.c.l.b16 %v482
    %v1800 = vunpack.c.h.b16 %v482
    %v1801 = vunpack.c.l.b16 %v483
    %v1802 = vunpack.c.h.b16 %v483
    %v1803 = vunpack.c.l.b16 %v484
    %v1804 = vunpack.c.h.b16 %v484
    %v1805 = vunpack.c.l.b16 %v485
    %v1806 = vunpack.c.h.b16 %v485
    %v1807 = vunpack.c.l.b16 %v486
    %v1808 = vunpack.c.h.b16 %v486
    %v1809 = vunpack.c.l.b16 %v487
    %v1810 = vunpack.c.h.b16 %v487
    %v1811 = vunpack.c.l.b16 %v488
    %v1812 = vunpack.c.h.b16 %v488
    %v1813 = vunpack.c.l.b16 %v489
    %v1814 = vunpack.c.h.b16 %v489
    %v1815 = vunpack.c.l.b16 %v490
    %v1816 = vunpack.c.h.b16 %v490
    %v1817 = vunpack.c.l.b16 %v491
    %v1818 = vunpack.c.h.b16 %v491
    %v1819 = vunpack.c.l.b16 %v492
    %v1820 = vunpack.c.h.b16 %v492
    %v1821 = vunpack.c.l.b16 %v493
    %v1822 = vunpack.c.h.b16 %v493
    %v1823 = vunpack.c.l.b16 %v494
    %v1824 = vunpack.c.h.b16 %v494
    %v1825 = vunpack.c.l.b16 %v495
    %v1826 = vunpack.c.h.b16 %v495
    %v1827 = vunpack.c.l.b16 %v496
    %v1828 = vunpack.c.h.b16 %v496
    %v1829 = vunpack.c.l.b16 %v497
    %v1830 = vunpack.c.h.b16 %v497
    %v1831 = vunpack.c.l.b16 %v498
    %v1832 = vunpack.c.h.b16 %v498
    %v1833 = vunpack.c.l.b16 %v499
    %v1834 = vunpack.c.h.b16 %v499
    %v1835 = vunpack.c.l.b16 %v500
    %v1836 = vunpack.c.h.b16 %v500
    %v1837 = vunpack.c.l.b16 %v501
    %v1838 = vunpack.c.h.b16 %v501
    %v1839 = vunpack.c.l.b16 %v502
    %v1840 = vunpack.c.h.b16 %v502
    %v1841 = vunpack.c.l.b16 %v503
    %v1842 = vunpack.c.h.b16 %v503
    %v1843 = vunpack.c.l.b16 %v504
    %v1844 = vunpack.c.h.b16 %v504
    %v1845 = vunpack.c.l.b16 %v505
    %v1846 = vunpack.c.h.b16 %v505
    %v1847 = vunpack.c.l.b16 %v506
    %v1848 = vunpack.c.h.b16 %v506
    %v1849 = vunpack.c.l.b16 %v507
    %v1850 = vunpack.c.h.b16 %v507
    %v1851 = vunpack.c.l.b16 %v508
    %v1852 = vunpack.c.h.b16 %v508
    %v1853 = vunpack.c.l.b16 %v509
    %v1854 = vunpack.c.h.b16 %v509
    %v1855 = vunpack.c.l.b16 %v510
    %v1856 = vunpack.c.h.b16 %v510
    %v1857 = vunpack.c.l.b16 %v511
    %v1858 = vunpack.c.h.b16 %v511
    %v1859 = vunpack.c.l.b16 %v512
    %v1860 = vunpack.c.h.b16 %v512
    %v1861 = vunpack.c.l.b16 %v513
    %v1862 = vunpack.c.h.b16 %v513
    %v1863 = vunpack.c.l.b16 %v514
    %v1864 = vunpack.c.h.b16 %v514
    %v1865 = vunpack.c.l.b16 %v515
    %v1866 = vunpack.c.h.b16 %v515
    %v1867 = vunpack.c.l.b16 %v516
    %v1868 = vunpack.c.h.b16 %v516
    %v1869 = vunpack.c.l.b16 %v517
    %v1870 = vunpack.c.h.b16 %v517
    %v1871 = vunpack.c.l.b16 %v518
    %v1872 = vunpack.c.h.b16 %v518
    %v1873 = vunpack.c.l.b16 %v519
    %v1874 = vunpack.c.h.b16 %v519
    %v1875 = vunpack.c.l.b16 %v520
    %v1876 = vunpack.c.h.b16 %v520
    %v1877 = vunpack.c.l.b16 %v521
    %v1878 = vunpack.c.h.b16 %v521
    %v1879 = vunpack.c.l.b16 %v522
    %v1880 = vunpack.c.h.b16 %v522
    %v1881 = vunpack.c.l.b16 %v523
    %v1882 = vunpack.c.h.b16 %v523
    %v1883 = vunpack.c.l.b16 %v524
    %v1884 = vunpack.c.h.b16 %v524
    %v1885 = vunpack.c.l.b16 %v525
    %v1886 = vunpack.c.h.b16 %v525
    %v1887 = vunpack.c.l.b16 %v526
    %v1888 = vunpack.c.h.b16 %v526
    %v1889 = vunpack.c.l.b16 %v527
    %v1890 = vunpack.c.h.b16 %v527
    %v1891 = vunpack.c.l.b16 %v528
    %v1892 = vunpack.c.h.b16 %v528
    %v1893 = vunpack.c.l.b16 %v529
    %v1894 = vunpack.c.h.b16 %v529
    %v1895 = vunpack.c.l.b16 %v530
    %v1896 = vunpack.c.h.b16 %v530
    %v1897 = vunpack.c.l.b16 %v531
    %v1898 = vunpack.c.h.b16 %v531
    %v1899 = vunpack.c.l.b16 %v532
    %v1900 = vunpack.c.h.b16 %v532
    %v1901 = vunpack.c.l.b16 %v533
    %v1902 = vunpack.c.h.b16 %v533
    %v1903 = vunpack.c.l.b16 %v534
    %v1904 = vunpack.c.h.b16 %v534
    %v1905 = vunpack.c.l.b16 %v535
    %v1906 = vunpack.c.h.b16 %v535
    %v1907 = vunpack.c.l.b16 %v536
    %v1908 = vunpack.c.h.b16 %v536
    %v1909 = vunpack.c.l.b16 %v537
    %v1910 = vunpack.c.h.b16 %v537
    %v1911 = vunpack.c.l.b16 %v538
    %v1912 = vunpack.c.h.b16 %v538
    %v1913 = vunpack.c.l.b16 %v539
    %v1914 = vunpack.c.h.b16 %v539
    %v1915 = vunpack.c.l.b16 %v540
    %v1916 = vunpack.c.h.b16 %v540
    %v1917 = vunpack.c.l.b16 %v541
    %v1918 = vunpack.c.h.b16 %v541
    %v1919 = vunpack.c.l.b16 %v542
    %v1920 = vunpack.c.h.b16 %v542
    %v1921 = vunpack.c.l.b16 %v543
    %v1922 = vunpack.c.h.b16 %v543
    %v1923 = vunpack.c.l.b16 %v544
    %v1924 = vunpack.c.h.b16 %v544
    %v1925 = vunpack.c.l.b16 %v545
    %v1926 = vunpack.c.h.b16 %v545
    %v1927 = vunpack.c.l.b16 %v546
    %v1928 = vunpack.c.h.b16 %v546
    %v1929 = vunpack.c.l.b16 %v547
    %v1930 = vunpack.c.h.b16 %v547
    %v1931 = vunpack.c.l.b16 %v548
    %v1932 = vunpack.c.h.b16 %v548
    %v1933 = vunpack.c.l.b16 %v549
    %v1934 = vunpack.c.h.b16 %v549
    %v1935 = vunpack.c.l.b16 %v550
    %v1936 = vunpack.c.h.b16 %v550
    %v1937 = vunpack.c.l.b16 %v551
    %v1938 = vunpack.c.h.b16 %v551
    %v1939 = vunpack.c.l.b16 %v552
    %v1940 = vunpack.c.h.b16 %v552
    %v1941 = vunpack.c.l.b16 %v553
    %v1942 = vunpack.c.h.b16 %v553
    %v1943 = vunpack.c.l.b16 %v554
    %v1944 = vunpack.c.h.b16 %v554
    %v1945 = vunpack.c.l.b16 %v555
    %v1946 = vunpack.c.h.b16 %v555
    %v1947 = vunpack.c.l.b16 %v556
    %v1948 = vunpack.c.h.b16 %v556
    %v1949 = vunpack.c.l.b16 %v557
    %v1950 = vunpack.c.h.b16 %v557
    %v1951 = vunpack.c.l.b16 %v558
    %v1952 = vunpack.c.h.b16 %v558
    %v1953 = vunpack.c.l.b16 %v559
    %v1954 = vunpack.c.h.b16 %v559
    %v1955 = vunpack.c.l.b16 %v560
    %v1956 = vunpack.c.h.b16 %v560
    %v1957 = vunpack.c.l.b16 %v561
    %v1958 = vunpack.c.h.b16 %v561
    %v1959 = vunpack.c.l.b16 %v562
    %v1960 = vunpack.c.h.b16 %v562
    %v1961 = vunpack.c.l.b16 %v563
    %v1962 = vunpack.c.h.b16 %v563
    %v1963 = vunpack.c.l.b16 %v564
    %v1964 = vunpack.c.h.b16 %v564
    %v1965 = vunpack.c.l.b16 %v565
    %v1966 = vunpack.c.h.b16 %v565
    %v1967 = vunpack.c.l.b16 %v566
    %v1968 = vunpack.c.h.b16 %v566
    %v1969 = vunpack.c.l.b16 %v567
    %v1970 = vunpack.c.h.b16 %v567
    %v1971 = vunpack.c.l.b16 %v568
    %v1972 = vunpack.c.h.b16 %v568
    %v1973 = vunpack.c.l.b16 %v569
    %v1974 = vunpack.c.h.b16 %v569
    %v1975 = vunpack.c.l.b16 %v570
    %v1976 = vunpack.c.h.b16 %v570
    %v1977 = vunpack.c.l.b16 %v571
    %v1978 = vunpack.c.h.b16 %v571
    %v1979 = vunpack.c.l.b16 %v572
    %v1980 = vunpack.c.h.b16 %v572
    %v1981 = vunpack.c.l.b16 %v573
    %v1982 = vunpack.c.h.b16 %v573
    %v1983 = vunpack.c.l.b16 %v574
    %v1984 = vunpack.c.h.b16 %v574
    %v1985 = vunpack.c.l.b16 %v575
    %v1986 = vunpack.c.h.b16 %v575
    %v1987 = vunpack.c.l.b16 %v576
    %v1988 = vunpack.c.h.b16 %v576
    %v1989 = vunpack.c.l.b16 %v577
    %v1990 = vunpack.c.h.b16 %v577
    %v1991 = vunpack.c.l.b16 %v578
    %v1992 = vunpack.c.h.b16 %v578
    %v1993 = vunpack.c.l.b16 %v579
    %v1994 = vunpack.c.h.b16 %v579
    %v1995 = vunpack.c.l.b16 %v580
    %v1996 = vunpack.c.h.b16 %v580
    %v1997 = vunpack.c.l.b16 %v581
    %v1998 = vunpack.c.h.b16 %v581
    %v1999 = vunpack.c.l.b16 %v582
    %v2000 = vunpack.c.h.b16 %v582
    %v2001 = vunpack.c.l.b16 %v583
    %v2002 = vunpack.c.h.b16 %v583
    %v2003 = vunpack.c.l.b16 %v584
    %v2004 = vunpack.c.h.b16 %v584
    %v2005 = vunpack.c.l.b16 %v585
    %v2006 = vunpack.c.h.b16 %v585
    %v2007 = vunpack.c.l.b16 %v586
    %v2008 = vunpack.c.h.b16 %v586
    %v2009 = vunpack.c.l.b16 %v587
    %v2010 = vunpack.c.h.b16 %v587
    %v2011 = vunpack.c.l.b16 %v588
    %v2012 = vunpack.c.h.b16 %v588
    %v2013 = vunpack.c.l.b16 %v589
    %v2014 = vunpack.c.h.b16 %v589
    %v2015 = vunpack.c.l.b16 %v590
    %v2016 = vunpack.c.h.b16 %v590
    %v2017 = vunpack.c.l.b16 %v591
    %v2018 = vunpack.c.h.b16 %v591
    %v2019 = vunpack.c.l.b16 %v592
    %v2020 = vunpack.c.h.b16 %v592
    %v2021 = vunpack.c.l.b16 %v593
    %v2022 = vunpack.c.h.b16 %v593
    %v2023 = vunpack.c.l.b16 %v594
    %v2024 = vunpack.c.h.b16 %v594
    %v2025 = vunpack.c.l.b16 %v595
    %v2026 = vunpack.c.h.b16 %v595
    %v2027 = vunpack.c.l.b16 %v596
    %v2028 = vunpack.c.h.b16 %v596
    %v2029 = vunpack.c.l.b16 %v597
    %v2030 = vunpack.c.h.b16 %v597
    %v2031 = vunpack.c.l.b16 %v598
    %v2032 = vunpack.c.h.b16 %v598
    %v2033 = vunpack.c.l.b16 %v599
    %v2034 = vunpack.c.h.b16 %v599
    %v2035 = vunpack.c.l.b16 %v600
    %v2036 = vunpack.c.h.b16 %v600
    %v2037 = vunpack.c.l.b16 %v601
    %v2038 = vunpack.c.h.b16 %v601
    %v2039 = vunpack.c.l.b16 %v602
    %v2040 = vunpack.c.h.b16 %v602
    %v2041 = vunpack.c.l.b16 %v603
    %v2042 = vunpack.c.h.b16 %v603
    %v2043 = vunpack.c.l.b16 %v604
    %v2044 = vunpack.c.h.b16 %v604
    %v2045 = vunpack.c.l.b16 %v605
    %v2046 = vunpack.c.h.b16 %v605
    %v2047 = vunpack.c.l.b16 %v606
    %v2048 = vunpack.c.h.b16 %v606
    %v2049 = vunpack.c.l.b16 %v607
    %v2050 = vunpack.c.h.b16 %v607
    %v2051 = vunpack.c.l.b16 %v608
    %v2052 = vunpack.c.h.b16 %v608
    %v2053 = vunpack.c.l.b16 %v609
    %v2054 = vunpack.c.h.b16 %v609
    %v2055 = vunpack.c.l.b16 %v610
    %v2056 = vunpack.c.h.b16 %v610
    %v2057 = vunpack.c.l.b16 %v611
    %v2058 = vunpack.c.h.b16 %v611
    %v2059 = vunpack.c.l.b16 %v612
    %v2060 = vunpack.c.h.b16 %v612
    %v2061 = vunpack.c.l.b16 %v613
    %v2062 = vunpack.c.h.b16 %v613
    %v2063 = vunpack.c.l.b16 %v614
    %v2064 = vunpack.c.h.b16 %v614
    %v2065 = vunpack.c.l.b16 %v615
    %v2066 = vunpack.c.h.b16 %v615
    %v2067 = vunpack.c.l.b16 %v616
    %v2068 = vunpack.c.h.b16 %v616
    %v2069 = vunpack.c.l.b16 %v617
    %v2070 = vunpack.c.h.b16 %v617
    %v2071 = vunpack.c.l.b16 %v618
    %v2072 = vunpack.c.h.b16 %v618
    %v2073 = vunpack.c.l.b16 %v619
    %v2074 = vunpack.c.h.b16 %v619
    %v2075 = vunpack.c.l.b16 %v620
    %v2076 = vunpack.c.h.b16 %v620
    %v2077 = vunpack.c.l.b16 %v621
    %v2078 = vunpack.c.h.b16 %v621
    %v2079 = vunpack.c.l.b16 %v622
    %v2080 = vunpack.c.h.b16 %v622
    %v2081 = vunpack.c.l.b16 %v623
    %v2082 = vunpack.c.h.b16 %v623
    %v2083 = vunpack.c.l.b16 %v624
    %v2084 = vunpack.c.h.b16 %v624
    %v2085 = vunpack.c.l.b16 %v625
    %v2086 = vunpack.c.h.b16 %v625
    %v2087 = vunpack.c.l.b16 %v626
    %v2088 = vunpack.c.h.b16 %v626
    %v2089 = vunpack.c.l.b16 %v627
    %v2090 = vunpack.c.h.b16 %v627
    %v2091 = vunpack.c.l.b16 %v628
    %v2092 = vunpack.c.h.b16 %v628
    %v2093 = vunpack.c.l.b16 %v629
    %v2094 = vunpack.c.h.b16 %v629
    %v2095 = vunpack.c.l.b16 %v630
    %v2096 = vunpack.c.h.b16 %v630
    %v2097 = vunpack.c.l.b16 %v631
    %v2098 = vunpack.c.h.b16 %v631
    %v2099 = vunpack.c.l.b16 %v632
    %v2100 = vunpack.c.h.b16 %v632
    %v2101 = vunpack.c.l.b16 %v633
    %v2102 = vunpack.c.h.b16 %v633
    %v2103 = vunpack.c.l.b16 %v634
    %v2104 = vunpack.c.h.b16 %v634
    %v2105 = vunpack.c.l.b16 %v635
    %v2106 = vunpack.c.h.b16 %v635
    %v2107 = vunpack.c.l.b16 %v636
    %v2108 = vunpack.c.h.b16 %v636
    %v2109 = vunpack.c.l.b16 %v637
    %v2110 = vunpack.c.h.b16 %v637
    %v2111 = vunpack.c.l.b16 %v638
    %v2112 = vunpack.c.h.b16 %v638
    %v2113 = vunpack.c.l.b16 %v639
    %v2114 = vunpack.c.h.b16 %v639
    %v2115 = vunpack.c.l.b16 %v640
    %v2116 = vunpack.c.h.b16 %v640
    %v2117 = vunpack.c.l.b16 %v641
    %v2118 = vunpack.c.h.b16 %v641
    %v2119 = vunpack.c.l.b16 %v642
    %v2120 = vunpack.c.h.b16 %v642
    %v2121 = vunpack.c.l.b16 %v643
    %v2122 = vunpack.c.h.b16 %v643
    %v2123 = vunpack.c.l.b16 %v644
    %v2124 = vunpack.c.h.b16 %v644
    %v2125 = vunpack.c.l.b16 %v645
    %v2126 = vunpack.c.h.b16 %v645
    %v2127 = vunpack.c.l.b16 %v646
    %v2128 = vunpack.c.h.b16 %v646
    %v2129 = vunpack.c.l.b16 %v647
    %v2130 = vunpack.c.h.b16 %v647
    %v2131 = vunpack.c.l.b16 %v648
    %v2132 = vunpack.c.h.b16 %v648
    %v2133 = vunpack.c.l.b16 %v649
    %v2134 = vunpack.c.h.b16 %v649
    %v2135 = vunpack.c.l.b16 %v650
    %v2136 = vunpack.c.h.b16 %v650
    %v2137 = vunpack.c.l.b16 %v651
    %v2138 = vunpack.c.h.b16 %v651
    %v2139 = vunpack.c.l.b16 %v652
    %v2140 = vunpack.c.h.b16 %v652
    %v2141 = vunpack.c.l.b16 %v653
    %v2142 = vunpack.c.h.b16 %v653
    %v2143 = vunpack.c.l.b16 %v654
    %v2144 = vunpack.c.h.b16 %v654
    %v2145 = vunpack.c.l.b16 %v655
    %v2146 = vunpack.c.h.b16 %v655
    %v2147 = vunpack.c.l.b16 %v656
    %v2148 = vunpack.c.h.b16 %v656
    %v2149 = vunpack.c.l.b16 %v657
    %v2150 = vunpack.c.h.b16 %v657
    %v2151 = vunpack.c.l.b16 %v658
    %v2152 = vunpack.c.h.b16 %v658
    %v2153 = vunpack.c.l.b16 %v659
    %v2154 = vunpack.c.h.b16 %v659
    %v2155 = vunpack.c.l.b16 %v660
    %v2156 = vunpack.c.h.b16 %v660
    %v2157 = vunpack.c.l.b16 %v661
    %v2158 = vunpack.c.h.b16 %v661
    %v2159 = vunpack.c.l.b16 %v662
    %v2160 = vunpack.c.h.b16 %v662
    %v2161 = vunpack.c.l.b16 %v663
    %v2162 = vunpack.c.h.b16 %v663
    %v2163 = vunpack.c.l.b16 %v664
    %v2164 = vunpack.c.h.b16 %v664
    %v2165 = vunpack.c.l.b16 %v665
    %v2166 = vunpack.c.h.b16 %v665
    %v2167 = vunpack.c.l.b16 %v666
    %v2168 = vunpack.c.h.b16 %v666
    %v2169 = vunpack.c.l.b16 %v667
    %v2170 = vunpack.c.h.b16 %v667
    %v2171 = vunpack.c.l.b16 %v668
    %v2172 = vunpack.c.h.b16 %v668
    %v2173 = vunpack.c.l.b16 %v669
    %v2174 = vunpack.c.h.b16 %v669
    %v2175 = vunpack.c.l.b16 %v670
    %v2176 = vunpack.c.h.b16 %v670
    %v2177 = vunpack.c.l.b16 %v671
    %v2178 = vunpack.c.h.b16 %v671
    %v2179 = vunpack.c.l.b16 %v672
    %v2180 = vunpack.c.h.b16 %v672
    %v2181 = vunpack.c.l.b16 %v673
    %v2182 = vunpack.c.h.b16 %v673
    %v2183 = vunpack.c.l.b16 %v674
    %v2184 = vunpack.c.h.b16 %v674
    %v2185 = vunpack.c.l.b16 %v675
    %v2186 = vunpack.c.h.b16 %v675
    %v2187 = vunpack.c.l.b16 %v676
    %v2188 = vunpack.c.h.b16 %v676
    %v2189 = vunpack.c.l.b16 %v677
    %v2190 = vunpack.c.h.b16 %v677
    %v2191 = vunpack.c.l.b16 %v678
    %v2192 = vunpack.c.h.b16 %v678
    %v2193 = vunpack.c.l.b16 %v679
    %v2194 = vunpack.c.h.b16 %v679
    %v2195 = vunpack.c.l.b16 %v680
    %v2196 = vunpack.c.h.b16 %v680
    %v2197 = vunpack.c.l.b16 %v681
    %v2198 = vunpack.c.h.b16 %v681
    %v2199 = vunpack.c.l.b16 %v682
    %v2200 = vunpack.c.h.b16 %v682
    %v2201 = vunpack.c.l.b16 %v683
    %v2202 = vunpack.c.h.b16 %v683
    %v2203 = vunpack.c.l.b16 %v684
    %v2204 = vunpack.c.h.b16 %v684
    %v2205 = vunpack.c.l.b16 %v685
    %v2206 = vunpack.c.h.b16 %v685
    %v2207 = vunpack.c.l.b16 %v686
    %v2208 = vunpack.c.h.b16 %v686
    %v2209 = vunpack.c.l.b16 %v687
    %v2210 = vunpack.c.h.b16 %v687
    %v2211 = vunpack.c.l.b16 %v688
    %v2212 = vunpack.c.h.b16 %v688
    %v2213 = vunpack.c.l.b16 %v689
    %v2214 = vunpack.c.h.b16 %v689
    %v2215 = vunpack.c.l.b16 %v690
    %v2216 = vunpack.c.h.b16 %v690
    %v2217 = vunpack.c.l.b16 %v691
    %v2218 = vunpack.c.h.b16 %v691
    %v2219 = vunpack.c.l.b16 %v692
    %v2220 = vunpack.c.h.b16 %v692
    %v2221 = vunpack.c.l.b16 %v693
    %v2222 = vunpack.c.h.b16 %v693
    %v2223 = vunpack.c.l.b16 %v694
    %v2224 = vunpack.c.h.b16 %v694
    %v2225 = vunpack.c.l.b16 %v695
    %v2226 = vunpack.c.h.b16 %v695
    %v2227 = vunpack.c.l.b16 %v696
    %v2228 = vunpack.c.h.b16 %v696
    %v2229 = vunpack.c.l.b16 %v697
    %v2230 = vunpack.c.h.b16 %v697
    %v2231 = vunpack.c.l.b16 %v698
    %v2232 = vunpack.c.h.b16 %v698
    %v2233 = vunpack.c.l.b16 %v699
    %v2234 = vunpack.c.h.b16 %v699
    %v2235 = vunpack.c.l.b16 %v700
    %v2236 = vunpack.c.h.b16 %v700
    %v2237 = vunpack.c.l.b16 %v701
    %v2238 = vunpack.c.h.b16 %v701
    %v2239 = vunpack.c.l.b16 %v702
    %v2240 = vunpack.c.h.b16 %v702
    %v2241 = vunpack.c.l.b16 %v703
    %v2242 = vunpack.c.h.b16 %v703
    %v2243 = vunpack.c.l.b16 %v704
    %v2244 = vunpack.c.h.b16 %v704
    %v2245 = vunpack.c.l.b16 %v705
    %v2246 = vunpack.c.h.b16 %v705
    %v2247 = vunpack.c.l.b16 %v706
    %v2248 = vunpack.c.h.b16 %v706
    %v2249 = vunpack.c.l.b16 %v707
    %v2250 = vunpack.c.h.b16 %v707
    %v2251 = vunpack.c.l.b16 %v708
    %v2252 = vunpack.c.h.b16 %v708
    %v2253 = vunpack.c.l.b16 %v709
    %v2254 = vunpack.c.h.b16 %v709
    %v2255 = vunpack.c.l.b16 %v710
    %v2256 = vunpack.c.h.b16 %v710
    %v2257 = vunpack.c.l.b16 %v711
    %v2258 = vunpack.c.h.b16 %v711
    %v2259 = vunpack.c.l.b16 %v712
    %v2260 = vunpack.c.h.b16 %v712
    %v2261 = vunpack.c.l.b16 %v713
    %v2262 = vunpack.c.h.b16 %v713
    %v2263 = vunpack.c.l.b16 %v714
    %v2264 = vunpack.c.h.b16 %v714
    %v2265 = vunpack.c.l.b16 %v715
    %v2266 = vunpack.c.h.b16 %v715
    %v2267 = vunpack.c.l.b16 %v716
    %v2268 = vunpack.c.h.b16 %v716
    %v2269 = vunpack.c.l.b16 %v717
    %v2270 = vunpack.c.h.b16 %v717
    %v2271 = vunpack.c.l.b16 %v718
    %v2272 = vunpack.c.h.b16 %v718
    %v2273 = vunpack.c.l.b16 %v719
    %v2274 = vunpack.c.h.b16 %v719
    %v2275 = vunpack.c.l.b16 %v720
    %v2276 = vunpack.c.h.b16 %v720
    %v2277 = vunpack.c.l.b16 %v721
    %v2278 = vunpack.c.h.b16 %v721
    %v2279 = vunpack.c.l.b16 %v722
    %v2280 = vunpack.c.h.b16 %v722
    %v2281 = vpack.c.b16 %v1261, %v1257
    %v2282 = vpack.c.b16 %v1262, %v1258
    %v2283 = vpack.c.b16 %v1263, %v1259
    %v2284 = vpack.c.b16 %v1264, %v1260
    %v2285 = vpack.c.b16 %v1269, %v1265
    %v2286 = vpack.c.b16 %v1270, %v1266
    %v2287 = vpack.c.b16 %v1271, %v1267
    %v2288 = vpack.c.b16 %v1272, %v1268
    %v2289 = vpack.c.b16 %v1277, %v1273
    %v2290 = vpack.c.b16 %v1278, %v1274
    %v2291 = vpack.c.b16 %v1279, %v1275
    %v2292 = vpack.c.b16 %v1280, %v1276
    %v2293 = vpack.c.b16 %v1285, %v1281
    %v2294 = vpack.c.b16 %v1286, %v1282
    %v2295 = vpack.c.b16 %v1287, %v1283
    %v2296 = vpack.c.b16 %v1288, %v1284
    %v2297 = vpack.c.b16 %v1293, %v1289
    %v2298 = vpack.c.b16 %v1294, %v1290
    %v2299 = vpack.c.b16 %v1295, %v1291
    %v2300 = vpack.c.b16 %v1296, %v1292
    %v2301 = vpack.c.b16 %v1301, %v1297
    %v2302 = vpack.c.b16 %v1302, %v1298
    %v2303 = vpack.c.b16 %v1303, %v1299
    %v2304 = vpack.c.b16 %v1304, %v1300
    %v2305 = vpack.c.b16 %v1309, %v1305
    %v2306 = vpack.c.b16 %v1310, %v1306
    %v2307 = vpack.c.b16 %v1311, %v1307
    %v2308 = vpack.c.b16 %v1312, %v1308
    %v2309 = vpack.c.b16 %v1317, %v1313
    %v2310 = vpack.c.b16 %v1318, %v1314
    %v2311 = vpack.c.b16 %v1319, %v1315
    %v2312 = vpack.c.b16 %v1320, %v1316
    %v2313 = vpack.c.b16 %v1325, %v1321
    %v2314 = vpack.c.b16 %v1326, %v1322
    %v2315 = vpack.c.b16 %v1327, %v1323
    %v2316 = vpack.c.b16 %v1328, %v1324
    %v2317 = vpack.c.b16 %v1333, %v1329
    %v2318 = vpack.c.b16 %v1334, %v1330
    %v2319 = vpack.c.b16 %v1335, %v1331
    %v2320 = vpack.c.b16 %v1336, %v1332
    %v2321 = vpack.c.b16 %v1341, %v1337
    %v2322 = vpack.c.b16 %v1342, %v1338
    %v2323 = vpack.c.b16 %v1343, %v1339
    %v2324 = vpack.c.b16 %v1344, %v1340
    %v2325 = vpack.c.b16 %v1349, %v1345
    %v2326 = vpack.c.b16 %v1350, %v1346
    %v2327 = vpack.c.b16 %v1351, %v1347
    %v2328 = vpack.c.b16 %v1352, %v1348
    %v2329 = vpack.c.b16 %v1357, %v1353
    %v2330 = vpack.c.b16 %v1358, %v1354
    %v2331 = vpack.c.b16 %v1359, %v1355
    %v2332 = vpack.c.b16 %v1360, %v1356
    %v2333 = vpack.c.b16 %v1365, %v1361
    %v2334 = vpack.c.b16 %v1366, %v1362
    %v2335 = vpack.c.b16 %v1367, %v1363
    %v2336 = vpack.c.b16 %v1368, %v1364
    %v2337 = vpack.c.b16 %v1373, %v1369
    %v2338 = vpack.c.b16 %v1374, %v1370
    %v2339 = vpack.c.b16 %v1375, %v1371
    %v2340 = vpack.c.b16 %v1376, %v1372
    %v2341 = vpack.c.b16 %v1381, %v1377
    %v2342 = vpack.c.b16 %v1382, %v1378
    %v2343 = vpack.c.b16 %v1383, %v1379
    %v2344 = vpack.c.b16 %v1384, %v1380
    %v2345 = vpack.c.b16 %v1389, %v1385
    %v2346 = vpack.c.b16 %v1390, %v1386
    %v2347 = vpack.c.b16 %v1391, %v1387
    %v2348 = vpack.c.b16 %v1392, %v1388
    %v2349 = vpack.c.b16 %v1397, %v1393
    %v2350 = vpack.c.b16 %v1398, %v1394
    %v2351 = vpack.c.b16 %v1399, %v1395
    %v2352 = vpack.c.b16 %v1400, %v1396
    %v2353 = vpack.c.b16 %v1405, %v1401
    %v2354 = vpack.c.b16 %v1406, %v1402
    %v2355 = vpack.c.b16 %v1407, %v1403
    %v2356 = vpack.c.b16 %v1408, %v1404
    %v2357 = vpack.c.b16 %v1413, %v1409
    %v2358 = vpack.c.b16 %v1414, %v1410
    %v2359 = vpack.c.b16 %v1415, %v1411
    %v2360 = vpack.c.b16 %v1416, %v1412
    %v2361 = vpack.c.b16 %v1421, %v1417
    %v2362 = vpack.c.b16 %v1422, %v1418
    %v2363 = vpack.c.b16 %v1423, %v1419
    %v2364 = vpack.c.b16 %v1424, %v1420
    %v2365 = vpack.c.b16 %v1429, %v1425
    %v2366 = vpack.c.b16 %v1430, %v1426
    %v2367 = vpack.c.b16 %v1431, %v1427
    %v2368 = vpack.c.b16 %v1432, %v1428
    %v2369 = vpack.c.b16 %v1437, %v1433
    %v2370 = vpack.c.b16 %v1438, %v1434
    %v2371 = vpack.c.b16 %v1439, %v1435
    %v2372 = vpack.c.b16 %v1440, %v1436
    %v2373 = vpack.c.b16 %v1445, %v1441
    %v2374 = vpack.c.b16 %v1446, %v1442
    %v2375 = vpack.c.b16 %v1447, %v1443
    %v2376 = vpack.c.b16 %v1448, %v1444
    %v2377 = vpack.c.b16 %v1453, %v1449
    %v2378 = vpack.c.b16 %v1454, %v1450
    %v2379 = vpack.c.b16 %v1455, %v1451
    %v2380 = vpack.c.b16 %v1456, %v1452
    %v2381 = vpack.c.b16 %v1461, %v1457
    %v2382 = vpack.c.b16 %v1462, %v1458
    %v2383 = vpack.c.b16 %v1463, %v1459
    %v2384 = vpack.c.b16 %v1464, %v1460
    %v2385 = vpack.c.b16 %v1469, %v1465
    %v2386 = vpack.c.b16 %v1470, %v1466
    %v2387 = vpack.c.b16 %v1471, %v1467
    %v2388 = vpack.c.b16 %v1472, %v1468
    %v2389 = vpack.c.b16 %v1477, %v1473
    %v2390 = vpack.c.b16 %v1478, %v1474
    %v2391 = vpack.c.b16 %v1479, %v1475
    %v2392 = vpack.c.b16 %v1480, %v1476
    %v2393 = vpack.c.b16 %v1485, %v1481
    %v2394 = vpack.c.b16 %v1486, %v1482
    %v2395 = vpack.c.b16 %v1487, %v1483
    %v2396 = vpack.c.b16 %v1488, %v1484
    %v2397 = vpack.c.b16 %v1493, %v1489
    %v2398 = vpack.c.b16 %v1494, %v1490
    %v2399 = vpack.c.b16 %v1495, %v1491
    %v2400 = vpack.c.b16 %v1496, %v1492
    %v2401 = vpack.c.b16 %v1501, %v1497
    %v2402 = vpack.c.b16 %v1502, %v1498
    %v2403 = vpack.c.b16 %v1503, %v1499
    %v2404 = vpack.c.b16 %v1504, %v1500
    %v2405 = vpack.c.b16 %v1509, %v1505
    %v2406 = vpack.c.b16 %v1510, %v1506
    %v2407 = vpack.c.b16 %v1511, %v1507
    %v2408 = vpack.c.b16 %v1512, %v1508
    %v2409 = vpack.c.b16 %v1517, %v1513
    %v2410 = vpack.c.b16 %v1518, %v1514
    %v2411 = vpack.c.b16 %v1519, %v1515
    %v2412 = vpack.c.b16 %v1520, %v1516
    %v2413 = vpack.c.b16 %v1525, %v1521
    %v2414 = vpack.c.b16 %v1526, %v1522
    %v2415 = vpack.c.b16 %v1527, %v1523
    %v2416 = vpack.c.b16 %v1528, %v1524
    %v2417 = vpack.c.b16 %v1533, %v1529
    %v2418 = vpack.c.b16 %v1534, %v1530
    %v2419 = vpack.c.b16 %v1535, %v1531
    %v2420 = vpack.c.b16 %v1536, %v1532
    %v2421 = vpack.c.b16 %v1541, %v1537
    %v2422 = vpack.c.b16 %v1542, %v1538
    %v2423 = vpack.c.b16 %v1543, %v1539
    %v2424 = vpack.c.b16 %v1544, %v1540
    %v2425 = vpack.c.b16 %v1549, %v1545
    %v2426 = vpack.c.b16 %v1550, %v1546
    %v2427 = vpack.c.b16 %v1551, %v1547
    %v2428 = vpack.c.b16 %v1552, %v1548
    %v2429 = vpack.c.b16 %v1557, %v1553
    %v2430 = vpack.c.b16 %v1558, %v1554
    %v2431 = vpack.c.b16 %v1559, %v1555
    %v2432 = vpack.c.b16 %v1560, %v1556
    %v2433 = vpack.c.b16 %v1565, %v1561
    %v2434 = vpack.c.b16 %v1566, %v1562
    %v2435 = vpack.c.b16 %v1567, %v1563
    %v2436 = vpack.c.b16 %v1568, %v1564
    %v2437 = vpack.c.b16 %v1573, %v1569
    %v2438 = vpack.c.b16 %v1574, %v1570
    %v2439 = vpack.c.b16 %v1575, %v1571
    %v2440 = vpack.c.b16 %v1576, %v1572
    %v2441 = vpack.c.b16 %v1581, %v1577
    %v2442 = vpack.c.b16 %v1582, %v1578
    %v2443 = vpack.c.b16 %v1583, %v1579
    %v2444 = vpack.c.b16 %v1584, %v1580
    %v2445 = vpack.c.b16 %v1589, %v1585
    %v2446 = vpack.c.b16 %v1590, %v1586
    %v2447 = vpack.c.b16 %v1591, %v1587
    %v2448 = vpack.c.b16 %v1592, %v1588
    %v2449 = vpack.c.b16 %v1597, %v1593
    %v2450 = vpack.c.b16 %v1598, %v1594
    %v2451 = vpack.c.b16 %v1599, %v1595
    %v2452 = vpack.c.b16 %v1600, %v1596
    %v2453 = vpack.c.b16 %v1605, %v1601
    %v2454 = vpack.c.b16 %v1606, %v1602
    %v2455 = vpack.c.b16 %v1607, %v1603
    %v2456 = vpack.c.b16 %v1608, %v1604
    %v2457 = vpack.c.b16 %v1613, %v1609
    %v2458 = vpack.c.b16 %v1614, %v1610
    %v2459 = vpack.c.b16 %v1615, %v1611
    %v2460 = vpack.c.b16 %v1616, %v1612
    %v2461 = vpack.c.b16 %v1621, %v1617
    %v2462 = vpack.c.b16 %v1622, %v1618
    %v2463 = vpack.c.b16 %v1623, %v1619
    %v2464 = vpack.c.b16 %v1624, %v1620
    %v2465 = vpack.c.b16 %v1629, %v1625
    %v2466 = vpack.c.b16 %v1630, %v1626
    %v2467 = vpack.c.b16 %v1631, %v1627
    %v2468 = vpack.c.b16 %v1632, %v1628
    %v2469 = vpack.c.b16 %v1637, %v1633
    %v2470 = vpack.c.b16 %v1638, %v1634
    %v2471 = vpack.c.b16 %v1639, %v1635
    %v2472 = vpack.c.b16 %v1640, %v1636
    %v2473 = vpack.c.b16 %v1645, %v1641
    %v2474 = vpack.c.b16 %v1646, %v1642
    %v2475 = vpack.c.b16 %v1647, %v1643
    %v2476 = vpack.c.b16 %v1648, %v1644
    %v2477 = vpack.c.b16 %v1653, %v1649
    %v2478 = vpack.c.b16 %v1654, %v1650
    %v2479 = vpack.c.b16 %v1655, %v1651
    %v2480 = vpack.c.b16 %v1656, %v1652
    %v2481 = vpack.c.b16 %v1661, %v1657
    %v2482 = vpack.c.b16 %v1662, %v1658
    %v2483 = vpack.c.b16 %v1663, %v1659
    %v2484 = vpack.c.b16 %v1664, %v1660
    %v2485 = vpack.c.b16 %v1669, %v1665
    %v2486 = vpack.c.b16 %v1670, %v1666
    %v2487 = vpack.c.b16 %v1671, %v1667
    %v2488 = vpack.c.b16 %v1672, %v1668
    %v2489 = vpack.c.b16 %v1677, %v1673
    %v2490 = vpack.c.b16 %v1678, %v1674
    %v2491 = vpack.c.b16 %v1679, %v1675
    %v2492 = vpack.c.b16 %v1680, %v1676
    %v2493 = vpack.c.b16 %v1685, %v1681
    %v2494 = vpack.c.b16 %v1686, %v1682
    %v2495 = vpack.c.b16 %v1687, %v1683
    %v2496 = vpack.c.b16 %v1688, %v1684
    %v2497 = vpack.c.b16 %v1693, %v1689
    %v2498 = vpack.c.b16 %v1694, %v1690
    %v2499 = vpack.c.b16 %v1695, %v1691
    %v2500 = vpack.c.b16 %v1696, %v1692
    %v2501 = vpack.c.b16 %v1701, %v1697
    %v2502 = vpack.c.b16 %v1702, %v1698
    %v2503 = vpack.c.b16 %v1703, %v1699
    %v2504 = vpack.c.b16 %v1704, %v1700
    %v2505 = vpack.c.b16 %v1709, %v1705
    %v2506 = vpack.c.b16 %v1710, %v1706
    %v2507 = vpack.c.b16 %v1711, %v1707
    %v2508 = vpack.c.b16 %v1712, %v1708
    %v2509 = vpack.c.b16 %v1717, %v1713
    %v2510 = vpack.c.b16 %v1718, %v1714
    %v2511 = vpack.c.b16 %v1719, %v1715
    %v2512 = vpack.c.b16 %v1720, %v1716
    %v2513 = vpack.c.b16 %v1725, %v1721
    %v2514 = vpack.c.b16 %v1726, %v1722
    %v2515 = vpack.c.b16 %v1727, %v1723
    %v2516 = vpack.c.b16 %v1728, %v1724
    %v2517 = vpack.c.b16 %v1733, %v1729
    %v2518 = vpack.c.b16 %v1734, %v1730
    %v2519 = vpack.c.b16 %v1735, %v1731
    %v2520 = vpack.c.b16 %v1736, %v1732
    %v2521 = vpack.c.b16 %v1741, %v1737
    %v2522 = vpack.c.b16 %v1742, %v1738
    %v2523 = vpack.c.b16 %v1743, %v1739
    %v2524 = vpack.c.b16 %v1744, %v1740
    %v2525 = vpack.c.b16 %v1749, %v1745
    %v2526 = vpack.c.b16 %v1750, %v1746
    %v2527 = vpack.c.b16 %v1751, %v1747
    %v2528 = vpack.c.b16 %v1752, %v1748
    %v2529 = vpack.c.b16 %v1757, %v1753
    %v2530 = vpack.c.b16 %v1758, %v1754
    %v2531 = vpack.c.b16 %v1759, %v1755
    %v2532 = vpack.c.b16 %v1760, %v1756
    %v2533 = vpack.c.b16 %v1765, %v1761
    %v2534 = vpack.c.b16 %v1766, %v1762
    %v2535 = vpack.c.b16 %v1767, %v1763
    %v2536 = vpack.c.b16 %v1768, %v1764
    %v2537 = vpack.c.b16 %v1773, %v1769
    %v2538 = vpack.c.b16 %v1774, %v1770
    %v2539 = vpack.c.b16 %v1775, %v1771
    %v2540 = vpack.c.b16 %v1776, %v1772
    %v2541 = vpack.c.b16 %v1781, %v1777
    %v2542 = vpack.c.b16 %v1782, %v1778
    %v2543 = vpack.c.b16 %v1783, %v1779
    %v2544 = vpack.c.b16 %v1784, %v1780
    %v2545 = vpack.c.b16 %v1789, %v1785
    %v2546 = vpack.c.b16 %v1790, %v1786
    %v2547 = vpack.c.b16 %v1791, %v1787
    %v2548 = vpack.c.b16 %v1792, %v1788
    %v2549 = vpack.c.b16 %v1797, %v1793
    %v2550 = vpack.c.b16 %v1798, %v1794
    %v2551 = vpack.c.b16 %v1799, %v1795
    %v2552 = vpack.c.b16 %v1800, %v1796
    %v2553 = vpack.c.b16 %v1805, %v1801
    %v2554 = vpack.c.b16 %v1806, %v1802
    %v2555 = vpack.c.b16 %v1807, %v1803
    %v2556 = vpack.c.b16 %v1808, %v1804
    %v2557 = vpack.c.b16 %v1813, %v1809
    %v2558 = vpack.c.b16 %v1814, %v1810
    %v2559 = vpack.c.b16 %v1815, %v1811
    %v2560 = vpack.c.b16 %v1816, %v1812
    %v2561 = vpack.c.b16 %v1821, %v1817
    %v2562 = vpack.c.b16 %v1822, %v1818
    %v2563 = vpack.c.b16 %v1823, %v1819
    %v2564 = vpack.c.b16 %v1824, %v1820
    %v2565 = vpack.c.b16 %v1829, %v1825
    %v2566 = vpack.c.b16 %v1830, %v1826
    %v2567 = vpack.c.b16 %v1831, %v1827
    %v2568 = vpack.c.b16 %v1832, %v1828
    %v2569 = vpack.c.b16 %v1837, %v1833
    %v2570 = vpack.c.b16 %v1838, %v1834
    %v2571 = vpack.c.b16 %v1839, %v1835
    %v2572 = vpack.c.b16 %v1840, %v1836
    %v2573 = vpack.c.b16 %v1845, %v1841
    %v2574 = vpack.c.b16 %v1846, %v1842
    %v2575 = vpack.c.b16 %v1847, %v1843
    %v2576 = vpack.c.b16 %v1848, %v1844
    %v2577 = vpack.c.b16 %v1853, %v1849
    %v2578 = vpack.c.b16 %v1854, %v1850
    %v2579 = vpack.c.b16 %v1855, %v1851
    %v2580 = vpack.c.b16 %v1856, %v1852
    %v2581 = vpack.c.b16 %v1861, %v1857
    %v2582 = vpack.c.b16 %v1862, %v1858
    %v2583 = vpack.c.b16 %v1863, %v1859
    %v2584 = vpack.c.b16 %v1864, %v1860
    %v2585 = vpack.c.b16 %v1869, %v1865
    %v2586 = vpack.c.b16 %v1870, %v1866
    %v2587 = vpack.c.b16 %v1871, %v1867
    %v2588 = vpack.c.b16 %v1872, %v1868
    %v2589 = vpack.c.b16 %v1877, %v1873
    %v2590 = vpack.c.b16 %v1878, %v1874
    %v2591 = vpack.c.b16 %v1879, %v1875
    %v2592 = vpack.c.b16 %v1880, %v1876
    %v2593 = vpack.c.b16 %v1885, %v1881
    %v2594 = vpack.c.b16 %v1886, %v1882
    %v2595 = vpack.c.b16 %v1887, %v1883
    %v2596 = vpack.c.b16 %v1888, %v1884
    %v2597 = vpack.c.b16 %v1893, %v1889
    %v2598 = vpack.c.b16 %v1894, %v1890
    %v2599 = vpack.c.b16 %v1895, %v1891
    %v2600 = vpack.c.b16 %v1896, %v1892
    %v2601 = vpack.c.b16 %v1901, %v1897
    %v2602 = vpack.c.b16 %v1902, %v1898
    %v2603 = vpack.c.b16 %v1903, %v1899
    %v2604 = vpack.c.b16 %v1904, %v1900
    %v2605 = vpack.c.b16 %v1909, %v1905
    %v2606 = vpack.c.b16 %v1910, %v1906
    %v2607 = vpack.c.b16 %v1911, %v1907
    %v2608 = vpack.c.b16 %v1912, %v1908
    %v2609 = vpack.c.b16 %v1917, %v1913
    %v2610 = vpack.c.b16 %v1918, %v1914
    %v2611 = vpack.c.b16 %v1919, %v1915
    %v2612 = vpack.c.b16 %v1920, %v1916
    %v2613 = vpack.c.b16 %v1925, %v1921
    %v2614 = vpack.c.b16 %v1926, %v1922
    %v2615 = vpack.c.b16 %v1927, %v1923
    %v2616 = vpack.c.b16 %v1928, %v1924
    %v2617 = vpack.c.b16 %v1933, %v1929
    %v2618 = vpack.c.b16 %v1934, %v1930
    %v2619 = vpack.c.b16 %v1935, %v1931
    %v2620 = vpack.c.b16 %v1936, %v1932
    %v2621 = vpack.c.b16 %v1941, %v1937
    %v2622 = vpack.c.b16 %v1942, %v1938
    %v2623 = vpack.c.b16 %v1943, %v1939
    %v2624 = vpack.c.b16 %v1944, %v1940
    %v2625 = vpack.c.b16 %v1949, %v1945
    %v2626 = vpack.c.b16 %v1950, %v1946
    %v2627 = vpack.c.b16 %v1951, %v1947
    %v2628 = vpack.c.b16 %v1952, %v1948
    %v2629 = vpack.c.b16 %v1957, %v1953
    %v2630 = vpack.c.b16 %v1958, %v1954
    %v2631 = vpack.c.b16 %v1959, %v1955
    %v2632 = vpack.c.b16 %v1960, %v1956
    %v2633 = vpack.c.b16 %v1965, %v1961
    %v2634 = vpack.c.b16 %v1966, %v1962
    %v2635 = vpack.c.b16 %v1967, %v1963
    %v2636 = vpack.c.b16 %v1968, %v1964
    %v2637 = vpack.c.b16 %v1973, %v1969
    %v2638 = vpack.c.b16 %v1974, %v1970
    %v2639 = vpack.c.b16 %v1975, %v1971
    %v2640 = vpack.c.b16 %v1976, %v1972
    %v2641 = vpack.c.b16 %v1981, %v1977
    %v2642 = vpack.c.b16 %v1982, %v1978
    %v2643 = vpack.c.b16 %v1983, %v1979
    %v2644 = vpack.c.b16 %v1984, %v1980
    %v2645 = vpack.c.b16 %v1989, %v1985
    %v2646 = vpack.c.b16 %v1990, %v1986
    %v2647 = vpack.c.b16 %v1991, %v1987
    %v2648 = vpack.c.b16 %v1992, %v1988
    %v2649 = vpack.c.b16 %v1997, %v1993
    %v2650 = vpack.c.b16 %v1998, %v1994
    %v2651 = vpack.c.b16 %v1999, %v1995
    %v2652 = vpack.c.b16 %v2000, %v1996
    %v2653 = vpack.c.b16 %v2005, %v2001
    %v2654 = vpack.c.b16 %v2006, %v2002
    %v2655 = vpack.c.b16 %v2007, %v2003
    %v2656 = vpack.c.b16 %v2008, %v2004
    %v2657 = vpack.c.b16 %v2013, %v2009
    %v2658 = vpack.c.b16 %v2014, %v2010
    %v2659 = vpack.c.b16 %v2015, %v2011
    %v2660 = vpack.c.b16 %v2016, %v2012
    %v2661 = vpack.c.b16 %v2021, %v2017
    %v2662 = vpack.c.b16 %v2022, %v2018
    %v2663 = vpack.c.b16 %v2023, %v2019
    %v2664 = vpack.c.b16 %v2024, %v2020
    %v2665 = vpack.c.b16 %v2029, %v2025
    %v2666 = vpack.c.b16 %v2030, %v2026
    %v2667 = vpack.c.b16 %v2031, %v2027
    %v2668 = vpack.c.b16 %v2032, %v2028
    %v2669 = vpack.c.b16 %v2037, %v2033
    %v2670 = vpack.c.b16 %v2038, %v2034
    %v2671 = vpack.c.b16 %v2039, %v2035
    %v2672 = vpack.c.b16 %v2040, %v2036
    %v2673 = vpack.c.b16 %v2045, %v2041
    %v2674 = vpack.c.b16 %v2046, %v2042
    %v2675 = vpack.c.b16 %v2047, %v2043
    %v2676 = vpack.c.b16 %v2048, %v2044
    %v2677 = vpack.c.b16 %v2053, %v2049
    %v2678 = vpack.c.b16 %v2054, %v2050
    %v2679 = vpack.c.b16 %v2055, %v2051
    %v2680 = vpack.c.b16 %v2056, %v2052
    %v2681 = vpack.c.b16 %v2061, %v2057
    %v2682 = vpack.c.b16 %v2062, %v2058
    %v2683 = vpack.c.b16 %v2063, %v2059
    %v2684 = vpack.c.b16 %v2064, %v2060
    %v2685 = vpack.c.b16 %v2069, %v2065
    %v2686 = vpack.c.b16 %v2070, %v2066
    %v2687 = vpack.c.b16 %v2071, %v2067
    %v2688 = vpack.c.b16 %v2072, %v2068
    %v2689 = vpack.c.b16 %v2077, %v2073
    %v2690 = vpack.c.b16 %v2078, %v2074
    %v2691 = vpack.c.b16 %v2079, %v2075
    %v2692 = vpack.c.b16 %v2080, %v2076
    %v2693 = vpack.c.b16 %v2085, %v2081
    %v2694 = vpack.c.b16 %v2086, %v2082
    %v2695 = vpack.c.b16 %v2087, %v2083
    %v2696 = vpack.c.b16 %v2088, %v2084
    %v2697 = vpack.c.b16 %v2093, %v2089
    %v2698 = vpack.c.b16 %v2094, %v2090
    %v2699 = vpack.c.b16 %v2095, %v2091
    %v2700 = vpack.c.b16 %v2096, %v2092
    %v2701 = vpack.c.b16 %v2101, %v2097
    %v2702 = vpack.c.b16 %v2102, %v2098
    %v2703 = vpack.c.b16 %v2103, %v2099
    %v2704 = vpack.c.b16 %v2104, %v2100
    %v2705 = vpack.c.b16 %v2109, %v2105
    %v2706 = vpack.c.b16 %v2110, %v2106
    %v2707 = vpack.c.b16 %v2111, %v2107
    %v2708 = vpack.c.b16 %v2112, %v2108
    %v2709 = vpack.c.b16 %v2117, %v2113
    %v2710 = vpack.c.b16 %v2118, %v2114
    %v2711 = vpack.c.b16 %v2119, %v2115
    %v2712 = vpack.c.b16 %v2120, %v2116
    %v2713 = vpack.c.b16 %v2125, %v2121
    %v2714 = vpack.c.b16 %v2126, %v2122
    %v2715 = vpack.c.b16 %v2127, %v2123
    %v2716 = vpack.c.b16 %v2128, %v2124
    %v2717 = vpack.c.b16 %v2133, %v2129
    %v2718 = vpack.c.b16 %v2134, %v2130
    %v2719 = vpack.c.b16 %v2135, %v2131
    %v2720 = vpack.c.b16 %v2136, %v2132
    %v2721 = vpack.c.b16 %v2141, %v2137
    %v2722 = vpack.c.b16 %v2142, %v2138
    %v2723 = vpack.c.b16 %v2143, %v2139
    %v2724 = vpack.c.b16 %v2144, %v2140
    %v2725 = vpack.c.b16 %v2149, %v2145
    %v2726 = vpack.c.b16 %v2150, %v2146
    %v2727 = vpack.c.b16 %v2151, %v2147
    %v2728 = vpack.c.b16 %v2152, %v2148
    %v2729 = vpack.c.b16 %v2157, %v2153
    %v2730 = vpack.c.b16 %v2158, %v2154
    %v2731 = vpack.c.b16 %v2159, %v2155
    %v2732 = vpack.c.b16 %v2160, %v2156
    %v2733 = vpack.c.b16 %v2165, %v2161
    %v2734 = vpack.c.b16 %v2166, %v2162
    %v2735 = vpack.c.b16 %v2167, %v2163
    %v2736 = vpack.c.b16 %v2168, %v2164
    %v2737 = vpack.c.b16 %v2173, %v2169
    %v2738 = vpack.c.b16 %v2174, %v2170
    %v2739 = vpack.c.b16 %v2175, %v2171
    %v2740 = vpack.c.b16 %v2176, %v2172
    %v2741 = vpack.c.b16 %v2181, %v2177
    %v2742 = vpack.c.b16 %v2182, %v2178
    %v2743 = vpack.c.b16 %v2183, %v2179
    %v2744 = vpack.c.b16 %v2184, %v2180
    %v2745 = vpack.c.b16 %v2189, %v2185
    %v2746 = vpack.c.b16 %v2190, %v2186
    %v2747 = vpack.c.b16 %v2191, %v2187
    %v2748 = vpack.c.b16 %v2192, %v2188
    %v2749 = vpack.c.b16 %v2197, %v2193
    %v2750 = vpack.c.b16 %v2198, %v2194
    %v2751 = vpack.c.b16 %v2199, %v2195
    %v2752 = vpack.c.b16 %v2200, %v2196
    %v2753 = vpack.c.b16 %v2205, %v2201
    %v2754 = vpack.c.b16 %v2206, %v2202
    %v2755 = vpack.c.b16 %v2207, %v2203
    %v2756 = vpack.c.b16 %v2208, %v2204
    %v2757 = vpack.c.b16 %v2213, %v2209
    %v2758 = vpack.c.b16 %v2214, %v2210
    %v2759 = vpack.c.b16 %v2215, %v2211
    %v2760 = vpack.c.b16 %v2216, %v2212
    %v2761 = vpack.c.b16 %v2221, %v2217
    %v2762 = vpack.c.b16 %v2222, %v2218
    %v2763 = vpack.c.b16 %v2223, %v2219
    %v2764 = vpack.c.b16 %v2224, %v2220
    %v2765 = vpack.c.b16 %v2229, %v2225
    %v2766 = vpack.c.b16 %v2230, %v2226
    %v2767 = vpack.c.b16 %v2231, %v2227
    %v2768 = vpack.c.b16 %v2232, %v2228
    %v2769 = vpack.c.b16 %v2237, %v2233
    %v2770 = vpack.c.b16 %v2238, %v2234
    %v2771 = vpack.c.b16 %v2239, %v2235
    %v2772 = vpack.c.b16 %v2240, %v2236
    %v2773 = vpack.c.b16 %v2245, %v2241
    %v2774 = vpack.c.b16 %v2246, %v2242
    %v2775 = vpack.c.b16 %v2247, %v2243
    %v2776 = vpack.c.b16 %v2248, %v2244
    %v2777 = vpack.c.b16 %v2253, %v2249
    %v2778 = vpack.c.b16 %v2254, %v2250
    %v2779 = vpack.c.b16 %v2255, %v2251
    %v2780 = vpack.c.b16 %v2256, %v2252
    %v2781 = vpack.c.b16 %v2261, %v2257
    %v2782 = vpack.c.b16 %v2262, %v2258
    %v2783 = vpack.c.b16 %v2263, %v2259
    %v2784 = vpack.c.b16 %v2264, %v2260
    %v2785 = vpack.c.b16 %v2269, %v2265
    %v2786 = vpack.c.b16 %v2270, %v2266
    %v2787 = vpack.c.b16 %v2271, %v2267
    %v2788 = vpack.c.b16 %v2272, %v2268
    %v2789 = vpack.c.b16 %v2277, %v2273
    %v2790 = vpack.c.b16 %v2278, %v2274
    %v2791 = vpack.c.b16 %v2279, %v2275
    %v2792 = vpack.c.b16 %v2280, %v2276
    %3305 = vmatprep.subr.bf16.mxu0 %v2282
    %3306 = vmatpush1.bf16.msra.mxu0 %v2281
    %3307 = vmatprep.subr.bf16.mxu0 %v2286
    %3308 = vmatpush1.bf16.msra.mxu0 %v2285
    %3309 = vmatprep.subr.bf16.mxu0 %v2290
    %3310 = vmatpush1.bf16.msra.mxu0 %v2289
    %3311 = vmatprep.subr.bf16.mxu0 %v2294
    %3312 = vmatpush1.bf16.msra.mxu0 %v2293
    %3313 = vmatprep.subr.bf16.mxu0 %v2298
    %3314 = vmatpush1.bf16.msra.mxu0 %v2297
    %3315 = vmatprep.subr.bf16.mxu0 %v2302
    %3316 = vmatpush1.bf16.msra.mxu0 %v2301
    %3317 = vmatprep.subr.bf16.mxu0 %v2306
    %3318 = vmatpush1.bf16.msra.mxu0 %v2305
    %3319 = vmatprep.subr.bf16.mxu0 %v2310
    %3320 = vmatpush1.bf16.msra.mxu0 %v2309
    %3321 = vmatprep.subr.bf16.mxu0 %v2314
    %3322 = vmatpush1.bf16.msra.mxu0 %v2313
    %3323 = vmatprep.subr.bf16.mxu0 %v2318
    %3324 = vmatpush1.bf16.msra.mxu0 %v2317
    %3325 = vmatprep.subr.bf16.mxu0 %v2322
    %3326 = vmatpush1.bf16.msra.mxu0 %v2321
    %3327 = vmatprep.subr.bf16.mxu0 %v2326
    %3328 = vmatpush1.bf16.msra.mxu0 %v2325
    %3329 = vmatprep.subr.bf16.mxu0 %v2330
    %3330 = vmatpush1.bf16.msra.mxu0 %v2329
    %3331 = vmatprep.subr.bf16.mxu0 %v2334
    %3332 = vmatpush1.bf16.msra.mxu0 %v2333
    %3333 = vmatprep.subr.bf16.mxu0 %v2338
    %3334 = vmatpush1.bf16.msra.mxu0 %v2337
    %3335 = vmatprep.subr.bf16.mxu0 %v2342
    %3336 = vmatpush1.bf16.msra.mxu0 %v2341
    %3337 = vmatprep.mubr.bf16.mxu0 %v196
    %3338 = vmatmul.mubr.bf16.gmra.mrb[0].mxu0 %v195
    %v3339 = vpop.f32.mrb[0].mxu0
    %v3340 = vadd.f32 %v728, %v3339
    %v3341 = vpop.f32.mrb[0].mxu0
    %v3342 = vadd.f32 %v732, %v3341
    %v3343 = vpop.f32.mrb[0].mxu0
    %v3344 = vpop.f32.mrb[0].mxu0
    %3345 = vdwg.mxu0
    %3346 = vmatprep.subr.bf16.mxu0 %v2346
    %3347 = vmatpush1.bf16.msra.mxu0 %v2345
    %3348 = vmatprep.subr.bf16.mxu0 %v2350
    %3349 = vmatpush1.bf16.msra.mxu0 %v2349
    %3350 = vmatprep.subr.bf16.mxu0 %v2354
    %3351 = vmatpush1.bf16.msra.mxu0 %v2353
    %3352 = vmatprep.subr.bf16.mxu0 %v2358
    %3353 = vmatpush1.bf16.msra.mxu0 %v2357
    %3354 = vmatprep.subr.bf16.mxu0 %v2362
    %3355 = vmatpush1.bf16.msra.mxu0 %v2361
    %3356 = vmatprep.subr.bf16.mxu0 %v2366
    %3357 = vmatpush1.bf16.msra.mxu0 %v2365
    %3358 = vmatprep.subr.bf16.mxu0 %v2370
    %3359 = vmatpush1.bf16.msra.mxu0 %v2369
    %3360 = vmatprep.subr.bf16.mxu0 %v2374
    %3361 = vmatpush1.bf16.msra.mxu0 %v2373
    %3362 = vmatprep.subr.bf16.mxu0 %v2378
    %3363 = vmatpush1.bf16.msra.mxu0 %v2377
    %3364 = vmatprep.subr.bf16.mxu0 %v2382
    %3365 = vmatpush1.bf16.msra.mxu0 %v2381
    %3366 = vmatprep.subr.bf16.mxu0 %v2386
    %3367 = vmatpush1.bf16.msra.mxu0 %v2385
    %3368 = vmatprep.subr.bf16.mxu0 %v2390
    %3369 = vmatpush1.bf16.msra.mxu0 %v2389
    %3370 = vmatprep.subr.bf16.mxu0 %v2394
    %3371 = vmatpush1.bf16.msra.mxu0 %v2393
    %3372 = vmatprep.subr.bf16.mxu0 %v2398
    %3373 = vmatpush1.bf16.msra.mxu0 %v2397
    %3374 = vmatprep.subr.bf16.mxu0 %v2402
    %3375 = vmatpush1.bf16.msra.mxu0 %v2401
    %3376 = vmatprep.subr.bf16.mxu0 %v2406
    %3377 = vmatpush1.bf16.msra.mxu0 %v2405
    %3378 = vmatprep.mubr.bf16.mxu0 %v198
    %3379 = vmatmul.mubr.bf16.gmra.mrb[0].mxu0 %v197
    %v3380 = vpop.f32.mrb[0].mxu0
    %v3381 = vadd.f32 %v3340, %v3380
    %v3382 = vpop.f32.mrb[0].mxu0
    %v3383 = vadd.f32 %v3342, %v3382
    %v3384 = vpop.f32.mrb[0].mxu0
    %v3385 = vpop.f32.mrb[0].mxu0
    %3386 = vdwg.mxu0
    %3387 = vmatprep.subr.bf16.mxu0 %v2410
    %3388 = vmatpush1.bf16.msra.mxu0 %v2409
    %3389 = vmatprep.subr.bf16.mxu0 %v2414
    %3390 = vmatpush1.bf16.msra.mxu0 %v2413
    %3391 = vmatprep.subr.bf16.mxu0 %v2418
    %3392 = vmatpush1.bf16.msra.mxu0 %v2417
    %3393 = vmatprep.subr.bf16.mxu0 %v2422
    %3394 = vmatpush1.bf16.msra.mxu0 %v2421
    %3395 = vmatprep.subr.bf16.mxu0 %v2426
    %3396 = vmatpush1.bf16.msra.mxu0 %v2425
    %3397 = vmatprep.subr.bf16.mxu0 %v2430
    %3398 = vmatpush1.bf16.msra.mxu0 %v2429
    %3399 = vmatprep.subr.bf16.mxu0 %v2434
    %3400 = vmatpush1.bf16.msra.mxu0 %v2433
    %3401 = vmatprep.subr.bf16.mxu0 %v2438
    %3402 = vmatpush1.bf16.msra.mxu0 %v2437
    %3403 = vmatprep.subr.bf16.mxu0 %v2442
    %3404 = vmatpush1.bf16.msra.mxu0 %v2441
    %3405 = vmatprep.subr.bf16.mxu0 %v2446
    %3406 = vmatpush1.bf16.msra.mxu0 %v2445
    %3407 = vmatprep.subr.bf16.mxu0 %v2450
    %3408 = vmatpush1.bf16.msra.mxu0 %v2449
    %3409 = vmatprep.subr.bf16.mxu0 %v2454
    %3410 = vmatpush1.bf16.msra.mxu0 %v2453
    %3411 = vmatprep.subr.bf16.mxu0 %v2458
    %3412 = vmatpush1.bf16.msra.mxu0 %v2457
    %3413 = vmatprep.subr.bf16.mxu0 %v2462
    %3414 = vmatpush1.bf16.msra.mxu0 %v2461
    %3415 = vmatprep.subr.bf16.mxu0 %v2466
    %3416 = vmatpush1.bf16.msra.mxu0 %v2465
    %3417 = vmatprep.subr.bf16.mxu0 %v2470
    %3418 = vmatpush1.bf16.msra.mxu0 %v2469
    %3419 = vmatprep.mubr.bf16.mxu0 %v200
    %3420 = vmatmul.mubr.bf16.gmra.mrb[0].mxu0 %v199
    %v3421 = vpop.f32.mrb[0].mxu0
    %v3422 = vadd.f32 %v3381, %v3421
    %v3423 = vpop.f32.mrb[0].mxu0
    %v3424 = vadd.f32 %v3383, %v3423
    %v3425 = vpop.f32.mrb[0].mxu0
    %v3426 = vpop.f32.mrb[0].mxu0
    %3427 = vdwg.mxu0
    %3428 = vmatprep.subr.bf16.mxu0 %v2474
    %3429 = vmatpush1.bf16.msra.mxu0 %v2473
    %3430 = vmatprep.subr.bf16.mxu0 %v2478
    %3431 = vmatpush1.bf16.msra.mxu0 %v2477
    %3432 = vmatprep.subr.bf16.mxu0 %v2482
    %3433 = vmatpush1.bf16.msra.mxu0 %v2481
    %3434 = vmatprep.subr.bf16.mxu0 %v2486
    %3435 = vmatpush1.bf16.msra.mxu0 %v2485
    %3436 = vmatprep.subr.bf16.mxu0 %v2490
    %3437 = vmatpush1.bf16.msra.mxu0 %v2489
    %3438 = vmatprep.subr.bf16.mxu0 %v2494
    %3439 = vmatpush1.bf16.msra.mxu0 %v2493
    %3440 = vmatprep.subr.bf16.mxu0 %v2498
    %3441 = vmatpush1.bf16.msra.mxu0 %v2497
    %3442 = vmatprep.subr.bf16.mxu0 %v2502
    %3443 = vmatpush1.bf16.msra.mxu0 %v2501
    %3444 = vmatprep.subr.bf16.mxu0 %v2506
    %3445 = vmatpush1.bf16.msra.mxu0 %v2505
    %3446 = vmatprep.subr.bf16.mxu0 %v2510
    %3447 = vmatpush1.bf16.msra.mxu0 %v2509
    %3448 = vmatprep.subr.bf16.mxu0 %v2514
    %3449 = vmatpush1.bf16.msra.mxu0 %v2513
    %3450 = vmatprep.subr.bf16.mxu0 %v2518
    %3451 = vmatpush1.bf16.msra.mxu0 %v2517
    %3452 = vmatprep.subr.bf16.mxu0 %v2522
    %3453 = vmatpush1.bf16.msra.mxu0 %v2521
    %3454 = vmatprep.subr.bf16.mxu0 %v2526
    %3455 = vmatpush1.bf16.msra.mxu0 %v2525
    %3456 = vmatprep.subr.bf16.mxu0 %v2530
    %3457 = vmatpush1.bf16.msra.mxu0 %v2529
    %3458 = vmatprep.subr.bf16.mxu0 %v2534
    %3459 = vmatpush1.bf16.msra.mxu0 %v2533
    %3460 = vmatprep.mubr.bf16.mxu0 %v202
    %3461 = vmatmul.mubr.bf16.gmra.mrb[0].mxu0 %v201
    %v3462 = vpop.f32.mrb[0].mxu0
    %v3463 = vadd.f32 %v3422, %v3462
    %v3464 = vpop.f32.mrb[0].mxu0
    %v3465 = vadd.f32 %v3424, %v3464
    %v3466 = vpop.f32.mrb[0].mxu0
    %v3467 = vpop.f32.mrb[0].mxu0
    %3468 = vdwg.mxu0
    %3469 = vmatprep.subr.bf16.mxu0 %v2538
    %3470 = vmatpush1.bf16.msra.mxu0 %v2537
    %3471 = vmatprep.subr.bf16.mxu0 %v2542
    %3472 = vmatpush1.bf16.msra.mxu0 %v2541
    %3473 = vmatprep.subr.bf16.mxu0 %v2546
    %3474 = vmatpush1.bf16.msra.mxu0 %v2545
    %3475 = vmatprep.subr.bf16.mxu0 %v2550
    %3476 = vmatpush1.bf16.msra.mxu0 %v2549
    %3477 = vmatprep.subr.bf16.mxu0 %v2554
    %3478 = vmatpush1.bf16.msra.mxu0 %v2553
    %3479 = vmatprep.subr.bf16.mxu0 %v2558
    %3480 = vmatpush1.bf16.msra.mxu0 %v2557
    %3481 = vmatprep.subr.bf16.mxu0 %v2562
    %3482 = vmatpush1.bf16.msra.mxu0 %v2561
    %3483 = vmatprep.subr.bf16.mxu0 %v2566
    %3484 = vmatpush1.bf16.msra.mxu0 %v2565
    %3485 = vmatprep.subr.bf16.mxu0 %v2570
    %3486 = vmatpush1.bf16.msra.mxu0 %v2569
    %3487 = vmatprep.subr.bf16.mxu0 %v2574
    %3488 = vmatpush1.bf16.msra.mxu0 %v2573
    %3489 = vmatprep.subr.bf16.mxu0 %v2578
    %3490 = vmatpush1.bf16.msra.mxu0 %v2577
    %3491 = vmatprep.subr.bf16.mxu0 %v2582
    %3492 = vmatpush1.bf16.msra.mxu0 %v2581
    %3493 = vmatprep.subr.bf16.mxu0 %v2586
    %3494 = vmatpush1.bf16.msra.mxu0 %v2585
    %3495 = vmatprep.subr.bf16.mxu0 %v2590
    %3496 = vmatpush1.bf16.msra.mxu0 %v2589
    %3497 = vmatprep.subr.bf16.mxu0 %v2594
    %3498 = vmatpush1.bf16.msra.mxu0 %v2593
    %3499 = vmatprep.subr.bf16.mxu0 %v2598
    %3500 = vmatpush1.bf16.msra.mxu0 %v2597
    %3501 = vmatprep.mubr.bf16.mxu0 %v204
    %3502 = vmatmul.mubr.bf16.gmra.mrb[0].mxu0 %v203
    %v3503 = vpop.f32.mrb[0].mxu0
    %v3504 = vadd.f32 %v3463, %v3503
    %v3505 = vpop.f32.mrb[0].mxu0
    %v3506 = vadd.f32 %v3465, %v3505
    %v3507 = vpop.f32.mrb[0].mxu0
    %v3508 = vpop.f32.mrb[0].mxu0
    %3509 = vdwg.mxu0
    %3510 = vmatprep.subr.bf16.mxu0 %v2602
    %3511 = vmatpush1.bf16.msra.mxu0 %v2601
    %3512 = vmatprep.subr.bf16.mxu0 %v2606
    %3513 = vmatpush1.bf16.msra.mxu0 %v2605
    %3514 = vmatprep.subr.bf16.mxu0 %v2610
    %3515 = vmatpush1.bf16.msra.mxu0 %v2609
    %3516 = vmatprep.subr.bf16.mxu0 %v2614
    %3517 = vmatpush1.bf16.msra.mxu0 %v2613
    %3518 = vmatprep.subr.bf16.mxu0 %v2618
    %3519 = vmatpush1.bf16.msra.mxu0 %v2617
    %3520 = vmatprep.subr.bf16.mxu0 %v2622
    %3521 = vmatpush1.bf16.msra.mxu0 %v2621
    %3522 = vmatprep.subr.bf16.mxu0 %v2626
    %3523 = vmatpush1.bf16.msra.mxu0 %v2625
    %3524 = vmatprep.subr.bf16.mxu0 %v2630
    %3525 = vmatpush1.bf16.msra.mxu0 %v2629
    %3526 = vmatprep.subr.bf16.mxu0 %v2634
    %3527 = vmatpush1.bf16.msra.mxu0 %v2633
    %3528 = vmatprep.subr.bf16.mxu0 %v2638
    %3529 = vmatpush1.bf16.msra.mxu0 %v2637
    %3530 = vmatprep.subr.bf16.mxu0 %v2642
    %3531 = vmatpush1.bf16.msra.mxu0 %v2641
    %3532 = vmatprep.subr.bf16.mxu0 %v2646
    %3533 = vmatpush1.bf16.msra.mxu0 %v2645
    %3534 = vmatprep.subr.bf16.mxu0 %v2650
    %3535 = vmatpush1.bf16.msra.mxu0 %v2649
    %3536 = vmatprep.subr.bf16.mxu0 %v2654
    %3537 = vmatpush1.bf16.msra.mxu0 %v2653
    %3538 = vmatprep.subr.bf16.mxu0 %v2658
    %3539 = vmatpush1.bf16.msra.mxu0 %v2657
    %3540 = vmatprep.subr.bf16.mxu0 %v2662
    %3541 = vmatpush1.bf16.msra.mxu0 %v2661
    %3542 = vmatprep.mubr.bf16.mxu0 %v206
    %3543 = vmatmul.mubr.bf16.gmra.mrb[0].mxu0 %v205
    %v3544 = vpop.f32.mrb[0].mxu0
    %v3545 = vadd.f32 %v3504, %v3544
    %v3546 = vpop.f32.mrb[0].mxu0
    %v3547 = vadd.f32 %v3506, %v3546
    %v3548 = vpop.f32.mrb[0].mxu0
    %v3549 = vpop.f32.mrb[0].mxu0
    %3550 = vdwg.mxu0
    %3551 = vmatprep.subr.bf16.mxu0 %v2666
    %3552 = vmatpush1.bf16.msra.mxu0 %v2665
    %3553 = vmatprep.subr.bf16.mxu0 %v2670
    %3554 = vmatpush1.bf16.msra.mxu0 %v2669
    %3555 = vmatprep.subr.bf16.mxu0 %v2674
    %3556 = vmatpush1.bf16.msra.mxu0 %v2673
    %3557 = vmatprep.subr.bf16.mxu0 %v2678
    %3558 = vmatpush1.bf16.msra.mxu0 %v2677
    %3559 = vmatprep.subr.bf16.mxu0 %v2682
    %3560 = vmatpush1.bf16.msra.mxu0 %v2681
    %3561 = vmatprep.subr.bf16.mxu0 %v2686
    %3562 = vmatpush1.bf16.msra.mxu0 %v2685
    %3563 = vmatprep.subr.bf16.mxu0 %v2690
    %3564 = vmatpush1.bf16.msra.mxu0 %v2689
    %3565 = vmatprep.subr.bf16.mxu0 %v2694
    %3566 = vmatpush1.bf16.msra.mxu0 %v2693
    %3567 = vmatprep.subr.bf16.mxu0 %v2698
    %3568 = vmatpush1.bf16.msra.mxu0 %v2697
    %3569 = vmatprep.subr.bf16.mxu0 %v2702
    %3570 = vmatpush1.bf16.msra.mxu0 %v2701
    %3571 = vmatprep.subr.bf16.mxu0 %v2706
    %3572 = vmatpush1.bf16.msra.mxu0 %v2705
    %3573 = vmatprep.subr.bf16.mxu0 %v2710
    %3574 = vmatpush1.bf16.msra.mxu0 %v2709
    %3575 = vmatprep.subr.bf16.mxu0 %v2714
    %3576 = vmatpush1.bf16.msra.mxu0 %v2713
    %3577 = vmatprep.subr.bf16.mxu0 %v2718
    %3578 = vmatpush1.bf16.msra.mxu0 %v2717
    %3579 = vmatprep.subr.bf16.mxu0 %v2722
    %3580 = vmatpush1.bf16.msra.mxu0 %v2721
    %3581 = vmatprep.subr.bf16.mxu0 %v2726
    %3582 = vmatpush1.bf16.msra.mxu0 %v2725
    %3583 = vmatprep.mubr.bf16.mxu0 %v208
    %3584 = vmatmul.mubr.bf16.gmra.mrb[0].mxu0 %v207
    %v3585 = vpop.f32.mrb[0].mxu0
    %v3586 = vadd.f32 %v3545, %v3585
    %v3587 = vpop.f32.mrb[0].mxu0
    %v3588 = vadd.f32 %v3547, %v3587
    %v3589 = vpop.f32.mrb[0].mxu0
    %v3590 = vpop.f32.mrb[0].mxu0
    %3591 = vdwg.mxu0
    %3592 = vmatprep.subr.bf16.mxu0 %v2730
    %3593 = vmatpush1.bf16.msra.mxu0 %v2729
    %3594 = vmatprep.subr.bf16.mxu0 %v2734
    %3595 = vmatpush1.bf16.msra.mxu0 %v2733
    %3596 = vmatprep.subr.bf16.mxu0 %v2738
    %3597 = vmatpush1.bf16.msra.mxu0 %v2737
    %3598 = vmatprep.subr.bf16.mxu0 %v2742
    %3599 = vmatpush1.bf16.msra.mxu0 %v2741
    %3600 = vmatprep.subr.bf16.mxu0 %v2746
    %3601 = vmatpush1.bf16.msra.mxu0 %v2745
    %3602 = vmatprep.subr.bf16.mxu0 %v2750
    %3603 = vmatpush1.bf16.msra.mxu0 %v2749
    %3604 = vmatprep.subr.bf16.mxu0 %v2754
    %3605 = vmatpush1.bf16.msra.mxu0 %v2753
    %3606 = vmatprep.subr.bf16.mxu0 %v2758
    %3607 = vmatpush1.bf16.msra.mxu0 %v2757
    %3608 = vmatprep.subr.bf16.mxu0 %v2762
    %3609 = vmatpush1.bf16.msra.mxu0 %v2761
    %3610 = vmatprep.subr.bf16.mxu0 %v2766
    %3611 = vmatpush1.bf16.msra.mxu0 %v2765
    %3612 = vmatprep.subr.bf16.mxu0 %v2770
    %3613 = vmatpush1.bf16.msra.mxu0 %v2769
    %3614 = vmatprep.subr.bf16.mxu0 %v2774
    %3615 = vmatpush1.bf16.msra.mxu0 %v2773
    %3616 = vmatprep.subr.bf16.mxu0 %v2778
    %3617 = vmatpush1.bf16.msra.mxu0 %v2777
    %3618 = vmatprep.subr.bf16.mxu0 %v2782
    %3619 = vmatpush1.bf16.msra.mxu0 %v2781
    %3620 = vmatprep.subr.bf16.mxu0 %v2786
    %3621 = vmatpush1.bf16.msra.mxu0 %v2785
    %3622 = vmatprep.subr.bf16.mxu0 %v2790
    %3623 = vmatpush1.bf16.msra.mxu0 %v2789
    %3624 = vmatprep.mubr.bf16.mxu0 %v210
    %3625 = vmatmul.mubr.bf16.gmra.mrb[0].mxu0 %v209
    %v3626 = vpop.f32.mrb[0].mxu0
    %v3627 = vadd.f32 %v3586, %v3626
    %v3628 = vpop.f32.mrb[0].mxu0
    %v3629 = vadd.f32 %v3588, %v3628
    %v3630 = vpop.f32.mrb[0].mxu0
    %v3631 = vpop.f32.mrb[0].mxu0
    %3632 = vdwg.mxu0
    %3633 = vmatprep.subr.bf16.mxu0 %v2284
    %3634 = vmatpush1.bf16.msra.mxu0 %v2283
    %3635 = vmatprep.subr.bf16.mxu0 %v2288
    %3636 = vmatpush1.bf16.msra.mxu0 %v2287
    %3637 = vmatprep.subr.bf16.mxu0 %v2292
    %3638 = vmatpush1.bf16.msra.mxu0 %v2291
    %3639 = vmatprep.subr.bf16.mxu0 %v2296
    %3640 = vmatpush1.bf16.msra.mxu0 %v2295
    %3641 = vmatprep.subr.bf16.mxu0 %v2300
    %3642 = vmatpush1.bf16.msra.mxu0 %v2299
    %3643 = vmatprep.subr.bf16.mxu0 %v2304
    %3644 = vmatpush1.bf16.msra.mxu0 %v2303
    %3645 = vmatprep.subr.bf16.mxu0 %v2308
    %3646 = vmatpush1.bf16.msra.mxu0 %v2307
    %3647 = vmatprep.subr.bf16.mxu0 %v2312
    %3648 = vmatpush1.bf16.msra.mxu0 %v2311
    %3649 = vmatprep.subr.bf16.mxu0 %v2316
    %3650 = vmatpush1.bf16.msra.mxu0 %v2315
    %3651 = vmatprep.subr.bf16.mxu0 %v2320
    %3652 = vmatpush1.bf16.msra.mxu0 %v2319
    %3653 = vmatprep.subr.bf16.mxu0 %v2324
    %3654 = vmatpush1.bf16.msra.mxu0 %v2323
    %3655 = vmatprep.subr.bf16.mxu0 %v2328
    %3656 = vmatpush1.bf16.msra.mxu0 %v2327
    %3657 = vmatprep.subr.bf16.mxu0 %v2332
    %3658 = vmatpush1.bf16.msra.mxu0 %v2331
    %3659 = vmatprep.subr.bf16.mxu0 %v2336
    %3660 = vmatpush1.bf16.msra.mxu0 %v2335
    %3661 = vmatprep.subr.bf16.mxu0 %v2340
    %3662 = vmatpush1.bf16.msra.mxu0 %v2339
    %3663 = vmatprep.subr.bf16.mxu0 %v2344
    %3664 = vmatpush1.bf16.msra.mxu0 %v2343
    %3665 = vmatprep.mubr.bf16.mxu0 %v196
    %3666 = vmatmul.mubr.bf16.gmra.mrb[0].mxu0 %v195
    %v3667 = vpop.f32.mrb[0].mxu0
    %v3668 = vadd.f32 %v736, %v3667
    %v3669 = vpop.f32.mrb[0].mxu0
    %v3670 = vadd.f32 %v740, %v3669
    %v3671 = vpop.f32.mrb[0].mxu0
    %v3672 = vpop.f32.mrb[0].mxu0
    %3673 = vdwg.mxu0
    %3674 = vmatprep.subr.bf16.mxu0 %v2348
    %3675 = vmatpush1.bf16.msra.mxu0 %v2347
    %3676 = vmatprep.subr.bf16.mxu0 %v2352
    %3677 = vmatpush1.bf16.msra.mxu0 %v2351
    %3678 = vmatprep.subr.bf16.mxu0 %v2356
    %3679 = vmatpush1.bf16.msra.mxu0 %v2355
    %3680 = vmatprep.subr.bf16.mxu0 %v2360
    %3681 = vmatpush1.bf16.msra.mxu0 %v2359
    %3682 = vmatprep.subr.bf16.mxu0 %v2364
    %3683 = vmatpush1.bf16.msra.mxu0 %v2363
    %3684 = vmatprep.subr.bf16.mxu0 %v2368
    %3685 = vmatpush1.bf16.msra.mxu0 %v2367
    %3686 = vmatprep.subr.bf16.mxu0 %v2372
    %3687 = vmatpush1.bf16.msra.mxu0 %v2371
    %3688 = vmatprep.subr.bf16.mxu0 %v2376
    %3689 = vmatpush1.bf16.msra.mxu0 %v2375
    %3690 = vmatprep.subr.bf16.mxu0 %v2380
    %3691 = vmatpush1.bf16.msra.mxu0 %v2379
    %3692 = vmatprep.subr.bf16.mxu0 %v2384
    %3693 = vmatpush1.bf16.msra.mxu0 %v2383
    %3694 = vmatprep.subr.bf16.mxu0 %v2388
    %3695 = vmatpush1.bf16.msra.mxu0 %v2387
    %3696 = vmatprep.subr.bf16.mxu0 %v2392
    %3697 = vmatpush1.bf16.msra.mxu0 %v2391
    %3698 = vmatprep.subr.bf16.mxu0 %v2396
    %3699 = vmatpush1.bf16.msra.mxu0 %v2395
    %3700 = vmatprep.subr.bf16.mxu0 %v2400
    %3701 = vmatpush1.bf16.msra.mxu0 %v2399
    %3702 = vmatprep.subr.bf16.mxu0 %v2404
    %3703 = vmatpush1.bf16.msra.mxu0 %v2403
    %3704 = vmatprep.subr.bf16.mxu0 %v2408
    %3705 = vmatpush1.bf16.msra.mxu0 %v2407
    %3706 = vmatprep.mubr.bf16.mxu0 %v198
    %3707 = vmatmul.mubr.bf16.gmra.mrb[0].mxu0 %v197
    %v3708 = vpop.f32.mrb[0].mxu0
    %v3709 = vadd.f32 %v3668, %v3708
    %v3710 = vpop.f32.mrb[0].mxu0
    %v3711 = vadd.f32 %v3670, %v3710
    %v3712 = vpop.f32.mrb[0].mxu0
    %v3713 = vpop.f32.mrb[0].mxu0
    %3714 = vdwg.mxu0
    %3715 = vmatprep.subr.bf16.mxu0 %v2412
    %3716 = vmatpush1.bf16.msra.mxu0 %v2411
    %3717 = vmatprep.subr.bf16.mxu0 %v2416
    %3718 = vmatpush1.bf16.msra.mxu0 %v2415
    %3719 = vmatprep.subr.bf16.mxu0 %v2420
    %3720 = vmatpush1.bf16.msra.mxu0 %v2419
    %3721 = vmatprep.subr.bf16.mxu0 %v2424
    %3722 = vmatpush1.bf16.msra.mxu0 %v2423
    %3723 = vmatprep.subr.bf16.mxu0 %v2428
    %3724 = vmatpush1.bf16.msra.mxu0 %v2427
    %3725 = vmatprep.subr.bf16.mxu0 %v2432
    %3726 = vmatpush1.bf16.msra.mxu0 %v2431
    %3727 = vmatprep.subr.bf16.mxu0 %v2436
    %3728 = vmatpush1.bf16.msra.mxu0 %v2435
    %3729 = vmatprep.subr.bf16.mxu0 %v2440
    %3730 = vmatpush1.bf16.msra.mxu0 %v2439
    %3731 = vmatprep.subr.bf16.mxu0 %v2444
    %3732 = vmatpush1.bf16.msra.mxu0 %v2443
    %3733 = vmatprep.subr.bf16.mxu0 %v2448
    %3734 = vmatpush1.bf16.msra.mxu0 %v2447
    %3735 = vmatprep.subr.bf16.mxu0 %v2452
    %3736 = vmatpush1.bf16.msra.mxu0 %v2451
    %3737 = vmatprep.subr.bf16.mxu0 %v2456
    %3738 = vmatpush1.bf16.msra.mxu0 %v2455
    %3739 = vmatprep.subr.bf16.mxu0 %v2460
    %3740 = vmatpush1.bf16.msra.mxu0 %v2459
    %3741 = vmatprep.subr.bf16.mxu0 %v2464
    %3742 = vmatpush1.bf16.msra.mxu0 %v2463
    %3743 = vmatprep.subr.bf16.mxu0 %v2468
    %3744 = vmatpush1.bf16.msra.mxu0 %v2467
    %3745 = vmatprep.subr.bf16.mxu0 %v2472
    %3746 = vmatpush1.bf16.msra.mxu0 %v2471
    %3747 = vmatprep.mubr.bf16.mxu0 %v200
    %3748 = vmatmul.mubr.bf16.gmra.mrb[0].mxu0 %v199
    %v3749 = vpop.f32.mrb[0].mxu0
    %v3750 = vadd.f32 %v3709, %v3749
    %v3751 = vpop.f32.mrb[0].mxu0
    %v3752 = vadd.f32 %v3711, %v3751
    %v3753 = vpop.f32.mrb[0].mxu0
    %v3754 = vpop.f32.mrb[0].mxu0
    %3755 = vdwg.mxu0
    %3756 = vmatprep.subr.bf16.mxu0 %v2476
    %3757 = vmatpush1.bf16.msra.mxu0 %v2475
    %3758 = vmatprep.subr.bf16.mxu0 %v2480
    %3759 = vmatpush1.bf16.msra.mxu0 %v2479
    %3760 = vmatprep.subr.bf16.mxu0 %v2484
    %3761 = vmatpush1.bf16.msra.mxu0 %v2483
    %3762 = vmatprep.subr.bf16.mxu0 %v2488
    %3763 = vmatpush1.bf16.msra.mxu0 %v2487
    %3764 = vmatprep.subr.bf16.mxu0 %v2492
    %3765 = vmatpush1.bf16.msra.mxu0 %v2491
    %3766 = vmatprep.subr.bf16.mxu0 %v2496
    %3767 = vmatpush1.bf16.msra.mxu0 %v2495
    %3768 = vmatprep.subr.bf16.mxu0 %v2500
    %3769 = vmatpush1.bf16.msra.mxu0 %v2499
    %3770 = vmatprep.subr.bf16.mxu0 %v2504
    %3771 = vmatpush1.bf16.msra.mxu0 %v2503
    %3772 = vmatprep.subr.bf16.mxu0 %v2508
    %3773 = vmatpush1.bf16.msra.mxu0 %v2507
    %3774 = vmatprep.subr.bf16.mxu0 %v2512
    %3775 = vmatpush1.bf16.msra.mxu0 %v2511
    %3776 = vmatprep.subr.bf16.mxu0 %v2516
    %3777 = vmatpush1.bf16.msra.mxu0 %v2515
    %3778 = vmatprep.subr.bf16.mxu0 %v2520
    %3779 = vmatpush1.bf16.msra.mxu0 %v2519
    %3780 = vmatprep.subr.bf16.mxu0 %v2524
    %3781 = vmatpush1.bf16.msra.mxu0 %v2523
    %3782 = vmatprep.subr.bf16.mxu0 %v2528
    %3783 = vmatpush1.bf16.msra.mxu0 %v2527
    %3784 = vmatprep.subr.bf16.mxu0 %v2532
    %3785 = vmatpush1.bf16.msra.mxu0 %v2531
    %3786 = vmatprep.subr.bf16.mxu0 %v2536
    %3787 = vmatpush1.bf16.msra.mxu0 %v2535
    %3788 = vmatprep.mubr.bf16.mxu0 %v202
    %3789 = vmatmul.mubr.bf16.gmra.mrb[0].mxu0 %v201
    %v3790 = vpop.f32.mrb[0].mxu0
    %v3791 = vadd.f32 %v3750, %v3790
    %v3792 = vpop.f32.mrb[0].mxu0
    %v3793 = vadd.f32 %v3752, %v3792
    %v3794 = vpop.f32.mrb[0].mxu0
    %v3795 = vpop.f32.mrb[0].mxu0
    %3796 = vdwg.mxu0
    %3797 = vmatprep.subr.bf16.mxu0 %v2540
    %3798 = vmatpush1.bf16.msra.mxu0 %v2539
    %3799 = vmatprep.subr.bf16.mxu0 %v2544
    %3800 = vmatpush1.bf16.msra.mxu0 %v2543
    %3801 = vmatprep.subr.bf16.mxu0 %v2548
    %3802 = vmatpush1.bf16.msra.mxu0 %v2547
    %3803 = vmatprep.subr.bf16.mxu0 %v2552
    %3804 = vmatpush1.bf16.msra.mxu0 %v2551
    %3805 = vmatprep.subr.bf16.mxu0 %v2556
    %3806 = vmatpush1.bf16.msra.mxu0 %v2555
    %3807 = vmatprep.subr.bf16.mxu0 %v2560
    %3808 = vmatpush1.bf16.msra.mxu0 %v2559
    %3809 = vmatprep.subr.bf16.mxu0 %v2564
    %3810 = vmatpush1.bf16.msra.mxu0 %v2563
    %3811 = vmatprep.subr.bf16.mxu0 %v2568
    %3812 = vmatpush1.bf16.msra.mxu0 %v2567
    %3813 = vmatprep.subr.bf16.mxu0 %v2572
    %3814 = vmatpush1.bf16.msra.mxu0 %v2571
    %3815 = vmatprep.subr.bf16.mxu0 %v2576
    %3816 = vmatpush1.bf16.msra.mxu0 %v2575
    %3817 = vmatprep.subr.bf16.mxu0 %v2580
    %3818 = vmatpush1.bf16.msra.mxu0 %v2579
    %3819 = vmatprep.subr.bf16.mxu0 %v2584
    %3820 = vmatpush1.bf16.msra.mxu0 %v2583
    %3821 = vmatprep.subr.bf16.mxu0 %v2588
    %3822 = vmatpush1.bf16.msra.mxu0 %v2587
    %3823 = vmatprep.subr.bf16.mxu0 %v2592
    %3824 = vmatpush1.bf16.msra.mxu0 %v2591
    %3825 = vmatprep.subr.bf16.mxu0 %v2596
    %3826 = vmatpush1.bf16.msra.mxu0 %v2595
    %3827 = vmatprep.subr.bf16.mxu0 %v2600
    %3828 = vmatpush1.bf16.msra.mxu0 %v2599
    %3829 = vmatprep.mubr.bf16.mxu0 %v204
    %3830 = vmatmul.mubr.bf16.gmra.mrb[0].mxu0 %v203
    %v3831 = vpop.f32.mrb[0].mxu0
    %v3832 = vadd.f32 %v3791, %v3831
    %v3833 = vpop.f32.mrb[0].mxu0
    %v3834 = vadd.f32 %v3793, %v3833
    %v3835 = vpop.f32.mrb[0].mxu0
    %v3836 = vpop.f32.mrb[0].mxu0
    %3837 = vdwg.mxu0
    %3838 = vmatprep.subr.bf16.mxu0 %v2604
    %3839 = vmatpush1.bf16.msra.mxu0 %v2603
    %3840 = vmatprep.subr.bf16.mxu0 %v2608
    %3841 = vmatpush1.bf16.msra.mxu0 %v2607
    %3842 = vmatprep.subr.bf16.mxu0 %v2612
    %3843 = vmatpush1.bf16.msra.mxu0 %v2611
    %3844 = vmatprep.subr.bf16.mxu0 %v2616
    %3845 = vmatpush1.bf16.msra.mxu0 %v2615
    %3846 = vmatprep.subr.bf16.mxu0 %v2620
    %3847 = vmatpush1.bf16.msra.mxu0 %v2619
    %3848 = vmatprep.subr.bf16.mxu0 %v2624
    %3849 = vmatpush1.bf16.msra.mxu0 %v2623
    %3850 = vmatprep.subr.bf16.mxu0 %v2628
    %3851 = vmatpush1.bf16.msra.mxu0 %v2627
    %3852 = vmatprep.subr.bf16.mxu0 %v2632
    %3853 = vmatpush1.bf16.msra.mxu0 %v2631
    %3854 = vmatprep.subr.bf16.mxu0 %v2636
    %3855 = vmatpush1.bf16.msra.mxu0 %v2635
    %3856 = vmatprep.subr.bf16.mxu0 %v2640
    %3857 = vmatpush1.bf16.msra.mxu0 %v2639
    %3858 = vmatprep.subr.bf16.mxu0 %v2644
    %3859 = vmatpush1.bf16.msra.mxu0 %v2643
    %3860 = vmatprep.subr.bf16.mxu0 %v2648
    %3861 = vmatpush1.bf16.msra.mxu0 %v2647
    %3862 = vmatprep.subr.bf16.mxu0 %v2652
    %3863 = vmatpush1.bf16.msra.mxu0 %v2651
    %3864 = vmatprep.subr.bf16.mxu0 %v2656
    %3865 = vmatpush1.bf16.msra.mxu0 %v2655
    %3866 = vmatprep.subr.bf16.mxu0 %v2660
    %3867 = vmatpush1.bf16.msra.mxu0 %v2659
    %3868 = vmatprep.subr.bf16.mxu0 %v2664
    %3869 = vmatpush1.bf16.msra.mxu0 %v2663
    %3870 = vmatprep.mubr.bf16.mxu0 %v206
    %3871 = vmatmul.mubr.bf16.gmra.mrb[0].mxu0 %v205
    %v3872 = vpop.f32.mrb[0].mxu0
    %v3873 = vadd.f32 %v3832, %v3872
    %v3874 = vpop.f32.mrb[0].mxu0
    %v3875 = vadd.f32 %v3834, %v3874
    %v3876 = vpop.f32.mrb[0].mxu0
    %v3877 = vpop.f32.mrb[0].mxu0
    %3878 = vdwg.mxu0
    %3879 = vmatprep.subr.bf16.mxu0 %v2668
    %3880 = vmatpush1.bf16.msra.mxu0 %v2667
    %3881 = vmatprep.subr.bf16.mxu0 %v2672
    %3882 = vmatpush1.bf16.msra.mxu0 %v2671
    %3883 = vmatprep.subr.bf16.mxu0 %v2676
    %3884 = vmatpush1.bf16.msra.mxu0 %v2675
    %3885 = vmatprep.subr.bf16.mxu0 %v2680
    %3886 = vmatpush1.bf16.msra.mxu0 %v2679
    %3887 = vmatprep.subr.bf16.mxu0 %v2684
    %3888 = vmatpush1.bf16.msra.mxu0 %v2683
    %3889 = vmatprep.subr.bf16.mxu0 %v2688
    %3890 = vmatpush1.bf16.msra.mxu0 %v2687
    %3891 = vmatprep.subr.bf16.mxu0 %v2692
    %3892 = vmatpush1.bf16.msra.mxu0 %v2691
    %3893 = vmatprep.subr.bf16.mxu0 %v2696
    %3894 = vmatpush1.bf16.msra.mxu0 %v2695
    %3895 = vmatprep.subr.bf16.mxu0 %v2700
    %3896 = vmatpush1.bf16.msra.mxu0 %v2699
    %3897 = vmatprep.subr.bf16.mxu0 %v2704
    %3898 = vmatpush1.bf16.msra.mxu0 %v2703
    %3899 = vmatprep.subr.bf16.mxu0 %v2708
    %3900 = vmatpush1.bf16.msra.mxu0 %v2707
    %3901 = vmatprep.subr.bf16.mxu0 %v2712
    %3902 = vmatpush1.bf16.msra.mxu0 %v2711
    %3903 = vmatprep.subr.bf16.mxu0 %v2716
    %3904 = vmatpush1.bf16.msra.mxu0 %v2715
    %3905 = vmatprep.subr.bf16.mxu0 %v2720
    %3906 = vmatpush1.bf16.msra.mxu0 %v2719
    %3907 = vmatprep.subr.bf16.mxu0 %v2724
    %3908 = vmatpush1.bf16.msra.mxu0 %v2723
    %3909 = vmatprep.subr.bf16.mxu0 %v2728
    %3910 = vmatpush1.bf16.msra.mxu0 %v2727
    %3911 = vmatprep.mubr.bf16.mxu0 %v208
    %3912 = vmatmul.mubr.bf16.gmra.mrb[0].mxu0 %v207
    %v3913 = vpop.f32.mrb[0].mxu0
    %v3914 = vadd.f32 %v3873, %v3913
    %v3915 = vpop.f32.mrb[0].mxu0
    %v3916 = vadd.f32 %v3875, %v3915
    %v3917 = vpop.f32.mrb[0].mxu0
    %v3918 = vpop.f32.mrb[0].mxu0
    %3919 = vdwg.mxu0
    %3920 = vmatprep.subr.bf16.mxu0 %v2732
    %3921 = vmatpush1.bf16.msra.mxu0 %v2731
    %3922 = vmatprep.subr.bf16.mxu0 %v2736
    %3923 = vmatpush1.bf16.msra.mxu0 %v2735
    %3924 = vmatprep.subr.bf16.mxu0 %v2740
    %3925 = vmatpush1.bf16.msra.mxu0 %v2739
    %3926 = vmatprep.subr.bf16.mxu0 %v2744
    %3927 = vmatpush1.bf16.msra.mxu0 %v2743
    %3928 = vmatprep.subr.bf16.mxu0 %v2748
    %3929 = vmatpush1.bf16.msra.mxu0 %v2747
    %3930 = vmatprep.subr.bf16.mxu0 %v2752
    %3931 = vmatpush1.bf16.msra.mxu0 %v2751
    %3932 = vmatprep.subr.bf16.mxu0 %v2756
    %3933 = vmatpush1.bf16.msra.mxu0 %v2755
    %3934 = vmatprep.subr.bf16.mxu0 %v2760
    %3935 = vmatpush1.bf16.msra.mxu0 %v2759
    %3936 = vmatprep.subr.bf16.mxu0 %v2764
    %3937 = vmatpush1.bf16.msra.mxu0 %v2763
    %3938 = vmatprep.subr.bf16.mxu0 %v2768
    %3939 = vmatpush1.bf16.msra.mxu0 %v2767
    %3940 = vmatprep.subr.bf16.mxu0 %v2772
    %3941 = vmatpush1.bf16.msra.mxu0 %v2771
    %3942 = vmatprep.subr.bf16.mxu0 %v2776
    %3943 = vmatpush1.bf16.msra.mxu0 %v2775
    %3944 = vmatprep.subr.bf16.mxu0 %v2780
    %3945 = vmatpush1.bf16.msra.mxu0 %v2779
    %3946 = vmatprep.subr.bf16.mxu0 %v2784
    %3947 = vmatpush1.bf16.msra.mxu0 %v2783
    %3948 = vmatprep.subr.bf16.mxu0 %v2788
    %3949 = vmatpush1.bf16.msra.mxu0 %v2787
    %3950 = vmatprep.subr.bf16.mxu0 %v2792
    %3951 = vmatpush1.bf16.msra.mxu0 %v2791
    %3952 = vmatprep.mubr.bf16.mxu0 %v210
    %3953 = vmatmul.mubr.bf16.gmra.mrb[0].mxu0 %v209
    %v3954 = vpop.f32.mrb[0].mxu0
    %v3955 = vadd.f32 %v3914, %v3954
    %v3956 = vpop.f32.mrb[0].mxu0
    %v3957 = vadd.f32 %v3916, %v3956
    %v3958 = vpop.f32.mrb[0].mxu0
    %v3959 = vpop.f32.mrb[0].mxu0
    %3960 = vdwg.mxu0
    %v3961 = vmax.f32 %v3627, 0.0
    %v3962 = vmax.f32 %v3629, 0.0
    %v3963 = vmax.f32 %v3955, 0.0
    %v3964 = vmax.f32 %v3957, 0.0
    %v3965 = vpack.c.bf16 %v3961, %v3961
    %v3966 = vpack.c.bf16 %v3962, %v3962
    %v3967 = vpack.c.bf16 %v3963, %v3963
    %v3968 = vpack.c.bf16 %v3964, %v3964
    %v3969 = vld [vmem:[#allocation6] sm:$0xf]
    %v3970 = vld [vmem:[#allocation6 + $0x4] sm:$0xf]
    %v3971 = vld [vmem:[#allocation6 + $0x8] sm:$0xf]
    %v3972 = vld [vmem:[#allocation6 + $0xc] sm:$0xf]
    %v3973 = vld [vmem:[#allocation6 + $0x10] sm:$0xf]
    %v3974 = vld [vmem:[#allocation6 + $0x14] sm:$0xf]
    %v3975 = vld [vmem:[#allocation6 + $0x18] sm:$0xf]
    %v3976 = vld [vmem:[#allocation6 + $0x1c] sm:$0xf]
    %v3977 = vld [vmem:[#allocation6 + $0x20] sm:$0xf]
    %v3978 = vld [vmem:[#allocation6 + $0x24] sm:$0xf]
    %v3979 = vld [vmem:[#allocation6 + $0x28] sm:$0xf]
    %v3980 = vld [vmem:[#allocation6 + $0x2c] sm:$0xf]
    %v3981 = vld [vmem:[#allocation6 + $0x30] sm:$0xf]
    %v3982 = vld [vmem:[#allocation6 + $0x34] sm:$0xf]
    %v3983 = vld [vmem:[#allocation6 + $0x38] sm:$0xf]
    %v3984 = vld [vmem:[#allocation6 + $0x3c] sm:$0xf]
    %v3985 = vld [vmem:[#allocation6 + $0x40] sm:$0xf]
    %v3986 = vld [vmem:[#allocation6 + $0x44] sm:$0xf]
    %v3987 = vld [vmem:[#allocation6 + $0x48] sm:$0xf]
    %v3988 = vld [vmem:[#allocation6 + $0x4c] sm:$0xf]
    %v3989 = vld [vmem:[#allocation6 + $0x50] sm:$0xf]
    %v3990 = vld [vmem:[#allocation6 + $0x54] sm:$0xf]
    %v3991 = vld [vmem:[#allocation6 + $0x58] sm:$0xf]
    %v3992 = vld [vmem:[#allocation6 + $0x5c] sm:$0xf]
    %v3993 = vld [vmem:[#allocation6 + $0x60] sm:$0xf]
    %v3994 = vld [vmem:[#allocation6 + $0x64] sm:$0xf]
    %v3995 = vld [vmem:[#allocation6 + $0x68] sm:$0xf]
    %v3996 = vld [vmem:[#allocation6 + $0x6c] sm:$0xf]
    %v3997 = vld [vmem:[#allocation6 + $0x70] sm:$0xf]
    %v3998 = vld [vmem:[#allocation6 + $0x74] sm:$0xf]
    %v3999 = vld [vmem:[#allocation6 + $0x78] sm:$0xf]
    %v4000 = vld [vmem:[#allocation6 + $0x7c] sm:$0xf]
    %v4001 = vld [vmem:[#allocation6 + $0x80] sm:$0xf]
    %v4002 = vld [vmem:[#allocation6 + $0x84] sm:$0xf]
    %v4003 = vld [vmem:[#allocation6 + $0x88] sm:$0xf]
    %v4004 = vld [vmem:[#allocation6 + $0x8c] sm:$0xf]
    %v4005 = vld [vmem:[#allocation6 + $0x90] sm:$0xf]
    %v4006 = vld [vmem:[#allocation6 + $0x94] sm:$0xf]
    %v4007 = vld [vmem:[#allocation6 + $0x98] sm:$0xf]
    %v4008 = vld [vmem:[#allocation6 + $0x9c] sm:$0xf]
    %v4009 = vld [vmem:[#allocation6 + $0xa0] sm:$0xf]
    %v4010 = vld [vmem:[#allocation6 + $0xa4] sm:$0xf]
    %v4011 = vld [vmem:[#allocation6 + $0xa8] sm:$0xf]
    %v4012 = vld [vmem:[#allocation6 + $0xac] sm:$0xf]
    %v4013 = vld [vmem:[#allocation6 + $0xb0] sm:$0xf]
    %v4014 = vld [vmem:[#allocation6 + $0xb4] sm:$0xf]
    %v4015 = vld [vmem:[#allocation6 + $0xb8] sm:$0xf]
    %v4016 = vld [vmem:[#allocation6 + $0xbc] sm:$0xf]
    %v4017 = vld [vmem:[#allocation6 + $0xc0] sm:$0xf]
    %v4018 = vld [vmem:[#allocation6 + $0xc4] sm:$0xf]
    %v4019 = vld [vmem:[#allocation6 + $0xc8] sm:$0xf]
    %v4020 = vld [vmem:[#allocation6 + $0xcc] sm:$0xf]
    %v4021 = vld [vmem:[#allocation6 + $0xd0] sm:$0xf]
    %v4022 = vld [vmem:[#allocation6 + $0xd4] sm:$0xf]
    %v4023 = vld [vmem:[#allocation6 + $0xd8] sm:$0xf]
    %v4024 = vld [vmem:[#allocation6 + $0xdc] sm:$0xf]
    %v4025 = vld [vmem:[#allocation6 + $0xe0] sm:$0xf]
    %v4026 = vld [vmem:[#allocation6 + $0xe4] sm:$0xf]
    %v4027 = vld [vmem:[#allocation6 + $0xe8] sm:$0xf]
    %v4028 = vld [vmem:[#allocation6 + $0xec] sm:$0xf]
    %v4029 = vld [vmem:[#allocation6 + $0xf0] sm:$0xf]
    %v4030 = vld [vmem:[#allocation6 + $0xf4] sm:$0xf]
    %v4031 = vld [vmem:[#allocation6 + $0xf8] sm:$0xf]
    %v4032 = vld [vmem:[#allocation6 + $0xfc] sm:$0xf]
    %v4033 = vld [vmem:[#allocation7] sm:$0x1]
    %v4035 = vlaneseq
    %v4036 = vshrl.u32 %v4035, 7
    %v4037 = vsub.s32 0, %v4036
    %v4038 = vrot.slane %v4033, %v4037
    %v4104 = vunpack.c.l.b16 %v3969
    %v4105 = vunpack.c.l.b16 %v3970
    %v4106 = vunpack.c.l.b16 %v3971
    %v4107 = vunpack.c.l.b16 %v3972
    %v4108 = vunpack.c.l.b16 %v3973
    %v4109 = vunpack.c.l.b16 %v3974
    %v4110 = vunpack.c.l.b16 %v3975
    %v4111 = vunpack.c.l.b16 %v3976
    %v4112 = vunpack.c.l.b16 %v3977
    %v4113 = vunpack.c.l.b16 %v3978
    %v4114 = vunpack.c.l.b16 %v3979
    %v4115 = vunpack.c.l.b16 %v3980
    %v4116 = vunpack.c.l.b16 %v3981
    %v4117 = vunpack.c.l.b16 %v3982
    %v4118 = vunpack.c.l.b16 %v3983
    %v4119 = vunpack.c.l.b16 %v3984
    %v4120 = vunpack.c.l.b16 %v3985
    %v4121 = vunpack.c.l.b16 %v3986
    %v4122 = vunpack.c.l.b16 %v3987
    %v4123 = vunpack.c.l.b16 %v3988
    %v4124 = vunpack.c.l.b16 %v3989
    %v4125 = vunpack.c.l.b16 %v3990
    %v4126 = vunpack.c.l.b16 %v3991
    %v4127 = vunpack.c.l.b16 %v3992
    %v4128 = vunpack.c.l.b16 %v3993
    %v4129 = vunpack.c.l.b16 %v3994
    %v4130 = vunpack.c.l.b16 %v3995
    %v4131 = vunpack.c.l.b16 %v3996
    %v4132 = vunpack.c.l.b16 %v3997
    %v4133 = vunpack.c.l.b16 %v3998
    %v4134 = vunpack.c.l.b16 %v3999
    %v4135 = vunpack.c.l.b16 %v4000
    %v4136 = vunpack.c.l.b16 %v4001
    %v4137 = vunpack.c.l.b16 %v4002
    %v4138 = vunpack.c.l.b16 %v4003
    %v4139 = vunpack.c.l.b16 %v4004
    %v4140 = vunpack.c.l.b16 %v4005
    %v4141 = vunpack.c.l.b16 %v4006
    %v4142 = vunpack.c.l.b16 %v4007
    %v4143 = vunpack.c.l.b16 %v4008
    %v4144 = vunpack.c.l.b16 %v4009
    %v4145 = vunpack.c.l.b16 %v4010
    %v4146 = vunpack.c.l.b16 %v4011
    %v4147 = vunpack.c.l.b16 %v4012
    %v4148 = vunpack.c.l.b16 %v4013
    %v4149 = vunpack.c.l.b16 %v4014
    %v4150 = vunpack.c.l.b16 %v4015
    %v4151 = vunpack.c.l.b16 %v4016
    %v4152 = vunpack.c.l.b16 %v4017
    %v4153 = vunpack.c.l.b16 %v4018
    %v4154 = vunpack.c.l.b16 %v4019
    %v4155 = vunpack.c.l.b16 %v4020
    %v4156 = vunpack.c.l.b16 %v4021
    %v4157 = vunpack.c.l.b16 %v4022
    %v4158 = vunpack.c.l.b16 %v4023
    %v4159 = vunpack.c.l.b16 %v4024
    %v4160 = vunpack.c.l.b16 %v4025
    %v4161 = vunpack.c.l.b16 %v4026
    %v4162 = vunpack.c.l.b16 %v4027
    %v4163 = vunpack.c.l.b16 %v4028
    %v4164 = vunpack.c.l.b16 %v4029
    %v4165 = vunpack.c.l.b16 %v4030
    %v4166 = vunpack.c.l.b16 %v4031
    %v4167 = vunpack.c.l.b16 %v4032
    %v4168 = vpack.c.b16 %v4105, %v4104
    %v4169 = vpack.c.b16 %v4107, %v4106
    %v4170 = vpack.c.b16 %v4109, %v4108
    %v4171 = vpack.c.b16 %v4111, %v4110
    %v4172 = vpack.c.b16 %v4113, %v4112
    %v4173 = vpack.c.b16 %v4115, %v4114
    %v4174 = vpack.c.b16 %v4117, %v4116
    %v4175 = vpack.c.b16 %v4119, %v4118
    %v4176 = vpack.c.b16 %v4121, %v4120
    %v4177 = vpack.c.b16 %v4123, %v4122
    %v4178 = vpack.c.b16 %v4125, %v4124
    %v4179 = vpack.c.b16 %v4127, %v4126
    %v4180 = vpack.c.b16 %v4129, %v4128
    %v4181 = vpack.c.b16 %v4131, %v4130
    %v4182 = vpack.c.b16 %v4133, %v4132
    %v4183 = vpack.c.b16 %v4135, %v4134
    %v4184 = vpack.c.b16 %v4137, %v4136
    %v4185 = vpack.c.b16 %v4139, %v4138
    %v4186 = vpack.c.b16 %v4141, %v4140
    %v4187 = vpack.c.b16 %v4143, %v4142
    %v4188 = vpack.c.b16 %v4145, %v4144
    %v4189 = vpack.c.b16 %v4147, %v4146
    %v4190 = vpack.c.b16 %v4149, %v4148
    %v4191 = vpack.c.b16 %v4151, %v4150
    %v4192 = vpack.c.b16 %v4153, %v4152
    %v4193 = vpack.c.b16 %v4155, %v4154
    %v4194 = vpack.c.b16 %v4157, %v4156
    %v4195 = vpack.c.b16 %v4159, %v4158
    %v4196 = vpack.c.b16 %v4161, %v4160
    %v4197 = vpack.c.b16 %v4163, %v4162
    %v4198 = vpack.c.b16 %v4165, %v4164
    %v4199 = vpack.c.b16 %v4167, %v4166
    %4232 = vmatprep.subr.bf16.mxu0 0
    %4233 = vmatpush1.bf16.msra.mxu0 %v4168
    %4234 = vmatprep.subr.bf16.mxu0 0
    %4235 = vmatpush1.bf16.msra.mxu0 %v4169
    %4236 = vmatprep.subr.bf16.mxu0 0
    %4237 = vmatpush1.bf16.msra.mxu0 %v4170
    %4238 = vmatprep.subr.bf16.mxu0 0
    %4239 = vmatpush1.bf16.msra.mxu0 %v4171
    %4240 = vmatprep.subr.bf16.mxu0 0
    %4241 = vmatpush1.bf16.msra.mxu0 %v4172
    %4242 = vmatprep.subr.bf16.mxu0 0
    %4243 = vmatpush1.bf16.msra.mxu0 %v4173
    %4244 = vmatprep.subr.bf16.mxu0 0
    %4245 = vmatpush1.bf16.msra.mxu0 %v4174
    %4246 = vmatprep.subr.bf16.mxu0 0
    %4247 = vmatpush1.bf16.msra.mxu0 %v4175
    %4248 = vmatprep.subr.bf16.mxu0 0
    %4249 = vmatpush1.bf16.msra.mxu0 %v4176
    %4250 = vmatprep.subr.bf16.mxu0 0
    %4251 = vmatpush1.bf16.msra.mxu0 %v4177
    %4252 = vmatprep.subr.bf16.mxu0 0
    %4253 = vmatpush1.bf16.msra.mxu0 %v4178
    %4254 = vmatprep.subr.bf16.mxu0 0
    %4255 = vmatpush1.bf16.msra.mxu0 %v4179
    %4256 = vmatprep.subr.bf16.mxu0 0
    %4257 = vmatpush1.bf16.msra.mxu0 %v4180
    %4258 = vmatprep.subr.bf16.mxu0 0
    %4259 = vmatpush1.bf16.msra.mxu0 %v4181
    %4260 = vmatprep.subr.bf16.mxu0 0
    %4261 = vmatpush1.bf16.msra.mxu0 %v4182
    %4262 = vmatprep.subr.bf16.mxu0 0
    %4263 = vmatpush1.bf16.msra.mxu0 %v4183
    %4264 = vmatprep.mubr.bf16.mxu0 %v3966
    %4265 = vmatmul.mubr.bf16.gmra.mrb[0].mxu0 %v3965
    %v4266 = vpop.f32.mrb[0].mxu0
    %v4267 = vadd.f32 %v4038, %v4266
    %v4268 = vpop.f32.mrb[0].mxu0
    %v4269 = vpop.f32.mrb[0].mxu0
    %v4270 = vpop.f32.mrb[0].mxu0
    %4271 = vdwg.mxu0
    %4272 = vmatprep.subr.bf16.mxu0 0
    %4273 = vmatpush1.bf16.msra.mxu0 %v4184
    %4274 = vmatprep.subr.bf16.mxu0 0
    %4275 = vmatpush1.bf16.msra.mxu0 %v4185
    %4276 = vmatprep.subr.bf16.mxu0 0
    %4277 = vmatpush1.bf16.msra.mxu0 %v4186
    %4278 = vmatprep.subr.bf16.mxu0 0
    %4279 = vmatpush1.bf16.msra.mxu0 %v4187
    %4280 = vmatprep.subr.bf16.mxu0 0
    %4281 = vmatpush1.bf16.msra.mxu0 %v4188
    %4282 = vmatprep.subr.bf16.mxu0 0
    %4283 = vmatpush1.bf16.msra.mxu0 %v4189
    %4284 = vmatprep.subr.bf16.mxu0 0
    %4285 = vmatpush1.bf16.msra.mxu0 %v4190
    %4286 = vmatprep.subr.bf16.mxu0 0
    %4287 = vmatpush1.bf16.msra.mxu0 %v4191
    %4288 = vmatprep.subr.bf16.mxu0 0
    %4289 = vmatpush1.bf16.msra.mxu0 %v4192
    %4290 = vmatprep.subr.bf16.mxu0 0
    %4291 = vmatpush1.bf16.msra.mxu0 %v4193
    %4292 = vmatprep.subr.bf16.mxu0 0
    %4293 = vmatpush1.bf16.msra.mxu0 %v4194
    %4294 = vmatprep.subr.bf16.mxu0 0
    %4295 = vmatpush1.bf16.msra.mxu0 %v4195
    %4296 = vmatprep.subr.bf16.mxu0 0
    %4297 = vmatpush1.bf16.msra.mxu0 %v4196
    %4298 = vmatprep.subr.bf16.mxu0 0
    %4299 = vmatpush1.bf16.msra.mxu0 %v4197
    %4300 = vmatprep.subr.bf16.mxu0 0
    %4301 = vmatpush1.bf16.msra.mxu0 %v4198
    %4302 = vmatprep.subr.bf16.mxu0 0
    %4303 = vmatpush1.bf16.msra.mxu0 %v4199
    %4304 = vmatprep.mubr.bf16.mxu0 %v3968
    %4305 = vmatmul.mubr.bf16.gmra.mrb[0].mxu0 %v3967
    %v4306 = vpop.f32.mrb[0].mxu0
    %v4307 = vadd.f32 %v4267, %v4306
    %v4308 = vpop.f32.mrb[0].mxu0
    %v4309 = vpop.f32.mrb[0].mxu0
    %v4310 = vpop.f32.mrb[0].mxu0
    %4311 = vdwg.mxu0
    %v4312 = vmax.f32 %v4307, 0.0
    %v4313 = vpack.c.bf16 %v4312, %v4312
    %v4314 = vld [vmem:[#allocation9] sm:$0xf]
    %v4315 = vld [vmem:[#allocation9 + $0x4] sm:$0xf]
    %v4316 = vld [vmem:[#allocation9 + $0x8] sm:$0xf]
    %v4317 = vld [vmem:[#allocation9 + $0xc] sm:$0xf]
    %v4318 = vld [vmem:[#allocation9 + $0x10] sm:$0xf]
    %v4319 = vld [vmem:[#allocation9 + $0x14] sm:$0xf]
    %v4320 = vld [vmem:[#allocation9 + $0x18] sm:$0xf]
    %v4321 = vld [vmem:[#allocation9 + $0x1c] sm:$0xf]
    %v4322 = vld [vmem:[#allocation9 + $0x20] sm:$0xf]
    %v4323 = vld [vmem:[#allocation9 + $0x24] sm:$0xf]
    %v4324 = vld [vmem:[#allocation9 + $0x28] sm:$0xf]
    %v4325 = vld [vmem:[#allocation9 + $0x2c] sm:$0xf]
    %v4326 = vld [vmem:[#allocation9 + $0x30] sm:$0xf]
    %v4327 = vld [vmem:[#allocation9 + $0x34] sm:$0xf]
    %v4328 = vld [vmem:[#allocation9 + $0x38] sm:$0xf]
    %v4329 = vld [vmem:[#allocation9 + $0x3c] sm:$0xf]
    %v4330 = vld [vmem:[#allocation10] sm:$0x1]
    %v4332 = vlaneseq
    %v4333 = vshrl.u32 %v4332, 7
    %v4334 = vsub.s32 0, %v4333
    %v4335 = vrot.slane %v4330, %v4334
    %v4353 = vunpack.c.l.b16 %v4314
    %v4354 = vunpack.c.l.b16 %v4315
    %v4355 = vunpack.c.l.b16 %v4316
    %v4356 = vunpack.c.l.b16 %v4317
    %v4357 = vunpack.c.l.b16 %v4318
    %v4358 = vunpack.c.l.b16 %v4319
    %v4359 = vunpack.c.l.b16 %v4320
    %v4360 = vunpack.c.l.b16 %v4321
    %v4361 = vunpack.c.l.b16 %v4322
    %v4362 = vunpack.c.l.b16 %v4323
    %v4363 = vunpack.c.l.b16 %v4324
    %v4364 = vunpack.c.l.b16 %v4325
    %v4365 = vunpack.c.l.b16 %v4326
    %v4366 = vunpack.c.l.b16 %v4327
    %v4367 = vunpack.c.l.b16 %v4328
    %v4368 = vunpack.c.l.b16 %v4329
    %v4369 = vpack.c.b16 %v4354, %v4353
    %v4370 = vpack.c.b16 %v4356, %v4355
    %v4371 = vpack.c.b16 %v4358, %v4357
    %v4372 = vpack.c.b16 %v4360, %v4359
    %v4373 = vpack.c.b16 %v4362, %v4361
    %v4374 = vpack.c.b16 %v4364, %v4363
    %v4375 = vpack.c.b16 %v4366, %v4365
    %v4376 = vpack.c.b16 %v4368, %v4367
    %4385 = vmatprep.subr.bf16.mxu0 0
    %4386 = vmatpush1.bf16.msra.mxu0 %v4369
    %4387 = vmatprep.subr.bf16.mxu0 0
    %4388 = vmatpush1.bf16.msra.mxu0 %v4370
    %4389 = vmatprep.subr.bf16.mxu0 0
    %4390 = vmatpush1.bf16.msra.mxu0 %v4371
    %4391 = vmatprep.subr.bf16.mxu0 0
    %4392 = vmatpush1.bf16.msra.mxu0 %v4372
    %4393 = vmatprep.subr.bf16.mxu0 0
    %4394 = vmatpush1.bf16.msra.mxu0 %v4373
    %4395 = vmatprep.subr.bf16.mxu0 0
    %4396 = vmatpush1.bf16.msra.mxu0 %v4374
    %4397 = vmatprep.subr.bf16.mxu0 0
    %4398 = vmatpush1.bf16.msra.mxu0 %v4375
    %4399 = vmatprep.subr.bf16.mxu0 0
    %4400 = vmatpush1.bf16.msra.mxu0 %v4376
    %4401 = vmatprep.subr.bf16.mxu0 0
    %4402 = vmatpush1.bf16.msra.mxu0 0
    %4403 = vmatprep.subr.bf16.mxu0 0
    %4404 = vmatpush1.bf16.msra.mxu0 0
    %4405 = vmatprep.subr.bf16.mxu0 0
    %4406 = vmatpush1.bf16.msra.mxu0 0
    %4407 = vmatprep.subr.bf16.mxu0 0
    %4408 = vmatpush1.bf16.msra.mxu0 0
    %4409 = vmatprep.subr.bf16.mxu0 0
    %4410 = vmatpush1.bf16.msra.mxu0 0
    %4411 = vmatprep.subr.bf16.mxu0 0
    %4412 = vmatpush1.bf16.msra.mxu0 0
    %4413 = vmatprep.subr.bf16.mxu0 0
    %4414 = vmatpush1.bf16.msra.mxu0 0
    %4415 = vmatprep.subr.bf16.mxu0 0
    %4416 = vmatpush1.bf16.msra.mxu0 0
    %4417 = vmatprep.mubr.bf16.mxu0 0
    %4418 = vmatmul.mubr.bf16.gmra.mrb[0].mxu0 %v4313
    %v4419 = vpop.f32.mrb[0].mxu0
    %v4420 = vadd.f32 %v4335, %v4419
    %v4421 = vpop.f32.mrb[0].mxu0
    %v4422 = vpop.f32.mrb[0].mxu0
    %v4423 = vpop.f32.mrb[0].mxu0
    %4424 = vdwg.mxu0
    %v4425 = vpack.c.bf16 %v4420, %v4420
    %4426 = vst [vmem:[%s7] sm:$0x1] %v4425
    // Predicated region
    $region54: #{classifier_forward.1} parent=1 // pred_check
      _
    $region55: #{classifier_forward.1} parent=1 // pred_check_branch
      %4428 = sbr.rel (0) target = $region57
    $region56: #{classifier_forward.1} parent=1 // pred_region
      _
    $region57: #{classifier_forward.1} parent=1 // pred_fallthru
      _
    // Predicated region
    $region58: #{classifier_forward.1} parent=1 // pred_check
      _
    $region59: #{classifier_forward.1} parent=1 // pred_check_branch
      %4430 = sbr.rel (0) target = $region61
    $region60: #{classifier_forward.1} parent=1 // pred_region
      _
    $region61: #{classifier_forward.1} parent=1 // pred_fallthru
      _
    %4431 = vsyncpa [#allocation3], 1
    %4432 = vsyncpa [#allocation5], 1
    %4433 = vsyncpa [#allocation8], 1
    %4434 = vsyncpa [#allocation11], 1

</llo_original>
